<compile_context>
chip_gen: v7x
topology: tpu7x:2x2x1
jax: 0.10.0
libtpu: 0.0.40
codegen_flags: <defaults>
</compile_context>

<pallas_src>
import numpy as np
import jax
import jax.numpy as jnp
from jax import lax
from jax.experimental import pallas as pl
from jax.experimental.pallas import tpu as pltpu

# ----------------------------- configuration --------------------------------
B = 2                         # batch
C_IN = 3                      # image channels (NCHW)
IMG = 16                      # image H = W
PATCH = 8                     # ViT patch size
GRID = IMG // PATCH
NPATCH = GRID * GRID          # 4 patches
PATCH_DIM = C_IN * PATCH * PATCH   # 192
VIT_D = 32                    # ViT hidden dim
PHI_D = 32                    # phi hidden dim
NH = 2                        # attention heads
DH = PHI_D // NH              # head dim (16)
MLP_H = 64                    # MLP hidden
VOCAB = 64                    # toy vocab size
VOCAB_PAD = 128               # lane-dense padded vocab for the logits output
T_TEXT = 8                    # padded/truncated text length
T_VIT = NPATCH + 1            # real ViT sequence length (CLS + patches) = 5
TV_P = 8                      # ViT sequence padded to a sublane multiple
L_PHI = T_TEXT + 1            # real phi sequence length (image token + text) = 9
L_P = 16                      # phi sequence padded to a sublane multiple

_VMEM = pl.BlockSpec(memory_space=pltpu.MemorySpace.VMEM)

_BLOCK_KEYS = ("ln1_g", "ln1_b", "wq", "wk", "wv", "bq", "bk", "bv",
               "wo", "bo", "ln2_g", "ln2_b", "w1", "b1", "w2", "b2")


# ------------------------- in-kernel building blocks -------------------------
def _mm(a, b):
    """2-D matmul with bf16 MXU inputs and f32 accumulation."""
    return lax.dot_general(a.astype(jnp.bfloat16), b.astype(jnp.bfloat16),
                           (((1,), (0,)), ((), ())),
                           preferred_element_type=jnp.float32)


def _layernorm(x, g, b, eps=1e-5):
    mu = jnp.mean(x, axis=-1, keepdims=True)
    var = jnp.mean((x - mu) ** 2, axis=-1, keepdims=True)
    return (x - mu) * lax.rsqrt(var + eps) * g + b


def _mha(x_ln, wq, wk, wv, bq, bk, bv, wo, bo, ok_mask, batch, seq, dh):
    """Multi-head attention over a (batch*seq, D) residual slab.

    Head weights live on a leading dim (no lane-offset slicing), score / PV
    matmuls are batched over `batch`, and head outputs are folded into the
    output projection so no scratch buffer or concat is needed.
    """
    scale = 1.0 / float(np.sqrt(dh))
    out = None
    for h in range(NH):                                   # static unroll (2)
        q = (_mm(x_ln, wq[h]) + bq[h]).reshape(batch, seq, dh)
        k = (_mm(x_ln, wk[h]) + bk[h]).reshape(batch, seq, dh)
        v = (_mm(x_ln, wv[h]) + bv[h]).reshape(batch, seq, dh)
        s = lax.dot_general(q.astype(jnp.bfloat16), k.astype(jnp.bfloat16),
                            (((2,), (2,)), ((0,), (0,))),
                            preferred_element_type=jnp.float32) * scale
        s = jnp.where(ok_mask, s, -1e30)
        m = jnp.max(s, axis=-1, keepdims=True)
        p = jnp.exp(s - m)
        denom = jnp.sum(p, axis=-1, keepdims=True)
        p = p * pl.reciprocal(denom, approx=True)
        o = lax.dot_general(p.astype(jnp.bfloat16), v.astype(jnp.bfloat16),
                            (((2,), (1,)), ((0,), (0,))),
                            preferred_element_type=jnp.float32)
        contrib = _mm(o.reshape(batch * seq, dh), wo[h])
        out = contrib if out is None else out + contrib
    return out + bo


def _transformer_block(x, blk_refs, ok_mask, batch, seq, dh):
    (ln1g, ln1b, wq, wk, wv, bq, bk, bv, wo, bo,
     ln2g, ln2b, w1, b1, w2, b2) = [r[...] for r in blk_refs]
    h = _layernorm(x, ln1g, ln1b)
    x = x + _mha(h, wq, wk, wv, bq, bk, bv, wo, bo, ok_mask, batch, seq, dh)
    h = _layernorm(x, ln2g, ln2b)
    hh = jax.nn.gelu(_mm(h, w1) + b1, approximate=True)
    return x + _mm(hh, w2) + b2


# ----------------------- single fused forward kernel -------------------------
def _vlm_kernel(*refs):
    (patches_ref, pos_ref, cls_ref, pw_ref, pb_ref) = refs[0:5]
    vit_blk = refs[5:21]
    vlnfg, vlnfb, projw, projb = refs[21:25]
    embed_ref, ids_ref, mask_ref, lab_ref = refs[25:29]
    phi_blk = refs[29:45]
    plnfg, plnfb, lmw, lmb = refs[45:49]
    logits_ref, loss_ref = refs[49], refs[50]

    f32 = jnp.float32

    # ---------------- ViT encoder (frozen in reference; forward-only) --------
    pe = _mm(patches_ref[...], pw_ref[...]) + pb_ref[...]          # (B*TV_P, D)
    row = lax.broadcasted_iota(jnp.int32, (B * TV_P, VIT_D), 0)
    row_in_seq = jnp.bitwise_and(row, TV_P - 1)
    cls_bc = jnp.broadcast_to(cls_ref[...], (B * TV_P, VIT_D))
    x = pos_ref[...] + jnp.where(row_in_seq == 0, cls_bc, pe)

    key_col = lax.broadcasted_iota(jnp.int32, (TV_P, TV_P), 1)
    vit_ok = jnp.broadcast_to((key_col < T_VIT)[None], (B, TV_P, TV_P))
    x = _transformer_block(x, vit_blk, vit_ok, B, TV_P, VIT_D // NH)
    x = _layernorm(x, vlnfg[...], vlnfb[...])

    # CLS extraction via a tiny selection matmul (rows 0, TV_P, 2*TV_P, ...).
    sr = lax.broadcasted_iota(jnp.int32, (B, B * TV_P), 0)
    sc = lax.broadcasted_iota(jnp.int32, (B, B * TV_P), 1)
    sel = (sc == sr * TV_P).astype(f32)                            # (B, B*TV_P)
    cls_tok = jnp.dot(sel, x, preferred_element_type=f32)          # (B, VIT_D)

    # Projector + narrow-dtype cast of the projected image features.
    proj = _mm(cls_tok, projw[...]) + projb[...]                   # (B, PHI_D)
    # TODO(synk): reference casts to torch.float16; bf16 round-trip stands in
    #             for the fp16 quantisation (TPU-native narrow dtype).
    proj = proj.astype(jnp.bfloat16).astype(f32)

    # ------------- phi input assembly (image token + text embeddings) --------
    ids = ids_ref[...]                                             # (B*L_P, 1)
    voc = lax.broadcasted_iota(jnp.int32, (B * L_P, VOCAB), 1)
    onehot = (ids == voc).astype(f32)
    emb_rows = jnp.dot(onehot, embed_ref[...],
                       preferred_element_type=f32)                 # (B*L_P, D)

    pr = lax.broadcasted_iota(jnp.int32, (B * L_P, B), 0)
    pc = lax.broadcasted_iota(jnp.int32, (B * L_P, B), 1)
    place = (pr == pc * L_P).astype(f32)                           # (B*L_P, B)
    img_rows = jnp.dot(place, proj, preferred_element_type=f32)    # (B*L_P, D)

    prow = lax.broadcasted_iota(jnp.int32, (B * L_P, PHI_D), 0)
    pos_in_seq = jnp.bitwise_and(prow, L_P - 1)
    x = jnp.where(pos_in_seq == 0, img_rows, emb_rows)             # (B*L_P, D)

    # ---------------- phi causal LM -------------------------------------------
    qi = lax.broadcasted_iota(jnp.int32, (L_P, L_P), 0)
    ki = lax.broadcasted_iota(jnp.int32, (L_P, L_P), 1)
    causal_ok = (ki <= qi)[None]                                   # (1, L_P, L_P)
    key_ok = mask_ref[...] > 0.5                                   # (B, 1, L_P)
    phi_ok = jnp.logical_and(causal_ok, key_ok)                    # (B, L_P, L_P)

    x = _transformer_block(x, phi_blk, phi_ok, B, L_P, DH)
    x = _layernorm(x, plnfg[...], plnfb[...])
    logits = _mm(x, lmw[...]) + lmb[...]                           # (B*L_P, 128)
    logits_ref[...] = logits                                       # lane-dense store

    # HF-style shifted cross-entropy; labels already shifted & -100-padded.
    labels = lab_ref[...]                                          # (B*L_P, 1)
    vids = lax.broadcasted_iota(jnp.int32, (B * L_P, VOCAB_PAD), 1)
    lmask = jnp.where(vids < VOCAB, logits, -1e30)                 # drop pad vocab
    m = jnp.max(lmask, axis=-1, keepdims=True)
    lse = jnp.log(jnp.sum(jnp.exp(lmask - m), axis=-1, keepdims=True)) + m
    correct = jnp.sum(jnp.where(labels == vids, logits, 0.0),
                      axis=-1, keepdims=True)
    valid = labels != -100
    nll = lse - correct
    total = jnp.sum(jnp.where(valid, nll, 0.0), axis=0, keepdims=True)   # (1,1)
    count = jnp.sum(valid.astype(f32), axis=0, keepdims=True)            # (1,1)
    loss_ref[...] = total / jnp.maximum(count, 1.0)


# ------------------------------ toy tokenizer --------------------------------
# TODO(synk): string tokenization has no Pallas equivalent; deterministic
#             host-side word-hash tokenizer stands in for the HF tokenizer.
def _word_id(w):
    return (sum(ord(c) for c in w) % (VOCAB - 1)) + 1


def toy_tokenize(texts, max_len=T_TEXT):
    ids = np.zeros((len(texts), max_len), np.int32)
    mask = np.zeros((len(texts), max_len), np.int32)
    for i, t in enumerate(texts):
        toks = [_word_id(w) for w in t.split()][:max_len]
        ids[i, : len(toks)] = toks
        mask[i, : len(toks)] = 1
    return ids, mask


def toy_prompt_len(prompt):
    return min(len(prompt.split()), T_TEXT)


# ------------------------- jitted numeric forward path ------------------------
@jax.jit
def vlm_numeric(params, pixel_values, input_ids, attention_mask, labels):
    vit = params["vit"]
    phi = params["phi"]

    # Patch extraction (pure layout, feeds the single fused kernel); pad the
    # sequence to TV_P rows with a zero CLS slot (row 0) and zero tail rows.
    p = pixel_values.reshape(B, C_IN, GRID, PATCH, GRID, PATCH)
    p = p.transpose(0, 2, 4, 1, 3, 5).reshape(B, NPATCH, PATCH_DIM)
    patches2d = jnp.concatenate(
        [jnp.zeros((B, 1, PATCH_DIM), jnp.float32), p,
         jnp.zeros((B, TV_P - 1 - NPATCH, PATCH_DIM), jnp.float32)],
        axis=1).reshape(B * TV_P, PATCH_DIM)

    pos2d = jnp.tile(
        jnp.concatenate([vit["pos"],
                         jnp.zeros((TV_P - T_VIT, VIT_D), jnp.float32)], axis=0),
        (B, 1))                                                    # (B*TV_P, D)

    # phi inputs padded to L_P positions (pads are key-masked + loss-masked).
    ids_col = jnp.concatenate(
        [jnp.zeros((B, 1), jnp.int32), input_ids.astype(jnp.int32),
         jnp.zeros((B, L_P - L_PHI), jnp.int32)], axis=1).reshape(B * L_P, 1)

    mask3 = jnp.concatenate(
        [jnp.ones((B, 1), jnp.float32), attention_mask.astype(jnp.float32),
         jnp.zeros((B, L_P - L_PHI), jnp.float32)], axis=1).reshape(B, 1, L_P)

    # Reference label construction: prepend -100 for the image token, then the
    # HF causal shift (logits[:, j] paired with labels[:, j+1], last ignored).
    labels_full = jnp.concatenate(
        [jnp.full((B, 1), -100, jnp.int32), labels.astype(jnp.int32)], axis=1)
    shifted = jnp.concatenate(
        [labels_full[:, 1:], jnp.full((B, 1), -100, jnp.int32)], axis=1)
    labels_col = jnp.concatenate(
        [shifted, jnp.full((B, L_P - L_PHI), -100, jnp.int32)],
        axis=1).reshape(B * L_P, 1)

    # Lane-dense LM head (vocab padded to 128; sliced back outside the kernel).
    lm_w_pad = jnp.pad(phi["lm_w"], ((0, 0), (0, VOCAB_PAD - VOCAB)))
    lm_b_pad = jnp.pad(phi["lm_b"], ((0, 0), (0, VOCAB_PAD - VOCAB)))

    args = ([patches2d, pos2d, vit["cls"], vit["patch_w"], vit["patch_b"]]
            + [vit["block"][k] for k in _BLOCK_KEYS]
            + [vit["lnf_g"], vit["lnf_b"], params["proj_w"], params["proj_b"]]
            + [phi["embed"].astype(jnp.float32), ids_col, mask3, labels_col]
            + [phi["block"][k] for k in _BLOCK_KEYS]
            + [phi["lnf_g"], phi["lnf_b"], lm_w_pad, lm_b_pad])

    logits_pad, loss = pl.pallas_call(
        _vlm_kernel,
        out_shape=(jax.ShapeDtypeStruct((B * L_P, VOCAB_PAD), jnp.float32),
                   jax.ShapeDtypeStruct((1, 1), jnp.float32)),
        in_specs=[_VMEM] * len(args),
        out_specs=(_VMEM, _VMEM),
    )(*args)

    logits = logits_pad.reshape(B, L_P, VOCAB_PAD)[:, :L_PHI, :VOCAB]
    return loss[0, 0], logits


def vlm_forward(params, pixel_values, questions, answers):
    # Host-side string / label prep (outside jit), mirroring the reference.
    prompts = [f"<image> Question: {q.strip()} Answer:" for q in questions]
    full_texts = [f"{p} {a[0].strip()}" for p, a in zip(prompts, answers)]
    input_ids_np, attn_np = toy_tokenize(full_texts)
    labels_np = input_ids_np.copy()
    for i, pr in enumerate(prompts):
        labels_np[i, : toy_prompt_len(pr)] = -100
    # NOTE: matching the literal reference, padded label positions are NOT
    # masked from the loss (only prompt tokens become -100).
    return vlm_numeric(params, pixel_values,
                       jnp.asarray(input_ids_np), jnp.asarray(attn_np),
                       jnp.asarray(labels_np))


# ------------------------------ parameter init --------------------------------
def _nrm(key, shape, scale=0.02):
    return scale * jax.random.normal(key, shape, jnp.float32)


def init_block(key, d, mlp_h):
    dh = d // NH
    ks = jax.random.split(key, 6)
    return dict(
        ln1_g=jnp.ones((1, d), jnp.float32), ln1_b=jnp.zeros((1, d), jnp.float32),
        wq=_nrm(ks[0], (NH, d, dh)), wk=_nrm(ks[1], (NH, d, dh)),
        wv=_nrm(ks[2], (NH, d, dh)),
        bq=jnp.zeros((NH, 1, dh), jnp.float32),
        bk=jnp.zeros((NH, 1, dh), jnp.float32),
        bv=jnp.zeros((NH, 1, dh), jnp.float32),
        wo=_nrm(ks[3], (NH, dh, d)), bo=jnp.zeros((1, d), jnp.float32),
        ln2_g=jnp.ones((1, d), jnp.float32), ln2_b=jnp.zeros((1, d), jnp.float32),
        w1=_nrm(ks[4], (d, mlp_h)), b1=jnp.zeros((1, mlp_h), jnp.float32),
        w2=_nrm(ks[5], (mlp_h, d)), b2=jnp.zeros((1, d), jnp.float32),
    )


def init_params(key):
    ks = jax.random.split(key, 8)
    vit = dict(
        patch_w=_nrm(ks[0], (PATCH_DIM, VIT_D)),
        patch_b=jnp.zeros((1, VIT_D), jnp.float32),
        cls=_nrm(ks[1], (1, VIT_D)),
        pos=_nrm(ks[2], (T_VIT, VIT_D)),
        block=init_block(ks[3], VIT_D, MLP_H),
        lnf_g=jnp.ones((1, VIT_D), jnp.float32),
        lnf_b=jnp.zeros((1, VIT_D), jnp.float32),
    )
    phi = dict(
        embed=_nrm(ks[4], (VOCAB, PHI_D)).astype(jnp.float16),   # fp16 table
        block=init_block(ks[5], PHI_D, MLP_H),
        lnf_g=jnp.ones((1, PHI_D), jnp.float32),
        lnf_b=jnp.zeros((1, PHI_D), jnp.float32),
        lm_w=_nrm(ks[6], (PHI_D, VOCAB)),
        lm_b=jnp.zeros((1, VOCAB), jnp.float32),
    )
    return dict(vit=vit,
                proj_w=_nrm(ks[7], (VIT_D, PHI_D)),
                proj_b=jnp.zeros((1, PHI_D), jnp.float32),
                phi=phi)


# ------------------------------------ main ------------------------------------
if __name__ == "__main__":
    key = jax.random.PRNGKey(0)
    pkey, xkey = jax.random.split(key)
    params = init_params(pkey)

    pixel_values = jax.random.normal(xkey, (B, C_IN, IMG, IMG), jnp.float32)  # NCHW
    questions = ["what is this?", "describe"]
    answers = [["a cat"], ["a small dog"]]

    loss, logits = vlm_forward(params, pixel_values, questions, answers)
    loss = jax.block_until_ready(loss)
    logits = jax.block_until_ready(logits)

    assert logits.shape == (B, L_PHI, VOCAB)
    assert bool(jnp.isfinite(loss))
    print("KERNEL_OK")
</pallas_src>

<mosaic_0001>
module attributes {stable_mosaic.version = 11 : i64} {
  func.func @_vlm_kernel(%arg0: memref<16x192xf32, #tpu.memory_space<vmem>>, %arg1: memref<16x32xf32, #tpu.memory_space<vmem>>, %arg2: memref<1x32xf32, #tpu.memory_space<vmem>>, %arg3: memref<192x32xf32, #tpu.memory_space<vmem>>, %arg4: memref<1x32xf32, #tpu.memory_space<vmem>>, %arg5: memref<1x32xf32, #tpu.memory_space<vmem>>, %arg6: memref<1x32xf32, #tpu.memory_space<vmem>>, %arg7: memref<2x32x16xf32, #tpu.memory_space<vmem>>, %arg8: memref<2x32x16xf32, #tpu.memory_space<vmem>>, %arg9: memref<2x32x16xf32, #tpu.memory_space<vmem>>, %arg10: memref<2x1x16xf32, #tpu.memory_space<vmem>>, %arg11: memref<2x1x16xf32, #tpu.memory_space<vmem>>, %arg12: memref<2x1x16xf32, #tpu.memory_space<vmem>>, %arg13: memref<2x16x32xf32, #tpu.memory_space<vmem>>, %arg14: memref<1x32xf32, #tpu.memory_space<vmem>>, %arg15: memref<1x32xf32, #tpu.memory_space<vmem>>, %arg16: memref<1x32xf32, #tpu.memory_space<vmem>>, %arg17: memref<32x64xf32, #tpu.memory_space<vmem>>, %arg18: memref<1x64xf32, #tpu.memory_space<vmem>>, %arg19: memref<64x32xf32, #tpu.memory_space<vmem>>, %arg20: memref<1x32xf32, #tpu.memory_space<vmem>>, %arg21: memref<1x32xf32, #tpu.memory_space<vmem>>, %arg22: memref<1x32xf32, #tpu.memory_space<vmem>>, %arg23: memref<32x32xf32, #tpu.memory_space<vmem>>, %arg24: memref<1x32xf32, #tpu.memory_space<vmem>>, %arg25: memref<64x32xf32, #tpu.memory_space<vmem>>, %arg26: memref<32x1xi32, #tpu.memory_space<vmem>>, %arg27: memref<2x1x16xf32, #tpu.memory_space<vmem>>, %arg28: memref<32x1xi32, #tpu.memory_space<vmem>>, %arg29: memref<1x32xf32, #tpu.memory_space<vmem>>, %arg30: memref<1x32xf32, #tpu.memory_space<vmem>>, %arg31: memref<2x32x16xf32, #tpu.memory_space<vmem>>, %arg32: memref<2x32x16xf32, #tpu.memory_space<vmem>>, %arg33: memref<2x32x16xf32, #tpu.memory_space<vmem>>, %arg34: memref<2x1x16xf32, #tpu.memory_space<vmem>>, %arg35: memref<2x1x16xf32, #tpu.memory_space<vmem>>, %arg36: memref<2x1x16xf32, #tpu.memory_space<vmem>>, %arg37: memref<2x16x32xf32, #tpu.memory_space<vmem>>, %arg38: memref<1x32xf32, #tpu.memory_space<vmem>>, %arg39: memref<1x32xf32, #tpu.memory_space<vmem>>, %arg40: memref<1x32xf32, #tpu.memory_space<vmem>>, %arg41: memref<32x64xf32, #tpu.memory_space<vmem>>, %arg42: memref<1x64xf32, #tpu.memory_space<vmem>>, %arg43: memref<64x32xf32, #tpu.memory_space<vmem>>, %arg44: memref<1x32xf32, #tpu.memory_space<vmem>>, %arg45: memref<1x32xf32, #tpu.memory_space<vmem>>, %arg46: memref<1x32xf32, #tpu.memory_space<vmem>>, %arg47: memref<32x128xf32, #tpu.memory_space<vmem>>, %arg48: memref<1x128xf32, #tpu.memory_space<vmem>>, %arg49: memref<32x128xf32, #tpu.memory_space<vmem>>, %arg50: memref<1x1xf32, #tpu.memory_space<vmem>>) attributes {dimension_semantics = [], scalar_prefetch = 0 : i64, scratch_operands = 0 : i64, tpu.core_type = #tpu.core_type<tc>} {
    %c0 = arith.constant 0 : index
    %c0_0 = arith.constant 0 : index
    %0 = vector.load %arg0[%c0, %c0_0] : memref<16x192xf32, #tpu.memory_space<vmem>>, vector<16x192xf32>
    %c0_1 = arith.constant 0 : index
    %c0_2 = arith.constant 0 : index
    %1 = vector.load %arg3[%c0_1, %c0_2] : memref<192x32xf32, #tpu.memory_space<vmem>>, vector<192x32xf32>
    %2 = arith.truncf %0 : vector<16x192xf32> to vector<16x192xbf16>
    %3 = arith.truncf %1 : vector<192x32xf32> to vector<192x32xbf16>
    %cst = arith.constant dense<0.000000e+00> : vector<16x32xf32>
    %4 = tpu.matmul %2, %3, %cst {dimension_numbers = #tpu.dot_dimension_numbers<[1], [0], [0], [1], [0, 0, 1, 1], [], []>} : vector<16x192xbf16>, vector<192x32xbf16>, vector<16x32xf32> -> vector<16x32xf32>
    %c0_3 = arith.constant 0 : index
    %c0_4 = arith.constant 0 : index
    %5 = vector.load %arg4[%c0_3, %c0_4] : memref<1x32xf32, #tpu.memory_space<vmem>>, vector<1x32xf32>
    %6 = vector.broadcast %5 : vector<1x32xf32> to vector<16x32xf32>
    %7 = arith.addf %4, %6 : vector<16x32xf32>
    %8 = tpu.iota {dimensions = array<i32: 0>} : vector<16x32xi32>
    %c7_i32 = arith.constant 7 : i32
    %9 = vector.broadcast %c7_i32 : i32 to vector<16x32xi32>
    %10 = arith.andi %8, %9 : vector<16x32xi32>
    %c0_5 = arith.constant 0 : index
    %c0_6 = arith.constant 0 : index
    %11 = vector.load %arg2[%c0_5, %c0_6] : memref<1x32xf32, #tpu.memory_space<vmem>>, vector<1x32xf32>
    %12 = vector.shape_cast %11 : vector<1x32xf32> to vector<1x32xf32>
    %13 = vector.broadcast %12 : vector<1x32xf32> to vector<16x32xf32>
    %c0_7 = arith.constant 0 : index
    %c0_8 = arith.constant 0 : index
    %14 = vector.load %arg1[%c0_7, %c0_8] : memref<16x32xf32, #tpu.memory_space<vmem>>, vector<16x32xf32>
    %c0_i32 = arith.constant 0 : i32
    %15 = vector.broadcast %c0_i32 : i32 to vector<16x32xi32>
    %16 = arith.cmpi eq, %10, %15 : vector<16x32xi32>
    %17 = arith.select %16, %13, %7 : vector<16x32xi1>, vector<16x32xf32>
    %18 = arith.addf %14, %17 : vector<16x32xf32>
    %19 = tpu.iota {dimensions = array<i32: 1>} : vector<8x8xi32>
    %c5_i32 = arith.constant 5 : i32
    %20 = vector.broadcast %c5_i32 : i32 to vector<8x8xi32>
    %21 = arith.cmpi slt, %19, %20 : vector<8x8xi32>
    %22 = vector.shape_cast %21 : vector<8x8xi1> to vector<1x8x8xi1>
    %23 = vector.shape_cast %22 : vector<1x8x8xi1> to vector<1x8x8xi1>
    %24 = vector.broadcast %23 : vector<1x8x8xi1> to vector<2x8x8xi1>
    %c0_9 = arith.constant 0 : index
    %c0_10 = arith.constant 0 : index
    %25 = vector.load %arg5[%c0_9, %c0_10] : memref<1x32xf32, #tpu.memory_space<vmem>>, vector<1x32xf32>
    %c0_11 = arith.constant 0 : index
    %c0_12 = arith.constant 0 : index
    %26 = vector.load %arg6[%c0_11, %c0_12] : memref<1x32xf32, #tpu.memory_space<vmem>>, vector<1x32xf32>
    %c0_13 = arith.constant 0 : index
    %c0_14 = arith.constant 0 : index
    %c0_15 = arith.constant 0 : index
    %27 = vector.load %arg7[%c0_13, %c0_14, %c0_15] : memref<2x32x16xf32, #tpu.memory_space<vmem>>, vector<2x32x16xf32>
    %c0_16 = arith.constant 0 : index
    %c0_17 = arith.constant 0 : index
    %c0_18 = arith.constant 0 : index
    %28 = vector.load %arg8[%c0_16, %c0_17, %c0_18] : memref<2x32x16xf32, #tpu.memory_space<vmem>>, vector<2x32x16xf32>
    %c0_19 = arith.constant 0 : index
    %c0_20 = arith.constant 0 : index
    %c0_21 = arith.constant 0 : index
    %29 = vector.load %arg9[%c0_19, %c0_20, %c0_21] : memref<2x32x16xf32, #tpu.memory_space<vmem>>, vector<2x32x16xf32>
    %c0_22 = arith.constant 0 : index
    %c0_23 = arith.constant 0 : index
    %c0_24 = arith.constant 0 : index
    %30 = vector.load %arg10[%c0_22, %c0_23, %c0_24] : memref<2x1x16xf32, #tpu.memory_space<vmem>>, vector<2x1x16xf32>
    %c0_25 = arith.constant 0 : index
    %c0_26 = arith.constant 0 : index
    %c0_27 = arith.constant 0 : index
    %31 = vector.load %arg11[%c0_25, %c0_26, %c0_27] : memref<2x1x16xf32, #tpu.memory_space<vmem>>, vector<2x1x16xf32>
    %c0_28 = arith.constant 0 : index
    %c0_29 = arith.constant 0 : index
    %c0_30 = arith.constant 0 : index
    %32 = vector.load %arg12[%c0_28, %c0_29, %c0_30] : memref<2x1x16xf32, #tpu.memory_space<vmem>>, vector<2x1x16xf32>
    %c0_31 = arith.constant 0 : index
    %c0_32 = arith.constant 0 : index
    %c0_33 = arith.constant 0 : index
    %33 = vector.load %arg13[%c0_31, %c0_32, %c0_33] : memref<2x16x32xf32, #tpu.memory_space<vmem>>, vector<2x16x32xf32>
    %c0_34 = arith.constant 0 : index
    %c0_35 = arith.constant 0 : index
    %34 = vector.load %arg14[%c0_34, %c0_35] : memref<1x32xf32, #tpu.memory_space<vmem>>, vector<1x32xf32>
    %c0_36 = arith.constant 0 : index
    %c0_37 = arith.constant 0 : index
    %35 = vector.load %arg15[%c0_36, %c0_37] : memref<1x32xf32, #tpu.memory_space<vmem>>, vector<1x32xf32>
    %c0_38 = arith.constant 0 : index
    %c0_39 = arith.constant 0 : index
    %36 = vector.load %arg16[%c0_38, %c0_39] : memref<1x32xf32, #tpu.memory_space<vmem>>, vector<1x32xf32>
    %c0_40 = arith.constant 0 : index
    %c0_41 = arith.constant 0 : index
    %37 = vector.load %arg17[%c0_40, %c0_41] : memref<32x64xf32, #tpu.memory_space<vmem>>, vector<32x64xf32>
    %c0_42 = arith.constant 0 : index
    %c0_43 = arith.constant 0 : index
    %38 = vector.load %arg18[%c0_42, %c0_43] : memref<1x64xf32, #tpu.memory_space<vmem>>, vector<1x64xf32>
    %c0_44 = arith.constant 0 : index
    %c0_45 = arith.constant 0 : index
    %39 = vector.load %arg19[%c0_44, %c0_45] : memref<64x32xf32, #tpu.memory_space<vmem>>, vector<64x32xf32>
    %c0_46 = arith.constant 0 : index
    %c0_47 = arith.constant 0 : index
    %40 = vector.load %arg20[%c0_46, %c0_47] : memref<1x32xf32, #tpu.memory_space<vmem>>, vector<1x32xf32>
    %cst_48 = arith.constant dense<0.000000e+00> : vector<16xf32>
    %41 = vector.multi_reduction <add>, %18, %cst_48 [1] : vector<16x32xf32> to vector<16xf32>
    %42 = vector.shape_cast %41 : vector<16xf32> to vector<16x1xf32>
    %cst_49 = arith.constant 3.200000e+01 : f32
    %43 = vector.broadcast %cst_49 : f32 to vector<16x1xf32>
    %44 = arith.divf %42, %43 : vector<16x1xf32>
    %45 = vector.broadcast %44 : vector<16x1xf32> to vector<16x32xf32>
    %46 = arith.subf %18, %45 : vector<16x32xf32>
    %47 = arith.mulf %46, %46 : vector<16x32xf32>
    %cst_50 = arith.constant dense<0.000000e+00> : vector<16xf32>
    %48 = vector.multi_reduction <add>, %47, %cst_50 [1] : vector<16x32xf32> to vector<16xf32>
    %49 = vector.shape_cast %48 : vector<16xf32> to vector<16x1xf32>
    %cst_51 = arith.constant 3.200000e+01 : f32
    %50 = vector.broadcast %cst_51 : f32 to vector<16x1xf32>
    %51 = arith.divf %49, %50 : vector<16x1xf32>
    %52 = vector.broadcast %44 : vector<16x1xf32> to vector<16x32xf32>
    %53 = arith.subf %18, %52 : vector<16x32xf32>
    %cst_52 = arith.constant 9.99999974E-6 : f32
    %54 = vector.broadcast %cst_52 : f32 to vector<16x1xf32>
    %55 = arith.addf %51, %54 : vector<16x1xf32>
    %56 = math.rsqrt %55 : vector<16x1xf32>
    %57 = vector.broadcast %56 : vector<16x1xf32> to vector<16x32xf32>
    %58 = arith.mulf %53, %57 : vector<16x32xf32>
    %59 = vector.broadcast %25 : vector<1x32xf32> to vector<16x32xf32>
    %60 = arith.mulf %58, %59 : vector<16x32xf32>
    %61 = vector.broadcast %26 : vector<1x32xf32> to vector<16x32xf32>
    %62 = arith.addf %60, %61 : vector<16x32xf32>
    %63 = vector.extract_strided_slice %27 {offsets = [0, 0, 0], sizes = [1, 32, 16], strides = [1, 1, 1]} : vector<2x32x16xf32> to vector<1x32x16xf32>
    %64 = vector.shape_cast %63 : vector<1x32x16xf32> to vector<32x16xf32>
    %65 = arith.truncf %62 : vector<16x32xf32> to vector<16x32xbf16>
    %66 = arith.truncf %64 : vector<32x16xf32> to vector<32x16xbf16>
    %cst_53 = arith.constant dense<0.000000e+00> : vector<16x16xf32>
    %67 = tpu.matmul %65, %66, %cst_53 {dimension_numbers = #tpu.dot_dimension_numbers<[1], [0], [0], [1], [0, 0, 1, 1], [], []>} : vector<16x32xbf16>, vector<32x16xbf16>, vector<16x16xf32> -> vector<16x16xf32>
    %68 = vector.extract_strided_slice %30 {offsets = [0, 0, 0], sizes = [1, 1, 16], strides = [1, 1, 1]} : vector<2x1x16xf32> to vector<1x1x16xf32>
    %69 = vector.shape_cast %68 : vector<1x1x16xf32> to vector<1x16xf32>
    %70 = vector.broadcast %69 : vector<1x16xf32> to vector<16x16xf32>
    %71 = arith.addf %67, %70 : vector<16x16xf32>
    %72 = vector.shape_cast %71 : vector<16x16xf32> to vector<2x8x16xf32>
    %73 = vector.extract_strided_slice %28 {offsets = [0, 0, 0], sizes = [1, 32, 16], strides = [1, 1, 1]} : vector<2x32x16xf32> to vector<1x32x16xf32>
    %74 = vector.shape_cast %73 : vector<1x32x16xf32> to vector<32x16xf32>
    %75 = arith.truncf %62 : vector<16x32xf32> to vector<16x32xbf16>
    %76 = arith.truncf %74 : vector<32x16xf32> to vector<32x16xbf16>
    %cst_54 = arith.constant dense<0.000000e+00> : vector<16x16xf32>
    %77 = tpu.matmul %75, %76, %cst_54 {dimension_numbers = #tpu.dot_dimension_numbers<[1], [0], [0], [1], [0, 0, 1, 1], [], []>} : vector<16x32xbf16>, vector<32x16xbf16>, vector<16x16xf32> -> vector<16x16xf32>
    %78 = vector.extract_strided_slice %31 {offsets = [0, 0, 0], sizes = [1, 1, 16], strides = [1, 1, 1]} : vector<2x1x16xf32> to vector<1x1x16xf32>
    %79 = vector.shape_cast %78 : vector<1x1x16xf32> to vector<1x16xf32>
    %80 = vector.broadcast %79 : vector<1x16xf32> to vector<16x16xf32>
    %81 = arith.addf %77, %80 : vector<16x16xf32>
    %82 = vector.shape_cast %81 : vector<16x16xf32> to vector<2x8x16xf32>
    %83 = vector.extract_strided_slice %29 {offsets = [0, 0, 0], sizes = [1, 32, 16], strides = [1, 1, 1]} : vector<2x32x16xf32> to vector<1x32x16xf32>
    %84 = vector.shape_cast %83 : vector<1x32x16xf32> to vector<32x16xf32>
    %85 = arith.truncf %62 : vector<16x32xf32> to vector<16x32xbf16>
    %86 = arith.truncf %84 : vector<32x16xf32> to vector<32x16xbf16>
    %cst_55 = arith.constant dense<0.000000e+00> : vector<16x16xf32>
    %87 = tpu.matmul %85, %86, %cst_55 {dimension_numbers = #tpu.dot_dimension_numbers<[1], [0], [0], [1], [0, 0, 1, 1], [], []>} : vector<16x32xbf16>, vector<32x16xbf16>, vector<16x16xf32> -> vector<16x16xf32>
    %88 = vector.extract_strided_slice %32 {offsets = [0, 0, 0], sizes = [1, 1, 16], strides = [1, 1, 1]} : vector<2x1x16xf32> to vector<1x1x16xf32>
    %89 = vector.shape_cast %88 : vector<1x1x16xf32> to vector<1x16xf32>
    %90 = vector.broadcast %89 : vector<1x16xf32> to vector<16x16xf32>
    %91 = arith.addf %87, %90 : vector<16x16xf32>
    %92 = vector.shape_cast %91 : vector<16x16xf32> to vector<2x8x16xf32>
    %93 = arith.truncf %72 : vector<2x8x16xf32> to vector<2x8x16xbf16>
    %94 = arith.truncf %82 : vector<2x8x16xf32> to vector<2x8x16xbf16>
    %cst_56 = arith.constant dense<0.000000e+00> : vector<2x8x8xf32>
    %95 = tpu.matmul %93, %94, %cst_56 {dimension_numbers = #tpu.dot_dimension_numbers<[2], [2], [1], [1], [0, 0, 0, 1, 1, 1], [0], [0]>} : vector<2x8x16xbf16>, vector<2x8x16xbf16>, vector<2x8x8xf32> -> vector<2x8x8xf32>
    %cst_57 = arith.constant 2.500000e-01 : f32
    %96 = vector.broadcast %cst_57 : f32 to vector<2x8x8xf32>
    %97 = arith.mulf %95, %96 : vector<2x8x8xf32>
    %cst_58 = arith.constant -1.000000e+30 : f32
    %98 = vector.broadcast %cst_58 : f32 to vector<2x8x8xf32>
    %99 = arith.select %24, %97, %98 : vector<2x8x8xi1>, vector<2x8x8xf32>
    %cst_59 = arith.constant dense<0xFF800000> : vector<2x8xf32>
    %100 = vector.multi_reduction <maximumf>, %99, %cst_59 [2] : vector<2x8x8xf32> to vector<2x8xf32>
    %101 = vector.shape_cast %100 : vector<2x8xf32> to vector<2x8x1xf32>
    %102 = vector.broadcast %101 : vector<2x8x1xf32> to vector<2x8x8xf32>
    %103 = arith.subf %99, %102 : vector<2x8x8xf32>
    %104 = math.exp %103 : vector<2x8x8xf32>
    %cst_60 = arith.constant dense<0.000000e+00> : vector<2x8xf32>
    %105 = vector.multi_reduction <add>, %104, %cst_60 [2] : vector<2x8x8xf32> to vector<2x8xf32>
    %106 = vector.shape_cast %105 : vector<2x8xf32> to vector<2x8x1xf32>
    %107 = tpu.reciprocal %106 {approx = true} : vector<2x8x1xf32> -> vector<2x8x1xf32>
    %108 = vector.broadcast %107 : vector<2x8x1xf32> to vector<2x8x8xf32>
    %109 = arith.mulf %104, %108 : vector<2x8x8xf32>
    %110 = arith.truncf %109 : vector<2x8x8xf32> to vector<2x8x8xbf16>
    %111 = arith.truncf %92 : vector<2x8x16xf32> to vector<2x8x16xbf16>
    %cst_61 = arith.constant dense<0.000000e+00> : vector<2x8x16xf32>
    %112 = tpu.matmul %110, %111, %cst_61 {dimension_numbers = #tpu.dot_dimension_numbers<[2], [1], [1], [2], [0, 0, 0, 1, 1, 2], [0], [0]>} : vector<2x8x8xbf16>, vector<2x8x16xbf16>, vector<2x8x16xf32> -> vector<2x8x16xf32>
    %113 = vector.shape_cast %112 : vector<2x8x16xf32> to vector<16x16xf32>
    %114 = vector.extract_strided_slice %33 {offsets = [0, 0, 0], sizes = [1, 16, 32], strides = [1, 1, 1]} : vector<2x16x32xf32> to vector<1x16x32xf32>
    %115 = vector.shape_cast %114 : vector<1x16x32xf32> to vector<16x32xf32>
    %116 = arith.truncf %113 : vector<16x16xf32> to vector<16x16xbf16>
    %117 = arith.truncf %115 : vector<16x32xf32> to vector<16x32xbf16>
    %cst_62 = arith.constant dense<0.000000e+00> : vector<16x32xf32>
    %118 = tpu.matmul %116, %117, %cst_62 {dimension_numbers = #tpu.dot_dimension_numbers<[1], [0], [0], [1], [0, 0, 1, 1], [], []>} : vector<16x16xbf16>, vector<16x32xbf16>, vector<16x32xf32> -> vector<16x32xf32>
    %119 = vector.extract_strided_slice %27 {offsets = [1, 0, 0], sizes = [1, 32, 16], strides = [1, 1, 1]} : vector<2x32x16xf32> to vector<1x32x16xf32>
    %120 = vector.shape_cast %119 : vector<1x32x16xf32> to vector<32x16xf32>
    %121 = arith.truncf %62 : vector<16x32xf32> to vector<16x32xbf16>
    %122 = arith.truncf %120 : vector<32x16xf32> to vector<32x16xbf16>
    %cst_63 = arith.constant dense<0.000000e+00> : vector<16x16xf32>
    %123 = tpu.matmul %121, %122, %cst_63 {dimension_numbers = #tpu.dot_dimension_numbers<[1], [0], [0], [1], [0, 0, 1, 1], [], []>} : vector<16x32xbf16>, vector<32x16xbf16>, vector<16x16xf32> -> vector<16x16xf32>
    %124 = vector.extract_strided_slice %30 {offsets = [1, 0, 0], sizes = [1, 1, 16], strides = [1, 1, 1]} : vector<2x1x16xf32> to vector<1x1x16xf32>
    %125 = vector.shape_cast %124 : vector<1x1x16xf32> to vector<1x16xf32>
    %126 = vector.broadcast %125 : vector<1x16xf32> to vector<16x16xf32>
    %127 = arith.addf %123, %126 : vector<16x16xf32>
    %128 = vector.shape_cast %127 : vector<16x16xf32> to vector<2x8x16xf32>
    %129 = vector.extract_strided_slice %28 {offsets = [1, 0, 0], sizes = [1, 32, 16], strides = [1, 1, 1]} : vector<2x32x16xf32> to vector<1x32x16xf32>
    %130 = vector.shape_cast %129 : vector<1x32x16xf32> to vector<32x16xf32>
    %131 = arith.truncf %62 : vector<16x32xf32> to vector<16x32xbf16>
    %132 = arith.truncf %130 : vector<32x16xf32> to vector<32x16xbf16>
    %cst_64 = arith.constant dense<0.000000e+00> : vector<16x16xf32>
    %133 = tpu.matmul %131, %132, %cst_64 {dimension_numbers = #tpu.dot_dimension_numbers<[1], [0], [0], [1], [0, 0, 1, 1], [], []>} : vector<16x32xbf16>, vector<32x16xbf16>, vector<16x16xf32> -> vector<16x16xf32>
    %134 = vector.extract_strided_slice %31 {offsets = [1, 0, 0], sizes = [1, 1, 16], strides = [1, 1, 1]} : vector<2x1x16xf32> to vector<1x1x16xf32>
    %135 = vector.shape_cast %134 : vector<1x1x16xf32> to vector<1x16xf32>
    %136 = vector.broadcast %135 : vector<1x16xf32> to vector<16x16xf32>
    %137 = arith.addf %133, %136 : vector<16x16xf32>
    %138 = vector.shape_cast %137 : vector<16x16xf32> to vector<2x8x16xf32>
    %139 = vector.extract_strided_slice %29 {offsets = [1, 0, 0], sizes = [1, 32, 16], strides = [1, 1, 1]} : vector<2x32x16xf32> to vector<1x32x16xf32>
    %140 = vector.shape_cast %139 : vector<1x32x16xf32> to vector<32x16xf32>
    %141 = arith.truncf %62 : vector<16x32xf32> to vector<16x32xbf16>
    %142 = arith.truncf %140 : vector<32x16xf32> to vector<32x16xbf16>
    %cst_65 = arith.constant dense<0.000000e+00> : vector<16x16xf32>
    %143 = tpu.matmul %141, %142, %cst_65 {dimension_numbers = #tpu.dot_dimension_numbers<[1], [0], [0], [1], [0, 0, 1, 1], [], []>} : vector<16x32xbf16>, vector<32x16xbf16>, vector<16x16xf32> -> vector<16x16xf32>
    %144 = vector.extract_strided_slice %32 {offsets = [1, 0, 0], sizes = [1, 1, 16], strides = [1, 1, 1]} : vector<2x1x16xf32> to vector<1x1x16xf32>
    %145 = vector.shape_cast %144 : vector<1x1x16xf32> to vector<1x16xf32>
    %146 = vector.broadcast %145 : vector<1x16xf32> to vector<16x16xf32>
    %147 = arith.addf %143, %146 : vector<16x16xf32>
    %148 = vector.shape_cast %147 : vector<16x16xf32> to vector<2x8x16xf32>
    %149 = arith.truncf %128 : vector<2x8x16xf32> to vector<2x8x16xbf16>
    %150 = arith.truncf %138 : vector<2x8x16xf32> to vector<2x8x16xbf16>
    %cst_66 = arith.constant dense<0.000000e+00> : vector<2x8x8xf32>
    %151 = tpu.matmul %149, %150, %cst_66 {dimension_numbers = #tpu.dot_dimension_numbers<[2], [2], [1], [1], [0, 0, 0, 1, 1, 1], [0], [0]>} : vector<2x8x16xbf16>, vector<2x8x16xbf16>, vector<2x8x8xf32> -> vector<2x8x8xf32>
    %cst_67 = arith.constant 2.500000e-01 : f32
    %152 = vector.broadcast %cst_67 : f32 to vector<2x8x8xf32>
    %153 = arith.mulf %151, %152 : vector<2x8x8xf32>
    %cst_68 = arith.constant -1.000000e+30 : f32
    %154 = vector.broadcast %cst_68 : f32 to vector<2x8x8xf32>
    %155 = arith.select %24, %153, %154 : vector<2x8x8xi1>, vector<2x8x8xf32>
    %cst_69 = arith.constant dense<0xFF800000> : vector<2x8xf32>
    %156 = vector.multi_reduction <maximumf>, %155, %cst_69 [2] : vector<2x8x8xf32> to vector<2x8xf32>
    %157 = vector.shape_cast %156 : vector<2x8xf32> to vector<2x8x1xf32>
    %158 = vector.broadcast %157 : vector<2x8x1xf32> to vector<2x8x8xf32>
    %159 = arith.subf %155, %158 : vector<2x8x8xf32>
    %160 = math.exp %159 : vector<2x8x8xf32>
    %cst_70 = arith.constant dense<0.000000e+00> : vector<2x8xf32>
    %161 = vector.multi_reduction <add>, %160, %cst_70 [2] : vector<2x8x8xf32> to vector<2x8xf32>
    %162 = vector.shape_cast %161 : vector<2x8xf32> to vector<2x8x1xf32>
    %163 = tpu.reciprocal %162 {approx = true} : vector<2x8x1xf32> -> vector<2x8x1xf32>
    %164 = vector.broadcast %163 : vector<2x8x1xf32> to vector<2x8x8xf32>
    %165 = arith.mulf %160, %164 : vector<2x8x8xf32>
    %166 = arith.truncf %165 : vector<2x8x8xf32> to vector<2x8x8xbf16>
    %167 = arith.truncf %148 : vector<2x8x16xf32> to vector<2x8x16xbf16>
    %cst_71 = arith.constant dense<0.000000e+00> : vector<2x8x16xf32>
    %168 = tpu.matmul %166, %167, %cst_71 {dimension_numbers = #tpu.dot_dimension_numbers<[2], [1], [1], [2], [0, 0, 0, 1, 1, 2], [0], [0]>} : vector<2x8x8xbf16>, vector<2x8x16xbf16>, vector<2x8x16xf32> -> vector<2x8x16xf32>
    %169 = vector.shape_cast %168 : vector<2x8x16xf32> to vector<16x16xf32>
    %170 = vector.extract_strided_slice %33 {offsets = [1, 0, 0], sizes = [1, 16, 32], strides = [1, 1, 1]} : vector<2x16x32xf32> to vector<1x16x32xf32>
    %171 = vector.shape_cast %170 : vector<1x16x32xf32> to vector<16x32xf32>
    %172 = arith.truncf %169 : vector<16x16xf32> to vector<16x16xbf16>
    %173 = arith.truncf %171 : vector<16x32xf32> to vector<16x32xbf16>
    %cst_72 = arith.constant dense<0.000000e+00> : vector<16x32xf32>
    %174 = tpu.matmul %172, %173, %cst_72 {dimension_numbers = #tpu.dot_dimension_numbers<[1], [0], [0], [1], [0, 0, 1, 1], [], []>} : vector<16x16xbf16>, vector<16x32xbf16>, vector<16x32xf32> -> vector<16x32xf32>
    %175 = arith.addf %118, %174 : vector<16x32xf32>
    %176 = vector.broadcast %34 : vector<1x32xf32> to vector<16x32xf32>
    %177 = arith.addf %175, %176 : vector<16x32xf32>
    %178 = arith.addf %18, %177 : vector<16x32xf32>
    %cst_73 = arith.constant dense<0.000000e+00> : vector<16xf32>
    %179 = vector.multi_reduction <add>, %178, %cst_73 [1] : vector<16x32xf32> to vector<16xf32>
    %180 = vector.shape_cast %179 : vector<16xf32> to vector<16x1xf32>
    %cst_74 = arith.constant 3.200000e+01 : f32
    %181 = vector.broadcast %cst_74 : f32 to vector<16x1xf32>
    %182 = arith.divf %180, %181 : vector<16x1xf32>
    %183 = vector.broadcast %182 : vector<16x1xf32> to vector<16x32xf32>
    %184 = arith.subf %178, %183 : vector<16x32xf32>
    %185 = arith.mulf %184, %184 : vector<16x32xf32>
    %cst_75 = arith.constant dense<0.000000e+00> : vector<16xf32>
    %186 = vector.multi_reduction <add>, %185, %cst_75 [1] : vector<16x32xf32> to vector<16xf32>
    %187 = vector.shape_cast %186 : vector<16xf32> to vector<16x1xf32>
    %cst_76 = arith.constant 3.200000e+01 : f32
    %188 = vector.broadcast %cst_76 : f32 to vector<16x1xf32>
    %189 = arith.divf %187, %188 : vector<16x1xf32>
    %190 = vector.broadcast %182 : vector<16x1xf32> to vector<16x32xf32>
    %191 = arith.subf %178, %190 : vector<16x32xf32>
    %cst_77 = arith.constant 9.99999974E-6 : f32
    %192 = vector.broadcast %cst_77 : f32 to vector<16x1xf32>
    %193 = arith.addf %189, %192 : vector<16x1xf32>
    %194 = math.rsqrt %193 : vector<16x1xf32>
    %195 = vector.broadcast %194 : vector<16x1xf32> to vector<16x32xf32>
    %196 = arith.mulf %191, %195 : vector<16x32xf32>
    %197 = vector.broadcast %35 : vector<1x32xf32> to vector<16x32xf32>
    %198 = arith.mulf %196, %197 : vector<16x32xf32>
    %199 = vector.broadcast %36 : vector<1x32xf32> to vector<16x32xf32>
    %200 = arith.addf %198, %199 : vector<16x32xf32>
    %201 = arith.truncf %200 : vector<16x32xf32> to vector<16x32xbf16>
    %202 = arith.truncf %37 : vector<32x64xf32> to vector<32x64xbf16>
    %cst_78 = arith.constant dense<0.000000e+00> : vector<16x64xf32>
    %203 = tpu.matmul %201, %202, %cst_78 {dimension_numbers = #tpu.dot_dimension_numbers<[1], [0], [0], [1], [0, 0, 1, 1], [], []>} : vector<16x32xbf16>, vector<32x64xbf16>, vector<16x64xf32> -> vector<16x64xf32>
    %204 = vector.broadcast %38 : vector<1x64xf32> to vector<16x64xf32>
    %205 = arith.addf %203, %204 : vector<16x64xf32>
    %206 = arith.mulf %205, %205 : vector<16x64xf32>
    %207 = arith.mulf %205, %206 : vector<16x64xf32>
    %cst_79 = arith.constant 4.471500e-02 : f32
    %208 = vector.broadcast %cst_79 : f32 to vector<16x64xf32>
    %209 = arith.mulf %208, %207 : vector<16x64xf32>
    %210 = arith.addf %205, %209 : vector<16x64xf32>
    %cst_80 = arith.constant 0.797884583 : f32
    %211 = vector.broadcast %cst_80 : f32 to vector<16x64xf32>
    %212 = arith.mulf %211, %210 : vector<16x64xf32>
    %213 = math.tanh %212 : vector<16x64xf32>
    %cst_81 = arith.constant 1.000000e+00 : f32
    %214 = vector.broadcast %cst_81 : f32 to vector<16x64xf32>
    %215 = arith.addf %214, %213 : vector<16x64xf32>
    %cst_82 = arith.constant 5.000000e-01 : f32
    %216 = vector.broadcast %cst_82 : f32 to vector<16x64xf32>
    %217 = arith.mulf %216, %215 : vector<16x64xf32>
    %218 = arith.mulf %205, %217 : vector<16x64xf32>
    %219 = arith.truncf %218 : vector<16x64xf32> to vector<16x64xbf16>
    %220 = arith.truncf %39 : vector<64x32xf32> to vector<64x32xbf16>
    %cst_83 = arith.constant dense<0.000000e+00> : vector<16x32xf32>
    %221 = tpu.matmul %219, %220, %cst_83 {dimension_numbers = #tpu.dot_dimension_numbers<[1], [0], [0], [1], [0, 0, 1, 1], [], []>} : vector<16x64xbf16>, vector<64x32xbf16>, vector<16x32xf32> -> vector<16x32xf32>
    %222 = arith.addf %178, %221 : vector<16x32xf32>
    %223 = vector.broadcast %40 : vector<1x32xf32> to vector<16x32xf32>
    %224 = arith.addf %222, %223 : vector<16x32xf32>
    %c0_84 = arith.constant 0 : index
    %c0_85 = arith.constant 0 : index
    %225 = vector.load %arg21[%c0_84, %c0_85] : memref<1x32xf32, #tpu.memory_space<vmem>>, vector<1x32xf32>
    %c0_86 = arith.constant 0 : index
    %c0_87 = arith.constant 0 : index
    %226 = vector.load %arg22[%c0_86, %c0_87] : memref<1x32xf32, #tpu.memory_space<vmem>>, vector<1x32xf32>
    %cst_88 = arith.constant dense<0.000000e+00> : vector<16xf32>
    %227 = vector.multi_reduction <add>, %224, %cst_88 [1] : vector<16x32xf32> to vector<16xf32>
    %228 = vector.shape_cast %227 : vector<16xf32> to vector<16x1xf32>
    %cst_89 = arith.constant 3.200000e+01 : f32
    %229 = vector.broadcast %cst_89 : f32 to vector<16x1xf32>
    %230 = arith.divf %228, %229 : vector<16x1xf32>
    %231 = vector.broadcast %230 : vector<16x1xf32> to vector<16x32xf32>
    %232 = arith.subf %224, %231 : vector<16x32xf32>
    %233 = arith.mulf %232, %232 : vector<16x32xf32>
    %cst_90 = arith.constant dense<0.000000e+00> : vector<16xf32>
    %234 = vector.multi_reduction <add>, %233, %cst_90 [1] : vector<16x32xf32> to vector<16xf32>
    %235 = vector.shape_cast %234 : vector<16xf32> to vector<16x1xf32>
    %cst_91 = arith.constant 3.200000e+01 : f32
    %236 = vector.broadcast %cst_91 : f32 to vector<16x1xf32>
    %237 = arith.divf %235, %236 : vector<16x1xf32>
    %238 = vector.broadcast %230 : vector<16x1xf32> to vector<16x32xf32>
    %239 = arith.subf %224, %238 : vector<16x32xf32>
    %cst_92 = arith.constant 9.99999974E-6 : f32
    %240 = vector.broadcast %cst_92 : f32 to vector<16x1xf32>
    %241 = arith.addf %237, %240 : vector<16x1xf32>
    %242 = math.rsqrt %241 : vector<16x1xf32>
    %243 = vector.broadcast %242 : vector<16x1xf32> to vector<16x32xf32>
    %244 = arith.mulf %239, %243 : vector<16x32xf32>
    %245 = vector.broadcast %225 : vector<1x32xf32> to vector<16x32xf32>
    %246 = arith.mulf %244, %245 : vector<16x32xf32>
    %247 = vector.broadcast %226 : vector<1x32xf32> to vector<16x32xf32>
    %248 = arith.addf %246, %247 : vector<16x32xf32>
    %249 = tpu.iota {dimensions = array<i32: 0>} : vector<2x16xi32>
    %250 = tpu.iota {dimensions = array<i32: 1>} : vector<2x16xi32>
    %c8_i32 = arith.constant 8 : i32
    %251 = vector.broadcast %c8_i32 : i32 to vector<2x16xi32>
    %252 = arith.muli %249, %251 : vector<2x16xi32>
    %253 = arith.cmpi eq, %250, %252 : vector<2x16xi32>
    %254 = arith.extui %253 : vector<2x16xi1> to vector<2x16xi32>
    %255 = arith.sitofp %254 : vector<2x16xi32> to vector<2x16xf32>
    %cst_93 = arith.constant dense<0.000000e+00> : vector<2x32xf32>
    %256 = tpu.matmul %255, %248, %cst_93 {dimension_numbers = #tpu.dot_dimension_numbers<[1], [0], [0], [1], [0, 0, 1, 1], [], []>} : vector<2x16xf32>, vector<16x32xf32>, vector<2x32xf32> -> vector<2x32xf32>
    %c0_94 = arith.constant 0 : index
    %c0_95 = arith.constant 0 : index
    %257 = vector.load %arg23[%c0_94, %c0_95] : memref<32x32xf32, #tpu.memory_space<vmem>>, vector<32x32xf32>
    %258 = arith.truncf %256 : vector<2x32xf32> to vector<2x32xbf16>
    %259 = arith.truncf %257 : vector<32x32xf32> to vector<32x32xbf16>
    %cst_96 = arith.constant dense<0.000000e+00> : vector<2x32xf32>
    %260 = tpu.matmul %258, %259, %cst_96 {dimension_numbers = #tpu.dot_dimension_numbers<[1], [0], [0], [1], [0, 0, 1, 1], [], []>} : vector<2x32xbf16>, vector<32x32xbf16>, vector<2x32xf32> -> vector<2x32xf32>
    %c0_97 = arith.constant 0 : index
    %c0_98 = arith.constant 0 : index
    %261 = vector.load %arg24[%c0_97, %c0_98] : memref<1x32xf32, #tpu.memory_space<vmem>>, vector<1x32xf32>
    %262 = vector.broadcast %261 : vector<1x32xf32> to vector<2x32xf32>
    %263 = arith.addf %260, %262 : vector<2x32xf32>
    %264 = arith.truncf %263 : vector<2x32xf32> to vector<2x32xbf16>
    %265 = arith.extf %264 : vector<2x32xbf16> to vector<2x32xf32>
    %c0_99 = arith.constant 0 : index
    %c0_100 = arith.constant 0 : index
    %266 = vector.load %arg26[%c0_99, %c0_100] : memref<32x1xi32, #tpu.memory_space<vmem>>, vector<32x1xi32>
    %267 = tpu.iota {dimensions = array<i32: 1>} : vector<32x64xi32>
    %268 = vector.broadcast %266 : vector<32x1xi32> to vector<32x64xi32>
    %269 = arith.cmpi eq, %268, %267 : vector<32x64xi32>
    %270 = arith.extui %269 : vector<32x64xi1> to vector<32x64xi32>
    %271 = arith.sitofp %270 : vector<32x64xi32> to vector<32x64xf32>
    %c0_101 = arith.constant 0 : index
    %c0_102 = arith.constant 0 : index
    %272 = vector.load %arg25[%c0_101, %c0_102] : memref<64x32xf32, #tpu.memory_space<vmem>>, vector<64x32xf32>
    %cst_103 = arith.constant dense<0.000000e+00> : vector<32x32xf32>
    %273 = tpu.matmul %271, %272, %cst_103 {dimension_numbers = #tpu.dot_dimension_numbers<[1], [0], [0], [1], [0, 0, 1, 1], [], []>} : vector<32x64xf32>, vector<64x32xf32>, vector<32x32xf32> -> vector<32x32xf32>
    %274 = tpu.iota {dimensions = array<i32: 0>} : vector<32x2xi32>
    %275 = tpu.iota {dimensions = array<i32: 1>} : vector<32x2xi32>
    %c16_i32 = arith.constant 16 : i32
    %276 = vector.broadcast %c16_i32 : i32 to vector<32x2xi32>
    %277 = arith.muli %275, %276 : vector<32x2xi32>
    %278 = arith.cmpi eq, %274, %277 : vector<32x2xi32>
    %279 = arith.extui %278 : vector<32x2xi1> to vector<32x2xi32>
    %280 = arith.sitofp %279 : vector<32x2xi32> to vector<32x2xf32>
    %cst_104 = arith.constant dense<0.000000e+00> : vector<32x32xf32>
    %281 = tpu.matmul %280, %265, %cst_104 {dimension_numbers = #tpu.dot_dimension_numbers<[1], [0], [0], [1], [0, 0, 1, 1], [], []>} : vector<32x2xf32>, vector<2x32xf32>, vector<32x32xf32> -> vector<32x32xf32>
    %282 = tpu.iota {dimensions = array<i32: 0>} : vector<32x32xi32>
    %c15_i32 = arith.constant 15 : i32
    %283 = vector.broadcast %c15_i32 : i32 to vector<32x32xi32>
    %284 = arith.andi %282, %283 : vector<32x32xi32>
    %c0_i32_105 = arith.constant 0 : i32
    %285 = vector.broadcast %c0_i32_105 : i32 to vector<32x32xi32>
    %286 = arith.cmpi eq, %284, %285 : vector<32x32xi32>
    %287 = arith.select %286, %281, %273 : vector<32x32xi1>, vector<32x32xf32>
    %288 = tpu.iota {dimensions = array<i32: 0>} : vector<16x16xi32>
    %289 = tpu.iota {dimensions = array<i32: 1>} : vector<16x16xi32>
    %290 = arith.cmpi sle, %289, %288 : vector<16x16xi32>
    %291 = vector.shape_cast %290 : vector<16x16xi1> to vector<1x16x16xi1>
    %c0_106 = arith.constant 0 : index
    %c0_107 = arith.constant 0 : index
    %c0_108 = arith.constant 0 : index
    %292 = vector.load %arg27[%c0_106, %c0_107, %c0_108] : memref<2x1x16xf32, #tpu.memory_space<vmem>>, vector<2x1x16xf32>
    %cst_109 = arith.constant 5.000000e-01 : f32
    %293 = vector.broadcast %cst_109 : f32 to vector<2x1x16xf32>
    %294 = arith.cmpf ogt, %292, %293 : vector<2x1x16xf32>
    %295 = vector.broadcast %291 : vector<1x16x16xi1> to vector<2x16x16xi1>
    %296 = vector.broadcast %294 : vector<2x1x16xi1> to vector<2x16x16xi1>
    %297 = arith.andi %295, %296 : vector<2x16x16xi1>
    %c0_110 = arith.constant 0 : index
    %c0_111 = arith.constant 0 : index
    %298 = vector.load %arg29[%c0_110, %c0_111] : memref<1x32xf32, #tpu.memory_space<vmem>>, vector<1x32xf32>
    %c0_112 = arith.constant 0 : index
    %c0_113 = arith.constant 0 : index
    %299 = vector.load %arg30[%c0_112, %c0_113] : memref<1x32xf32, #tpu.memory_space<vmem>>, vector<1x32xf32>
    %c0_114 = arith.constant 0 : index
    %c0_115 = arith.constant 0 : index
    %c0_116 = arith.constant 0 : index
    %300 = vector.load %arg31[%c0_114, %c0_115, %c0_116] : memref<2x32x16xf32, #tpu.memory_space<vmem>>, vector<2x32x16xf32>
    %c0_117 = arith.constant 0 : index
    %c0_118 = arith.constant 0 : index
    %c0_119 = arith.constant 0 : index
    %301 = vector.load %arg32[%c0_117, %c0_118, %c0_119] : memref<2x32x16xf32, #tpu.memory_space<vmem>>, vector<2x32x16xf32>
    %c0_120 = arith.constant 0 : index
    %c0_121 = arith.constant 0 : index
    %c0_122 = arith.constant 0 : index
    %302 = vector.load %arg33[%c0_120, %c0_121, %c0_122] : memref<2x32x16xf32, #tpu.memory_space<vmem>>, vector<2x32x16xf32>
    %c0_123 = arith.constant 0 : index
    %c0_124 = arith.constant 0 : index
    %c0_125 = arith.constant 0 : index
    %303 = vector.load %arg34[%c0_123, %c0_124, %c0_125] : memref<2x1x16xf32, #tpu.memory_space<vmem>>, vector<2x1x16xf32>
    %c0_126 = arith.constant 0 : index
    %c0_127 = arith.constant 0 : index
    %c0_128 = arith.constant 0 : index
    %304 = vector.load %arg35[%c0_126, %c0_127, %c0_128] : memref<2x1x16xf32, #tpu.memory_space<vmem>>, vector<2x1x16xf32>
    %c0_129 = arith.constant 0 : index
    %c0_130 = arith.constant 0 : index
    %c0_131 = arith.constant 0 : index
    %305 = vector.load %arg36[%c0_129, %c0_130, %c0_131] : memref<2x1x16xf32, #tpu.memory_space<vmem>>, vector<2x1x16xf32>
    %c0_132 = arith.constant 0 : index
    %c0_133 = arith.constant 0 : index
    %c0_134 = arith.constant 0 : index
    %306 = vector.load %arg37[%c0_132, %c0_133, %c0_134] : memref<2x16x32xf32, #tpu.memory_space<vmem>>, vector<2x16x32xf32>
    %c0_135 = arith.constant 0 : index
    %c0_136 = arith.constant 0 : index
    %307 = vector.load %arg38[%c0_135, %c0_136] : memref<1x32xf32, #tpu.memory_space<vmem>>, vector<1x32xf32>
    %c0_137 = arith.constant 0 : index
    %c0_138 = arith.constant 0 : index
    %308 = vector.load %arg39[%c0_137, %c0_138] : memref<1x32xf32, #tpu.memory_space<vmem>>, vector<1x32xf32>
    %c0_139 = arith.constant 0 : index
    %c0_140 = arith.constant 0 : index
    %309 = vector.load %arg40[%c0_139, %c0_140] : memref<1x32xf32, #tpu.memory_space<vmem>>, vector<1x32xf32>
    %c0_141 = arith.constant 0 : index
    %c0_142 = arith.constant 0 : index
    %310 = vector.load %arg41[%c0_141, %c0_142] : memref<32x64xf32, #tpu.memory_space<vmem>>, vector<32x64xf32>
    %c0_143 = arith.constant 0 : index
    %c0_144 = arith.constant 0 : index
    %311 = vector.load %arg42[%c0_143, %c0_144] : memref<1x64xf32, #tpu.memory_space<vmem>>, vector<1x64xf32>
    %c0_145 = arith.constant 0 : index
    %c0_146 = arith.constant 0 : index
    %312 = vector.load %arg43[%c0_145, %c0_146] : memref<64x32xf32, #tpu.memory_space<vmem>>, vector<64x32xf32>
    %c0_147 = arith.constant 0 : index
    %c0_148 = arith.constant 0 : index
    %313 = vector.load %arg44[%c0_147, %c0_148] : memref<1x32xf32, #tpu.memory_space<vmem>>, vector<1x32xf32>
    %cst_149 = arith.constant dense<0.000000e+00> : vector<32xf32>
    %314 = vector.multi_reduction <add>, %287, %cst_149 [1] : vector<32x32xf32> to vector<32xf32>
    %315 = vector.shape_cast %314 : vector<32xf32> to vector<32x1xf32>
    %cst_150 = arith.constant 3.200000e+01 : f32
    %316 = vector.broadcast %cst_150 : f32 to vector<32x1xf32>
    %317 = arith.divf %315, %316 : vector<32x1xf32>
    %318 = vector.broadcast %317 : vector<32x1xf32> to vector<32x32xf32>
    %319 = arith.subf %287, %318 : vector<32x32xf32>
    %320 = arith.mulf %319, %319 : vector<32x32xf32>
    %cst_151 = arith.constant dense<0.000000e+00> : vector<32xf32>
    %321 = vector.multi_reduction <add>, %320, %cst_151 [1] : vector<32x32xf32> to vector<32xf32>
    %322 = vector.shape_cast %321 : vector<32xf32> to vector<32x1xf32>
    %cst_152 = arith.constant 3.200000e+01 : f32
    %323 = vector.broadcast %cst_152 : f32 to vector<32x1xf32>
    %324 = arith.divf %322, %323 : vector<32x1xf32>
    %325 = vector.broadcast %317 : vector<32x1xf32> to vector<32x32xf32>
    %326 = arith.subf %287, %325 : vector<32x32xf32>
    %cst_153 = arith.constant 9.99999974E-6 : f32
    %327 = vector.broadcast %cst_153 : f32 to vector<32x1xf32>
    %328 = arith.addf %324, %327 : vector<32x1xf32>
    %329 = math.rsqrt %328 : vector<32x1xf32>
    %330 = vector.broadcast %329 : vector<32x1xf32> to vector<32x32xf32>
    %331 = arith.mulf %326, %330 : vector<32x32xf32>
    %332 = vector.broadcast %298 : vector<1x32xf32> to vector<32x32xf32>
    %333 = arith.mulf %331, %332 : vector<32x32xf32>
    %334 = vector.broadcast %299 : vector<1x32xf32> to vector<32x32xf32>
    %335 = arith.addf %333, %334 : vector<32x32xf32>
    %336 = vector.extract_strided_slice %300 {offsets = [0, 0, 0], sizes = [1, 32, 16], strides = [1, 1, 1]} : vector<2x32x16xf32> to vector<1x32x16xf32>
    %337 = vector.shape_cast %336 : vector<1x32x16xf32> to vector<32x16xf32>
    %338 = arith.truncf %335 : vector<32x32xf32> to vector<32x32xbf16>
    %339 = arith.truncf %337 : vector<32x16xf32> to vector<32x16xbf16>
    %cst_154 = arith.constant dense<0.000000e+00> : vector<32x16xf32>
    %340 = tpu.matmul %338, %339, %cst_154 {dimension_numbers = #tpu.dot_dimension_numbers<[1], [0], [0], [1], [0, 0, 1, 1], [], []>} : vector<32x32xbf16>, vector<32x16xbf16>, vector<32x16xf32> -> vector<32x16xf32>
    %341 = vector.extract_strided_slice %303 {offsets = [0, 0, 0], sizes = [1, 1, 16], strides = [1, 1, 1]} : vector<2x1x16xf32> to vector<1x1x16xf32>
    %342 = vector.shape_cast %341 : vector<1x1x16xf32> to vector<1x16xf32>
    %343 = vector.broadcast %342 : vector<1x16xf32> to vector<32x16xf32>
    %344 = arith.addf %340, %343 : vector<32x16xf32>
    %345 = vector.shape_cast %344 : vector<32x16xf32> to vector<2x16x16xf32>
    %346 = vector.extract_strided_slice %301 {offsets = [0, 0, 0], sizes = [1, 32, 16], strides = [1, 1, 1]} : vector<2x32x16xf32> to vector<1x32x16xf32>
    %347 = vector.shape_cast %346 : vector<1x32x16xf32> to vector<32x16xf32>
    %348 = arith.truncf %335 : vector<32x32xf32> to vector<32x32xbf16>
    %349 = arith.truncf %347 : vector<32x16xf32> to vector<32x16xbf16>
    %cst_155 = arith.constant dense<0.000000e+00> : vector<32x16xf32>
    %350 = tpu.matmul %348, %349, %cst_155 {dimension_numbers = #tpu.dot_dimension_numbers<[1], [0], [0], [1], [0, 0, 1, 1], [], []>} : vector<32x32xbf16>, vector<32x16xbf16>, vector<32x16xf32> -> vector<32x16xf32>
    %351 = vector.extract_strided_slice %304 {offsets = [0, 0, 0], sizes = [1, 1, 16], strides = [1, 1, 1]} : vector<2x1x16xf32> to vector<1x1x16xf32>
    %352 = vector.shape_cast %351 : vector<1x1x16xf32> to vector<1x16xf32>
    %353 = vector.broadcast %352 : vector<1x16xf32> to vector<32x16xf32>
    %354 = arith.addf %350, %353 : vector<32x16xf32>
    %355 = vector.shape_cast %354 : vector<32x16xf32> to vector<2x16x16xf32>
    %356 = vector.extract_strided_slice %302 {offsets = [0, 0, 0], sizes = [1, 32, 16], strides = [1, 1, 1]} : vector<2x32x16xf32> to vector<1x32x16xf32>
    %357 = vector.shape_cast %356 : vector<1x32x16xf32> to vector<32x16xf32>
    %358 = arith.truncf %335 : vector<32x32xf32> to vector<32x32xbf16>
    %359 = arith.truncf %357 : vector<32x16xf32> to vector<32x16xbf16>
    %cst_156 = arith.constant dense<0.000000e+00> : vector<32x16xf32>
    %360 = tpu.matmul %358, %359, %cst_156 {dimension_numbers = #tpu.dot_dimension_numbers<[1], [0], [0], [1], [0, 0, 1, 1], [], []>} : vector<32x32xbf16>, vector<32x16xbf16>, vector<32x16xf32> -> vector<32x16xf32>
    %361 = vector.extract_strided_slice %305 {offsets = [0, 0, 0], sizes = [1, 1, 16], strides = [1, 1, 1]} : vector<2x1x16xf32> to vector<1x1x16xf32>
    %362 = vector.shape_cast %361 : vector<1x1x16xf32> to vector<1x16xf32>
    %363 = vector.broadcast %362 : vector<1x16xf32> to vector<32x16xf32>
    %364 = arith.addf %360, %363 : vector<32x16xf32>
    %365 = vector.shape_cast %364 : vector<32x16xf32> to vector<2x16x16xf32>
    %366 = arith.truncf %345 : vector<2x16x16xf32> to vector<2x16x16xbf16>
    %367 = arith.truncf %355 : vector<2x16x16xf32> to vector<2x16x16xbf16>
    %cst_157 = arith.constant dense<0.000000e+00> : vector<2x16x16xf32>
    %368 = tpu.matmul %366, %367, %cst_157 {dimension_numbers = #tpu.dot_dimension_numbers<[2], [2], [1], [1], [0, 0, 0, 1, 1, 1], [0], [0]>} : vector<2x16x16xbf16>, vector<2x16x16xbf16>, vector<2x16x16xf32> -> vector<2x16x16xf32>
    %cst_158 = arith.constant 2.500000e-01 : f32
    %369 = vector.broadcast %cst_158 : f32 to vector<2x16x16xf32>
    %370 = arith.mulf %368, %369 : vector<2x16x16xf32>
    %cst_159 = arith.constant -1.000000e+30 : f32
    %371 = vector.broadcast %cst_159 : f32 to vector<2x16x16xf32>
    %372 = arith.select %297, %370, %371 : vector<2x16x16xi1>, vector<2x16x16xf32>
    %cst_160 = arith.constant dense<0xFF800000> : vector<2x16xf32>
    %373 = vector.multi_reduction <maximumf>, %372, %cst_160 [2] : vector<2x16x16xf32> to vector<2x16xf32>
    %374 = vector.shape_cast %373 : vector<2x16xf32> to vector<2x16x1xf32>
    %375 = vector.broadcast %374 : vector<2x16x1xf32> to vector<2x16x16xf32>
    %376 = arith.subf %372, %375 : vector<2x16x16xf32>
    %377 = math.exp %376 : vector<2x16x16xf32>
    %cst_161 = arith.constant dense<0.000000e+00> : vector<2x16xf32>
    %378 = vector.multi_reduction <add>, %377, %cst_161 [2] : vector<2x16x16xf32> to vector<2x16xf32>
    %379 = vector.shape_cast %378 : vector<2x16xf32> to vector<2x16x1xf32>
    %380 = tpu.reciprocal %379 {approx = true} : vector<2x16x1xf32> -> vector<2x16x1xf32>
    %381 = vector.broadcast %380 : vector<2x16x1xf32> to vector<2x16x16xf32>
    %382 = arith.mulf %377, %381 : vector<2x16x16xf32>
    %383 = arith.truncf %382 : vector<2x16x16xf32> to vector<2x16x16xbf16>
    %384 = arith.truncf %365 : vector<2x16x16xf32> to vector<2x16x16xbf16>
    %cst_162 = arith.constant dense<0.000000e+00> : vector<2x16x16xf32>
    %385 = tpu.matmul %383, %384, %cst_162 {dimension_numbers = #tpu.dot_dimension_numbers<[2], [1], [1], [2], [0, 0, 0, 1, 1, 2], [0], [0]>} : vector<2x16x16xbf16>, vector<2x16x16xbf16>, vector<2x16x16xf32> -> vector<2x16x16xf32>
    %386 = vector.shape_cast %385 : vector<2x16x16xf32> to vector<32x16xf32>
    %387 = vector.extract_strided_slice %306 {offsets = [0, 0, 0], sizes = [1, 16, 32], strides = [1, 1, 1]} : vector<2x16x32xf32> to vector<1x16x32xf32>
    %388 = vector.shape_cast %387 : vector<1x16x32xf32> to vector<16x32xf32>
    %389 = arith.truncf %386 : vector<32x16xf32> to vector<32x16xbf16>
    %390 = arith.truncf %388 : vector<16x32xf32> to vector<16x32xbf16>
    %cst_163 = arith.constant dense<0.000000e+00> : vector<32x32xf32>
    %391 = tpu.matmul %389, %390, %cst_163 {dimension_numbers = #tpu.dot_dimension_numbers<[1], [0], [0], [1], [0, 0, 1, 1], [], []>} : vector<32x16xbf16>, vector<16x32xbf16>, vector<32x32xf32> -> vector<32x32xf32>
    %392 = vector.extract_strided_slice %300 {offsets = [1, 0, 0], sizes = [1, 32, 16], strides = [1, 1, 1]} : vector<2x32x16xf32> to vector<1x32x16xf32>
    %393 = vector.shape_cast %392 : vector<1x32x16xf32> to vector<32x16xf32>
    %394 = arith.truncf %335 : vector<32x32xf32> to vector<32x32xbf16>
    %395 = arith.truncf %393 : vector<32x16xf32> to vector<32x16xbf16>
    %cst_164 = arith.constant dense<0.000000e+00> : vector<32x16xf32>
    %396 = tpu.matmul %394, %395, %cst_164 {dimension_numbers = #tpu.dot_dimension_numbers<[1], [0], [0], [1], [0, 0, 1, 1], [], []>} : vector<32x32xbf16>, vector<32x16xbf16>, vector<32x16xf32> -> vector<32x16xf32>
    %397 = vector.extract_strided_slice %303 {offsets = [1, 0, 0], sizes = [1, 1, 16], strides = [1, 1, 1]} : vector<2x1x16xf32> to vector<1x1x16xf32>
    %398 = vector.shape_cast %397 : vector<1x1x16xf32> to vector<1x16xf32>
    %399 = vector.broadcast %398 : vector<1x16xf32> to vector<32x16xf32>
    %400 = arith.addf %396, %399 : vector<32x16xf32>
    %401 = vector.shape_cast %400 : vector<32x16xf32> to vector<2x16x16xf32>
    %402 = vector.extract_strided_slice %301 {offsets = [1, 0, 0], sizes = [1, 32, 16], strides = [1, 1, 1]} : vector<2x32x16xf32> to vector<1x32x16xf32>
    %403 = vector.shape_cast %402 : vector<1x32x16xf32> to vector<32x16xf32>
    %404 = arith.truncf %335 : vector<32x32xf32> to vector<32x32xbf16>
    %405 = arith.truncf %403 : vector<32x16xf32> to vector<32x16xbf16>
    %cst_165 = arith.constant dense<0.000000e+00> : vector<32x16xf32>
    %406 = tpu.matmul %404, %405, %cst_165 {dimension_numbers = #tpu.dot_dimension_numbers<[1], [0], [0], [1], [0, 0, 1, 1], [], []>} : vector<32x32xbf16>, vector<32x16xbf16>, vector<32x16xf32> -> vector<32x16xf32>
    %407 = vector.extract_strided_slice %304 {offsets = [1, 0, 0], sizes = [1, 1, 16], strides = [1, 1, 1]} : vector<2x1x16xf32> to vector<1x1x16xf32>
    %408 = vector.shape_cast %407 : vector<1x1x16xf32> to vector<1x16xf32>
    %409 = vector.broadcast %408 : vector<1x16xf32> to vector<32x16xf32>
    %410 = arith.addf %406, %409 : vector<32x16xf32>
    %411 = vector.shape_cast %410 : vector<32x16xf32> to vector<2x16x16xf32>
    %412 = vector.extract_strided_slice %302 {offsets = [1, 0, 0], sizes = [1, 32, 16], strides = [1, 1, 1]} : vector<2x32x16xf32> to vector<1x32x16xf32>
    %413 = vector.shape_cast %412 : vector<1x32x16xf32> to vector<32x16xf32>
    %414 = arith.truncf %335 : vector<32x32xf32> to vector<32x32xbf16>
    %415 = arith.truncf %413 : vector<32x16xf32> to vector<32x16xbf16>
    %cst_166 = arith.constant dense<0.000000e+00> : vector<32x16xf32>
    %416 = tpu.matmul %414, %415, %cst_166 {dimension_numbers = #tpu.dot_dimension_numbers<[1], [0], [0], [1], [0, 0, 1, 1], [], []>} : vector<32x32xbf16>, vector<32x16xbf16>, vector<32x16xf32> -> vector<32x16xf32>
    %417 = vector.extract_strided_slice %305 {offsets = [1, 0, 0], sizes = [1, 1, 16], strides = [1, 1, 1]} : vector<2x1x16xf32> to vector<1x1x16xf32>
    %418 = vector.shape_cast %417 : vector<1x1x16xf32> to vector<1x16xf32>
    %419 = vector.broadcast %418 : vector<1x16xf32> to vector<32x16xf32>
    %420 = arith.addf %416, %419 : vector<32x16xf32>
    %421 = vector.shape_cast %420 : vector<32x16xf32> to vector<2x16x16xf32>
    %422 = arith.truncf %401 : vector<2x16x16xf32> to vector<2x16x16xbf16>
    %423 = arith.truncf %411 : vector<2x16x16xf32> to vector<2x16x16xbf16>
    %cst_167 = arith.constant dense<0.000000e+00> : vector<2x16x16xf32>
    %424 = tpu.matmul %422, %423, %cst_167 {dimension_numbers = #tpu.dot_dimension_numbers<[2], [2], [1], [1], [0, 0, 0, 1, 1, 1], [0], [0]>} : vector<2x16x16xbf16>, vector<2x16x16xbf16>, vector<2x16x16xf32> -> vector<2x16x16xf32>
    %cst_168 = arith.constant 2.500000e-01 : f32
    %425 = vector.broadcast %cst_168 : f32 to vector<2x16x16xf32>
    %426 = arith.mulf %424, %425 : vector<2x16x16xf32>
    %cst_169 = arith.constant -1.000000e+30 : f32
    %427 = vector.broadcast %cst_169 : f32 to vector<2x16x16xf32>
    %428 = arith.select %297, %426, %427 : vector<2x16x16xi1>, vector<2x16x16xf32>
    %cst_170 = arith.constant dense<0xFF800000> : vector<2x16xf32>
    %429 = vector.multi_reduction <maximumf>, %428, %cst_170 [2] : vector<2x16x16xf32> to vector<2x16xf32>
    %430 = vector.shape_cast %429 : vector<2x16xf32> to vector<2x16x1xf32>
    %431 = vector.broadcast %430 : vector<2x16x1xf32> to vector<2x16x16xf32>
    %432 = arith.subf %428, %431 : vector<2x16x16xf32>
    %433 = math.exp %432 : vector<2x16x16xf32>
    %cst_171 = arith.constant dense<0.000000e+00> : vector<2x16xf32>
    %434 = vector.multi_reduction <add>, %433, %cst_171 [2] : vector<2x16x16xf32> to vector<2x16xf32>
    %435 = vector.shape_cast %434 : vector<2x16xf32> to vector<2x16x1xf32>
    %436 = tpu.reciprocal %435 {approx = true} : vector<2x16x1xf32> -> vector<2x16x1xf32>
    %437 = vector.broadcast %436 : vector<2x16x1xf32> to vector<2x16x16xf32>
    %438 = arith.mulf %433, %437 : vector<2x16x16xf32>
    %439 = arith.truncf %438 : vector<2x16x16xf32> to vector<2x16x16xbf16>
    %440 = arith.truncf %421 : vector<2x16x16xf32> to vector<2x16x16xbf16>
    %cst_172 = arith.constant dense<0.000000e+00> : vector<2x16x16xf32>
    %441 = tpu.matmul %439, %440, %cst_172 {dimension_numbers = #tpu.dot_dimension_numbers<[2], [1], [1], [2], [0, 0, 0, 1, 1, 2], [0], [0]>} : vector<2x16x16xbf16>, vector<2x16x16xbf16>, vector<2x16x16xf32> -> vector<2x16x16xf32>
    %442 = vector.shape_cast %441 : vector<2x16x16xf32> to vector<32x16xf32>
    %443 = vector.extract_strided_slice %306 {offsets = [1, 0, 0], sizes = [1, 16, 32], strides = [1, 1, 1]} : vector<2x16x32xf32> to vector<1x16x32xf32>
    %444 = vector.shape_cast %443 : vector<1x16x32xf32> to vector<16x32xf32>
    %445 = arith.truncf %442 : vector<32x16xf32> to vector<32x16xbf16>
    %446 = arith.truncf %444 : vector<16x32xf32> to vector<16x32xbf16>
    %cst_173 = arith.constant dense<0.000000e+00> : vector<32x32xf32>
    %447 = tpu.matmul %445, %446, %cst_173 {dimension_numbers = #tpu.dot_dimension_numbers<[1], [0], [0], [1], [0, 0, 1, 1], [], []>} : vector<32x16xbf16>, vector<16x32xbf16>, vector<32x32xf32> -> vector<32x32xf32>
    %448 = arith.addf %391, %447 : vector<32x32xf32>
    %449 = vector.broadcast %307 : vector<1x32xf32> to vector<32x32xf32>
    %450 = arith.addf %448, %449 : vector<32x32xf32>
    %451 = arith.addf %287, %450 : vector<32x32xf32>
    %cst_174 = arith.constant dense<0.000000e+00> : vector<32xf32>
    %452 = vector.multi_reduction <add>, %451, %cst_174 [1] : vector<32x32xf32> to vector<32xf32>
    %453 = vector.shape_cast %452 : vector<32xf32> to vector<32x1xf32>
    %cst_175 = arith.constant 3.200000e+01 : f32
    %454 = vector.broadcast %cst_175 : f32 to vector<32x1xf32>
    %455 = arith.divf %453, %454 : vector<32x1xf32>
    %456 = vector.broadcast %455 : vector<32x1xf32> to vector<32x32xf32>
    %457 = arith.subf %451, %456 : vector<32x32xf32>
    %458 = arith.mulf %457, %457 : vector<32x32xf32>
    %cst_176 = arith.constant dense<0.000000e+00> : vector<32xf32>
    %459 = vector.multi_reduction <add>, %458, %cst_176 [1] : vector<32x32xf32> to vector<32xf32>
    %460 = vector.shape_cast %459 : vector<32xf32> to vector<32x1xf32>
    %cst_177 = arith.constant 3.200000e+01 : f32
    %461 = vector.broadcast %cst_177 : f32 to vector<32x1xf32>
    %462 = arith.divf %460, %461 : vector<32x1xf32>
    %463 = vector.broadcast %455 : vector<32x1xf32> to vector<32x32xf32>
    %464 = arith.subf %451, %463 : vector<32x32xf32>
    %cst_178 = arith.constant 9.99999974E-6 : f32
    %465 = vector.broadcast %cst_178 : f32 to vector<32x1xf32>
    %466 = arith.addf %462, %465 : vector<32x1xf32>
    %467 = math.rsqrt %466 : vector<32x1xf32>
    %468 = vector.broadcast %467 : vector<32x1xf32> to vector<32x32xf32>
    %469 = arith.mulf %464, %468 : vector<32x32xf32>
    %470 = vector.broadcast %308 : vector<1x32xf32> to vector<32x32xf32>
    %471 = arith.mulf %469, %470 : vector<32x32xf32>
    %472 = vector.broadcast %309 : vector<1x32xf32> to vector<32x32xf32>
    %473 = arith.addf %471, %472 : vector<32x32xf32>
    %474 = arith.truncf %473 : vector<32x32xf32> to vector<32x32xbf16>
    %475 = arith.truncf %310 : vector<32x64xf32> to vector<32x64xbf16>
    %cst_179 = arith.constant dense<0.000000e+00> : vector<32x64xf32>
    %476 = tpu.matmul %474, %475, %cst_179 {dimension_numbers = #tpu.dot_dimension_numbers<[1], [0], [0], [1], [0, 0, 1, 1], [], []>} : vector<32x32xbf16>, vector<32x64xbf16>, vector<32x64xf32> -> vector<32x64xf32>
    %477 = vector.broadcast %311 : vector<1x64xf32> to vector<32x64xf32>
    %478 = arith.addf %476, %477 : vector<32x64xf32>
    %479 = arith.mulf %478, %478 : vector<32x64xf32>
    %480 = arith.mulf %478, %479 : vector<32x64xf32>
    %cst_180 = arith.constant 4.471500e-02 : f32
    %481 = vector.broadcast %cst_180 : f32 to vector<32x64xf32>
    %482 = arith.mulf %481, %480 : vector<32x64xf32>
    %483 = arith.addf %478, %482 : vector<32x64xf32>
    %cst_181 = arith.constant 0.797884583 : f32
    %484 = vector.broadcast %cst_181 : f32 to vector<32x64xf32>
    %485 = arith.mulf %484, %483 : vector<32x64xf32>
    %486 = math.tanh %485 : vector<32x64xf32>
    %cst_182 = arith.constant 1.000000e+00 : f32
    %487 = vector.broadcast %cst_182 : f32 to vector<32x64xf32>
    %488 = arith.addf %487, %486 : vector<32x64xf32>
    %cst_183 = arith.constant 5.000000e-01 : f32
    %489 = vector.broadcast %cst_183 : f32 to vector<32x64xf32>
    %490 = arith.mulf %489, %488 : vector<32x64xf32>
    %491 = arith.mulf %478, %490 : vector<32x64xf32>
    %492 = arith.truncf %491 : vector<32x64xf32> to vector<32x64xbf16>
    %493 = arith.truncf %312 : vector<64x32xf32> to vector<64x32xbf16>
    %cst_184 = arith.constant dense<0.000000e+00> : vector<32x32xf32>
    %494 = tpu.matmul %492, %493, %cst_184 {dimension_numbers = #tpu.dot_dimension_numbers<[1], [0], [0], [1], [0, 0, 1, 1], [], []>} : vector<32x64xbf16>, vector<64x32xbf16>, vector<32x32xf32> -> vector<32x32xf32>
    %495 = arith.addf %451, %494 : vector<32x32xf32>
    %496 = vector.broadcast %313 : vector<1x32xf32> to vector<32x32xf32>
    %497 = arith.addf %495, %496 : vector<32x32xf32>
    %c0_185 = arith.constant 0 : index
    %c0_186 = arith.constant 0 : index
    %498 = vector.load %arg45[%c0_185, %c0_186] : memref<1x32xf32, #tpu.memory_space<vmem>>, vector<1x32xf32>
    %c0_187 = arith.constant 0 : index
    %c0_188 = arith.constant 0 : index
    %499 = vector.load %arg46[%c0_187, %c0_188] : memref<1x32xf32, #tpu.memory_space<vmem>>, vector<1x32xf32>
    %cst_189 = arith.constant dense<0.000000e+00> : vector<32xf32>
    %500 = vector.multi_reduction <add>, %497, %cst_189 [1] : vector<32x32xf32> to vector<32xf32>
    %501 = vector.shape_cast %500 : vector<32xf32> to vector<32x1xf32>
    %cst_190 = arith.constant 3.200000e+01 : f32
    %502 = vector.broadcast %cst_190 : f32 to vector<32x1xf32>
    %503 = arith.divf %501, %502 : vector<32x1xf32>
    %504 = vector.broadcast %503 : vector<32x1xf32> to vector<32x32xf32>
    %505 = arith.subf %497, %504 : vector<32x32xf32>
    %506 = arith.mulf %505, %505 : vector<32x32xf32>
    %cst_191 = arith.constant dense<0.000000e+00> : vector<32xf32>
    %507 = vector.multi_reduction <add>, %506, %cst_191 [1] : vector<32x32xf32> to vector<32xf32>
    %508 = vector.shape_cast %507 : vector<32xf32> to vector<32x1xf32>
    %cst_192 = arith.constant 3.200000e+01 : f32
    %509 = vector.broadcast %cst_192 : f32 to vector<32x1xf32>
    %510 = arith.divf %508, %509 : vector<32x1xf32>
    %511 = vector.broadcast %503 : vector<32x1xf32> to vector<32x32xf32>
    %512 = arith.subf %497, %511 : vector<32x32xf32>
    %cst_193 = arith.constant 9.99999974E-6 : f32
    %513 = vector.broadcast %cst_193 : f32 to vector<32x1xf32>
    %514 = arith.addf %510, %513 : vector<32x1xf32>
    %515 = math.rsqrt %514 : vector<32x1xf32>
    %516 = vector.broadcast %515 : vector<32x1xf32> to vector<32x32xf32>
    %517 = arith.mulf %512, %516 : vector<32x32xf32>
    %518 = vector.broadcast %498 : vector<1x32xf32> to vector<32x32xf32>
    %519 = arith.mulf %517, %518 : vector<32x32xf32>
    %520 = vector.broadcast %499 : vector<1x32xf32> to vector<32x32xf32>
    %521 = arith.addf %519, %520 : vector<32x32xf32>
    %c0_194 = arith.constant 0 : index
    %c0_195 = arith.constant 0 : index
    %522 = vector.load %arg47[%c0_194, %c0_195] : memref<32x128xf32, #tpu.memory_space<vmem>>, vector<32x128xf32>
    %523 = arith.truncf %521 : vector<32x32xf32> to vector<32x32xbf16>
    %524 = arith.truncf %522 : vector<32x128xf32> to vector<32x128xbf16>
    %cst_196 = arith.constant dense<0.000000e+00> : vector<32x128xf32>
    %525 = tpu.matmul %523, %524, %cst_196 {dimension_numbers = #tpu.dot_dimension_numbers<[1], [0], [0], [1], [0, 0, 1, 1], [], []>} : vector<32x32xbf16>, vector<32x128xbf16>, vector<32x128xf32> -> vector<32x128xf32>
    %c0_197 = arith.constant 0 : index
    %c0_198 = arith.constant 0 : index
    %526 = vector.load %arg48[%c0_197, %c0_198] : memref<1x128xf32, #tpu.memory_space<vmem>>, vector<1x128xf32>
    %527 = vector.broadcast %526 : vector<1x128xf32> to vector<32x128xf32>
    %528 = arith.addf %525, %527 : vector<32x128xf32>
    %c0_199 = arith.constant 0 : index
    %c0_200 = arith.constant 0 : index
    %529 = vector.load %arg49[%c0_199, %c0_200] : memref<32x128xf32, #tpu.memory_space<vmem>>, vector<32x128xf32>
    tpu.vector_store %arg49[%c0_199, %c0_200], %528 {strides = array<i32>} : memref<32x128xf32, #tpu.memory_space<vmem>>, vector<32x128xf32>,
    %c0_201 = arith.constant 0 : index
    %c0_202 = arith.constant 0 : index
    %530 = vector.load %arg28[%c0_201, %c0_202] : memref<32x1xi32, #tpu.memory_space<vmem>>, vector<32x1xi32>
    %531 = tpu.iota {dimensions = array<i32: 1>} : vector<32x128xi32>
    %c64_i32 = arith.constant 64 : i32
    %532 = vector.broadcast %c64_i32 : i32 to vector<32x128xi32>
    %533 = arith.cmpi slt, %531, %532 : vector<32x128xi32>
    %cst_203 = arith.constant -1.000000e+30 : f32
    %534 = vector.broadcast %cst_203 : f32 to vector<32x128xf32>
    %535 = arith.select %533, %528, %534 : vector<32x128xi1>, vector<32x128xf32>
    %cst_204 = arith.constant dense<0xFF800000> : vector<32xf32>
    %536 = vector.multi_reduction <maximumf>, %535, %cst_204 [1] : vector<32x128xf32> to vector<32xf32>
    %537 = vector.shape_cast %536 : vector<32xf32> to vector<32x1xf32>
    %538 = vector.broadcast %537 : vector<32x1xf32> to vector<32x128xf32>
    %539 = arith.subf %535, %538 : vector<32x128xf32>
    %540 = math.exp %539 : vector<32x128xf32>
    %cst_205 = arith.constant dense<0.000000e+00> : vector<32xf32>
    %541 = vector.multi_reduction <add>, %540, %cst_205 [1] : vector<32x128xf32> to vector<32xf32>
    %542 = vector.shape_cast %541 : vector<32xf32> to vector<32x1xf32>
    %543 = math.log %542 : vector<32x1xf32>
    %544 = arith.addf %543, %537 : vector<32x1xf32>
    %545 = vector.broadcast %530 : vector<32x1xi32> to vector<32x128xi32>
    %546 = arith.cmpi eq, %545, %531 : vector<32x128xi32>
    %cst_206 = arith.constant 0.000000e+00 : f32
    %547 = vector.broadcast %cst_206 : f32 to vector<32x128xf32>
    %548 = arith.select %546, %528, %547 : vector<32x128xi1>, vector<32x128xf32>
    %cst_207 = arith.constant dense<0.000000e+00> : vector<32xf32>
    %549 = vector.multi_reduction <add>, %548, %cst_207 [1] : vector<32x128xf32> to vector<32xf32>
    %550 = vector.shape_cast %549 : vector<32xf32> to vector<32x1xf32>
    %c-100_i32 = arith.constant -100 : i32
    %551 = vector.broadcast %c-100_i32 : i32 to vector<32x1xi32>
    %552 = arith.cmpi ne, %530, %551 : vector<32x1xi32>
    %553 = arith.subf %544, %550 : vector<32x1xf32>
    %cst_208 = arith.constant 0.000000e+00 : f32
    %554 = vector.broadcast %cst_208 : f32 to vector<32x1xf32>
    %555 = arith.select %552, %553, %554 : vector<32x1xi1>, vector<32x1xf32>
    %cst_209 = arith.constant dense<0.000000e+00> : vector<1xf32>
    %556 = vector.multi_reduction <add>, %555, %cst_209 [0] : vector<32x1xf32> to vector<1xf32>
    %557 = vector.shape_cast %556 : vector<1xf32> to vector<1x1xf32>
    %558 = arith.extui %552 : vector<32x1xi1> to vector<32x1xi32>
    %559 = arith.sitofp %558 : vector<32x1xi32> to vector<32x1xf32>
    %cst_210 = arith.constant dense<0.000000e+00> : vector<1xf32>
    %560 = vector.multi_reduction <add>, %559, %cst_210 [0] : vector<32x1xf32> to vector<1xf32>
    %561 = vector.shape_cast %560 : vector<1xf32> to vector<1x1xf32>
    %cst_211 = arith.constant 1.000000e+00 : f32
    %562 = vector.broadcast %cst_211 : f32 to vector<1x1xf32>
    %563 = arith.maximumf %561, %562 : vector<1x1xf32>
    %564 = arith.divf %557, %563 : vector<1x1xf32>
    %c0_212 = arith.constant 0 : index
    %c0_213 = arith.constant 0 : index
    %565 = vector.load %arg50[%c0_212, %c0_213] : memref<1x1xf32, #tpu.memory_space<vmem>>, vector<1x1xf32>
    tpu.vector_store %arg50[%c0_212, %c0_213], %564 {strides = array<i32>} : memref<1x1xf32, #tpu.memory_space<vmem>>, vector<1x1xf32>,
    return
  }
}

</mosaic_0001>

<llo_original>
// kernel: vlm_numeric.1
$region0: #{vlm_numeric.1}
  #allocation0 [shape = 'u32[]', space=smem, size = 0x4, offset = 0x4, fixed_abs, tag = 'smem constant byte address 0x4 - core index']
  #allocation1 [shape = 'u32[144,128]{1,0:T(1,128)}', space=vmem, size = 0x12000, scoped, tag = 'internal scratch']
  %s0 = inlined_call_operand.smem [shape: u32[51], index: -1, kind: input, shape index: {}]
  %s1 = sld [smem:[%s0]]
  %s2 = scalar_lea.smem %s0, 1
  %s3 = sld [smem:[%s2]]
  %s4 = scalar_lea.smem %s0, 2
  %s5 = sld [smem:[%s4]]
  %s6 = scalar_lea.smem %s0, 3
  %s7 = sld [smem:[%s6]]
  %s8 = scalar_lea.smem %s0, 4
  %s9 = sld [smem:[%s8]]
  %s10 = scalar_lea.smem %s0, 5
  %s11 = sld [smem:[%s10]]
  %s12 = scalar_lea.smem %s0, 6
  %s13 = sld [smem:[%s12]]
  %s14 = scalar_lea.smem %s0, 7
  %s15 = sld [smem:[%s14]]
  %s16 = scalar_lea.smem %s0, 8
  %s17 = sld [smem:[%s16]]
  %s18 = scalar_lea.smem %s0, 9
  %s19 = sld [smem:[%s18]]
  %s20 = scalar_lea.smem %s0, 10
  %s21 = sld [smem:[%s20]]
  %s22 = scalar_lea.smem %s0, 11
  %s23 = sld [smem:[%s22]]
  %s24 = scalar_lea.smem %s0, 12
  %s25 = sld [smem:[%s24]]
  %s26 = scalar_lea.smem %s0, 13
  %s27 = sld [smem:[%s26]]
  %s28 = scalar_lea.smem %s0, 14
  %s29 = sld [smem:[%s28]]
  %s30 = scalar_lea.smem %s0, 15
  %s31 = sld [smem:[%s30]]
  %s32 = scalar_lea.smem %s0, 16
  %s33 = sld [smem:[%s32]]
  %s34 = scalar_lea.smem %s0, 17
  %s35 = sld [smem:[%s34]]
  %s36 = scalar_lea.smem %s0, 18
  %s37 = sld [smem:[%s36]]
  %s38 = scalar_lea.smem %s0, 19
  %s39 = sld [smem:[%s38]]
  %s40 = scalar_lea.smem %s0, 20
  %s41 = sld [smem:[%s40]]
  %s42 = scalar_lea.smem %s0, 21
  %s43 = sld [smem:[%s42]]
  %s44 = scalar_lea.smem %s0, 22
  %s45 = sld [smem:[%s44]]
  %s46 = scalar_lea.smem %s0, 23
  %s47 = sld [smem:[%s46]]
  %s48 = scalar_lea.smem %s0, 24
  %s49 = sld [smem:[%s48]]
  %s50 = scalar_lea.smem %s0, 25
  %s51 = sld [smem:[%s50]]
  %s52 = scalar_lea.smem %s0, 26
  %s53 = sld [smem:[%s52]]
  %s54 = scalar_lea.smem %s0, 27
  %s55 = sld [smem:[%s54]]
  %s56 = scalar_lea.smem %s0, 28
  %s57 = sld [smem:[%s56]]
  %s58 = scalar_lea.smem %s0, 29
  %s59 = sld [smem:[%s58]]
  %s60 = scalar_lea.smem %s0, 30
  %s61 = sld [smem:[%s60]]
  %s62 = scalar_lea.smem %s0, 31
  %s63 = sld [smem:[%s62]]
  %s64 = scalar_lea.smem %s0, 32
  %s65 = sld [smem:[%s64]]
  %s66 = scalar_lea.smem %s0, 33
  %s67 = sld [smem:[%s66]]
  %s68 = scalar_lea.smem %s0, 34
  %s69 = sld [smem:[%s68]]
  %s70 = scalar_lea.smem %s0, 35
  %s71 = sld [smem:[%s70]]
  %s72 = scalar_lea.smem %s0, 36
  %s73 = sld [smem:[%s72]]
  %s74 = scalar_lea.smem %s0, 37
  %s75 = sld [smem:[%s74]]
  %s76 = scalar_lea.smem %s0, 38
  %s77 = sld [smem:[%s76]]
  %s78 = scalar_lea.smem %s0, 39
  %s79 = sld [smem:[%s78]]
  %s80 = scalar_lea.smem %s0, 40
  %s81 = sld [smem:[%s80]]
  %s82 = scalar_lea.smem %s0, 41
  %s83 = sld [smem:[%s82]]
  %s84 = scalar_lea.smem %s0, 42
  %s85 = sld [smem:[%s84]]
  %s86 = scalar_lea.smem %s0, 43
  %s87 = sld [smem:[%s86]]
  %s88 = scalar_lea.smem %s0, 44
  %s89 = sld [smem:[%s88]]
  %s90 = scalar_lea.smem %s0, 45
  %s91 = sld [smem:[%s90]]
  %s92 = scalar_lea.smem %s0, 46
  %s93 = sld [smem:[%s92]]
  %s94 = scalar_lea.smem %s0, 47
  %s95 = sld [smem:[%s94]]
  %s96 = scalar_lea.smem %s0, 48
  %s97 = sld [smem:[%s96]]
  %s98 = scalar_lea.smem %s0, 49
  %s99 = sld [smem:[%s98]]
  %s100 = scalar_lea.smem %s0, 50
  %s101 = sld [smem:[%s100]]
  %102 = xla_tuple %s99, %s101
  %s103 = sld [smem:[#allocation0]]
  $region214: #{vlm_numeric.1} parent=0
    _
  %s105 = ssub.s32 1, %s103
  %s106 = scalar_select 0, %s105, %s103
  $region1: #{vlm_numeric.1} parent=0
    #allocation2 [shape = 'u8[512]{0}', space=vmem, size = 0x400, scoped, tag = 'output window, operand 1, single buffered']
    #allocation3 [shape = 's32[1]{0}', space=sflag, size = 0x4, scoped, tag = 'scoped memory for vlm_numeric.1']
    %107 = vsyncpa [#allocation3], 0
    // Predicated region
    $region2: #{vlm_numeric.1} parent=1 // pred_check
      _
    $region3: #{vlm_numeric.1} parent=1 // pred_check_branch
      %109 = sbr.rel (0) target = $region5
    $region4: #{vlm_numeric.1} parent=1 // pred_region
      _
    $region5: #{vlm_numeric.1} parent=1 // pred_fallthru
      _
    // Predicated region
    $region6: #{vlm_numeric.1} parent=1 // pred_check
      _
    $region7: #{vlm_numeric.1} parent=1 // pred_check_branch
      %111 = sbr.rel (0) target = $region9
    $region8: #{vlm_numeric.1} parent=1 // pred_region
      _
    $region9: #{vlm_numeric.1} parent=1 // pred_fallthru
      _
    // Predicated region
    $region10: #{vlm_numeric.1} parent=1 // pred_check
      _
    $region11: #{vlm_numeric.1} parent=1 // pred_check_branch
      %113 = sbr.rel (0) target = $region13
    $region12: #{vlm_numeric.1} parent=1 // pred_region
      _
    $region13: #{vlm_numeric.1} parent=1 // pred_fallthru
      _
    // Predicated region
    $region14: #{vlm_numeric.1} parent=1 // pred_check
      _
    $region15: #{vlm_numeric.1} parent=1 // pred_check_branch
      %115 = sbr.rel (0) target = $region17
    $region16: #{vlm_numeric.1} parent=1 // pred_region
      _
    $region17: #{vlm_numeric.1} parent=1 // pred_fallthru
      _
    // Predicated region
    $region18: #{vlm_numeric.1} parent=1 // pred_check
      _
    $region19: #{vlm_numeric.1} parent=1 // pred_check_branch
      %117 = sbr.rel (0) target = $region21
    $region20: #{vlm_numeric.1} parent=1 // pred_region
      _
    $region21: #{vlm_numeric.1} parent=1 // pred_fallthru
      _
    // Predicated region
    $region22: #{vlm_numeric.1} parent=1 // pred_check
      _
    $region23: #{vlm_numeric.1} parent=1 // pred_check_branch
      %119 = sbr.rel (0) target = $region25
    $region24: #{vlm_numeric.1} parent=1 // pred_region
      _
    $region25: #{vlm_numeric.1} parent=1 // pred_fallthru
      _
    // Predicated region
    $region26: #{vlm_numeric.1} parent=1 // pred_check
      _
    $region27: #{vlm_numeric.1} parent=1 // pred_check_branch
      %121 = sbr.rel (0) target = $region29
    $region28: #{vlm_numeric.1} parent=1 // pred_region
      _
    $region29: #{vlm_numeric.1} parent=1 // pred_fallthru
      _
    // Predicated region
    $region30: #{vlm_numeric.1} parent=1 // pred_check
      _
    $region31: #{vlm_numeric.1} parent=1 // pred_check_branch
      %123 = sbr.rel (0) target = $region33
    $region32: #{vlm_numeric.1} parent=1 // pred_region
      _
    $region33: #{vlm_numeric.1} parent=1 // pred_fallthru
      _
    // Predicated region
    $region34: #{vlm_numeric.1} parent=1 // pred_check
      _
    $region35: #{vlm_numeric.1} parent=1 // pred_check_branch
      %125 = sbr.rel (0) target = $region37
    $region36: #{vlm_numeric.1} parent=1 // pred_region
      _
    $region37: #{vlm_numeric.1} parent=1 // pred_fallthru
      _
    // Predicated region
    $region38: #{vlm_numeric.1} parent=1 // pred_check
      _
    $region39: #{vlm_numeric.1} parent=1 // pred_check_branch
      %127 = sbr.rel (0) target = $region41
    $region40: #{vlm_numeric.1} parent=1 // pred_region
      _
    $region41: #{vlm_numeric.1} parent=1 // pred_fallthru
      _
    // Predicated region
    $region42: #{vlm_numeric.1} parent=1 // pred_check
      _
    $region43: #{vlm_numeric.1} parent=1 // pred_check_branch
      %129 = sbr.rel (0) target = $region45
    $region44: #{vlm_numeric.1} parent=1 // pred_region
      _
    $region45: #{vlm_numeric.1} parent=1 // pred_fallthru
      _
    // Predicated region
    $region46: #{vlm_numeric.1} parent=1 // pred_check
      _
    $region47: #{vlm_numeric.1} parent=1 // pred_check_branch
      %131 = sbr.rel (0) target = $region49
    $region48: #{vlm_numeric.1} parent=1 // pred_region
      _
    $region49: #{vlm_numeric.1} parent=1 // pred_fallthru
      _
    // Predicated region
    $region50: #{vlm_numeric.1} parent=1 // pred_check
      _
    $region51: #{vlm_numeric.1} parent=1 // pred_check_branch
      %133 = sbr.rel (0) target = $region53
    $region52: #{vlm_numeric.1} parent=1 // pred_region
      _
    $region53: #{vlm_numeric.1} parent=1 // pred_fallthru
      _
    // Predicated region
    $region54: #{vlm_numeric.1} parent=1 // pred_check
      _
    $region55: #{vlm_numeric.1} parent=1 // pred_check_branch
      %135 = sbr.rel (0) target = $region57
    $region56: #{vlm_numeric.1} parent=1 // pred_region
      _
    $region57: #{vlm_numeric.1} parent=1 // pred_fallthru
      _
    // Predicated region
    $region58: #{vlm_numeric.1} parent=1 // pred_check
      _
    $region59: #{vlm_numeric.1} parent=1 // pred_check_branch
      %137 = sbr.rel (0) target = $region61
    $region60: #{vlm_numeric.1} parent=1 // pred_region
      _
    $region61: #{vlm_numeric.1} parent=1 // pred_fallthru
      _
    // Predicated region
    $region62: #{vlm_numeric.1} parent=1 // pred_check
      _
    $region63: #{vlm_numeric.1} parent=1 // pred_check_branch
      %139 = sbr.rel (0) target = $region65
    $region64: #{vlm_numeric.1} parent=1 // pred_region
      _
    $region65: #{vlm_numeric.1} parent=1 // pred_fallthru
      _
    // Predicated region
    $region66: #{vlm_numeric.1} parent=1 // pred_check
      _
    $region67: #{vlm_numeric.1} parent=1 // pred_check_branch
      %141 = sbr.rel (0) target = $region69
    $region68: #{vlm_numeric.1} parent=1 // pred_region
      _
    $region69: #{vlm_numeric.1} parent=1 // pred_fallthru
      _
    // Predicated region
    $region70: #{vlm_numeric.1} parent=1 // pred_check
      _
    $region71: #{vlm_numeric.1} parent=1 // pred_check_branch
      %143 = sbr.rel (0) target = $region73
    $region72: #{vlm_numeric.1} parent=1 // pred_region
      _
    $region73: #{vlm_numeric.1} parent=1 // pred_fallthru
      _
    // Predicated region
    $region74: #{vlm_numeric.1} parent=1 // pred_check
      _
    $region75: #{vlm_numeric.1} parent=1 // pred_check_branch
      %145 = sbr.rel (0) target = $region77
    $region76: #{vlm_numeric.1} parent=1 // pred_region
      _
    $region77: #{vlm_numeric.1} parent=1 // pred_fallthru
      _
    // Predicated region
    $region78: #{vlm_numeric.1} parent=1 // pred_check
      _
    $region79: #{vlm_numeric.1} parent=1 // pred_check_branch
      %147 = sbr.rel (0) target = $region81
    $region80: #{vlm_numeric.1} parent=1 // pred_region
      _
    $region81: #{vlm_numeric.1} parent=1 // pred_fallthru
      _
    // Predicated region
    $region82: #{vlm_numeric.1} parent=1 // pred_check
      _
    $region83: #{vlm_numeric.1} parent=1 // pred_check_branch
      %149 = sbr.rel (0) target = $region85
    $region84: #{vlm_numeric.1} parent=1 // pred_region
      _
    $region85: #{vlm_numeric.1} parent=1 // pred_fallthru
      _
    // Predicated region
    $region86: #{vlm_numeric.1} parent=1 // pred_check
      _
    $region87: #{vlm_numeric.1} parent=1 // pred_check_branch
      %151 = sbr.rel (0) target = $region89
    $region88: #{vlm_numeric.1} parent=1 // pred_region
      _
    $region89: #{vlm_numeric.1} parent=1 // pred_fallthru
      _
    // Predicated region
    $region90: #{vlm_numeric.1} parent=1 // pred_check
      _
    $region91: #{vlm_numeric.1} parent=1 // pred_check_branch
      %153 = sbr.rel (0) target = $region93
    $region92: #{vlm_numeric.1} parent=1 // pred_region
      _
    $region93: #{vlm_numeric.1} parent=1 // pred_fallthru
      _
    // Predicated region
    $region94: #{vlm_numeric.1} parent=1 // pred_check
      _
    $region95: #{vlm_numeric.1} parent=1 // pred_check_branch
      %155 = sbr.rel (0) target = $region97
    $region96: #{vlm_numeric.1} parent=1 // pred_region
      _
    $region97: #{vlm_numeric.1} parent=1 // pred_fallthru
      _
    // Predicated region
    $region98: #{vlm_numeric.1} parent=1 // pred_check
      _
    $region99: #{vlm_numeric.1} parent=1 // pred_check_branch
      %157 = sbr.rel (0) target = $region101
    $region100: #{vlm_numeric.1} parent=1 // pred_region
      _
    $region101: #{vlm_numeric.1} parent=1 // pred_fallthru
      _
    // Predicated region
    $region102: #{vlm_numeric.1} parent=1 // pred_check
      _
    $region103: #{vlm_numeric.1} parent=1 // pred_check_branch
      %159 = sbr.rel (0) target = $region105
    $region104: #{vlm_numeric.1} parent=1 // pred_region
      _
    $region105: #{vlm_numeric.1} parent=1 // pred_fallthru
      _
    // Predicated region
    $region106: #{vlm_numeric.1} parent=1 // pred_check
      _
    $region107: #{vlm_numeric.1} parent=1 // pred_check_branch
      %161 = sbr.rel (0) target = $region109
    $region108: #{vlm_numeric.1} parent=1 // pred_region
      _
    $region109: #{vlm_numeric.1} parent=1 // pred_fallthru
      _
    // Predicated region
    $region110: #{vlm_numeric.1} parent=1 // pred_check
      _
    $region111: #{vlm_numeric.1} parent=1 // pred_check_branch
      %163 = sbr.rel (0) target = $region113
    $region112: #{vlm_numeric.1} parent=1 // pred_region
      _
    $region113: #{vlm_numeric.1} parent=1 // pred_fallthru
      _
    // Predicated region
    $region114: #{vlm_numeric.1} parent=1 // pred_check
      _
    $region115: #{vlm_numeric.1} parent=1 // pred_check_branch
      %165 = sbr.rel (0) target = $region117
    $region116: #{vlm_numeric.1} parent=1 // pred_region
      _
    $region117: #{vlm_numeric.1} parent=1 // pred_fallthru
      _
    // Predicated region
    $region118: #{vlm_numeric.1} parent=1 // pred_check
      _
    $region119: #{vlm_numeric.1} parent=1 // pred_check_branch
      %167 = sbr.rel (0) target = $region121
    $region120: #{vlm_numeric.1} parent=1 // pred_region
      _
    $region121: #{vlm_numeric.1} parent=1 // pred_fallthru
      _
    // Predicated region
    $region122: #{vlm_numeric.1} parent=1 // pred_check
      _
    $region123: #{vlm_numeric.1} parent=1 // pred_check_branch
      %169 = sbr.rel (0) target = $region125
    $region124: #{vlm_numeric.1} parent=1 // pred_region
      _
    $region125: #{vlm_numeric.1} parent=1 // pred_fallthru
      _
    // Predicated region
    $region126: #{vlm_numeric.1} parent=1 // pred_check
      _
    $region127: #{vlm_numeric.1} parent=1 // pred_check_branch
      %171 = sbr.rel (0) target = $region129
    $region128: #{vlm_numeric.1} parent=1 // pred_region
      _
    $region129: #{vlm_numeric.1} parent=1 // pred_fallthru
      _
    // Predicated region
    $region130: #{vlm_numeric.1} parent=1 // pred_check
      _
    $region131: #{vlm_numeric.1} parent=1 // pred_check_branch
      %173 = sbr.rel (0) target = $region133
    $region132: #{vlm_numeric.1} parent=1 // pred_region
      _
    $region133: #{vlm_numeric.1} parent=1 // pred_fallthru
      _
    // Predicated region
    $region134: #{vlm_numeric.1} parent=1 // pred_check
      _
    $region135: #{vlm_numeric.1} parent=1 // pred_check_branch
      %175 = sbr.rel (0) target = $region137
    $region136: #{vlm_numeric.1} parent=1 // pred_region
      _
    $region137: #{vlm_numeric.1} parent=1 // pred_fallthru
      _
    // Predicated region
    $region138: #{vlm_numeric.1} parent=1 // pred_check
      _
    $region139: #{vlm_numeric.1} parent=1 // pred_check_branch
      %177 = sbr.rel (0) target = $region141
    $region140: #{vlm_numeric.1} parent=1 // pred_region
      _
    $region141: #{vlm_numeric.1} parent=1 // pred_fallthru
      _
    // Predicated region
    $region142: #{vlm_numeric.1} parent=1 // pred_check
      _
    $region143: #{vlm_numeric.1} parent=1 // pred_check_branch
      %179 = sbr.rel (0) target = $region145
    $region144: #{vlm_numeric.1} parent=1 // pred_region
      _
    $region145: #{vlm_numeric.1} parent=1 // pred_fallthru
      _
    // Predicated region
    $region146: #{vlm_numeric.1} parent=1 // pred_check
      _
    $region147: #{vlm_numeric.1} parent=1 // pred_check_branch
      %181 = sbr.rel (0) target = $region149
    $region148: #{vlm_numeric.1} parent=1 // pred_region
      _
    $region149: #{vlm_numeric.1} parent=1 // pred_fallthru
      _
    // Predicated region
    $region150: #{vlm_numeric.1} parent=1 // pred_check
      _
    $region151: #{vlm_numeric.1} parent=1 // pred_check_branch
      %183 = sbr.rel (0) target = $region153
    $region152: #{vlm_numeric.1} parent=1 // pred_region
      _
    $region153: #{vlm_numeric.1} parent=1 // pred_fallthru
      _
    // Predicated region
    $region154: #{vlm_numeric.1} parent=1 // pred_check
      _
    $region155: #{vlm_numeric.1} parent=1 // pred_check_branch
      %185 = sbr.rel (0) target = $region157
    $region156: #{vlm_numeric.1} parent=1 // pred_region
      _
    $region157: #{vlm_numeric.1} parent=1 // pred_fallthru
      _
    // Predicated region
    $region158: #{vlm_numeric.1} parent=1 // pred_check
      _
    $region159: #{vlm_numeric.1} parent=1 // pred_check_branch
      %187 = sbr.rel (0) target = $region161
    $region160: #{vlm_numeric.1} parent=1 // pred_region
      _
    $region161: #{vlm_numeric.1} parent=1 // pred_fallthru
      _
    // Predicated region
    $region162: #{vlm_numeric.1} parent=1 // pred_check
      _
    $region163: #{vlm_numeric.1} parent=1 // pred_check_branch
      %189 = sbr.rel (0) target = $region165
    $region164: #{vlm_numeric.1} parent=1 // pred_region
      _
    $region165: #{vlm_numeric.1} parent=1 // pred_fallthru
      _
    // Predicated region
    $region166: #{vlm_numeric.1} parent=1 // pred_check
      _
    $region167: #{vlm_numeric.1} parent=1 // pred_check_branch
      %191 = sbr.rel (0) target = $region169
    $region168: #{vlm_numeric.1} parent=1 // pred_region
      _
    $region169: #{vlm_numeric.1} parent=1 // pred_fallthru
      _
    // Predicated region
    $region170: #{vlm_numeric.1} parent=1 // pred_check
      _
    $region171: #{vlm_numeric.1} parent=1 // pred_check_branch
      %193 = sbr.rel (0) target = $region173
    $region172: #{vlm_numeric.1} parent=1 // pred_region
      _
    $region173: #{vlm_numeric.1} parent=1 // pred_fallthru
      _
    // Predicated region
    $region174: #{vlm_numeric.1} parent=1 // pred_check
      _
    $region175: #{vlm_numeric.1} parent=1 // pred_check_branch
      %195 = sbr.rel (0) target = $region177
    $region176: #{vlm_numeric.1} parent=1 // pred_region
      _
    $region177: #{vlm_numeric.1} parent=1 // pred_fallthru
      _
    // Predicated region
    $region178: #{vlm_numeric.1} parent=1 // pred_check
      _
    $region179: #{vlm_numeric.1} parent=1 // pred_check_branch
      %197 = sbr.rel (0) target = $region181
    $region180: #{vlm_numeric.1} parent=1 // pred_region
      _
    $region181: #{vlm_numeric.1} parent=1 // pred_fallthru
      _
    // Predicated region
    $region182: #{vlm_numeric.1} parent=1 // pred_check
      _
    $region183: #{vlm_numeric.1} parent=1 // pred_check_branch
      %199 = sbr.rel (0) target = $region185
    $region184: #{vlm_numeric.1} parent=1 // pred_region
      _
    $region185: #{vlm_numeric.1} parent=1 // pred_fallthru
      _
    // Predicated region
    $region186: #{vlm_numeric.1} parent=1 // pred_check
      _
    $region187: #{vlm_numeric.1} parent=1 // pred_check_branch
      %201 = sbr.rel (0) target = $region189
    $region188: #{vlm_numeric.1} parent=1 // pred_region
      _
    $region189: #{vlm_numeric.1} parent=1 // pred_fallthru
      _
    // Predicated region
    $region190: #{vlm_numeric.1} parent=1 // pred_check
      _
    $region191: #{vlm_numeric.1} parent=1 // pred_check_branch
      %203 = sbr.rel (0) target = $region193
    $region192: #{vlm_numeric.1} parent=1 // pred_region
      _
    $region193: #{vlm_numeric.1} parent=1 // pred_fallthru
      _
    // Predicated region
    $region194: #{vlm_numeric.1} parent=1 // pred_check
      _
    $region195: #{vlm_numeric.1} parent=1 // pred_check_branch
      %205 = sbr.rel (0) target = $region197
    $region196: #{vlm_numeric.1} parent=1 // pred_region
      _
    $region197: #{vlm_numeric.1} parent=1 // pred_fallthru
      _
    %v207 = vld [vmem:[%s1] sm:$0xff]
    %v208 = vld [vmem:[%s1 + $0x8] sm:$0xff]
    %v209 = vld [vmem:[%s1 + $0x10] sm:$0xff]
    %v210 = vld [vmem:[%s1 + $0x18] sm:$0xff]
    %v211 = vld [vmem:[%s7] sm:$0xff]
    %v212 = vld [vmem:[%s7 + $0x8] sm:$0xff]
    %v213 = vld [vmem:[%s7 + $0x10] sm:$0xff]
    %v214 = vld [vmem:[%s7 + $0x18] sm:$0xff]
    %v215 = vld [vmem:[%s7 + $0x20] sm:$0xff]
    %v216 = vld [vmem:[%s7 + $0x28] sm:$0xff]
    %v217 = vld [vmem:[%s7 + $0x30] sm:$0xff]
    %v218 = vld [vmem:[%s7 + $0x38] sm:$0xff]
    %v219 = vld [vmem:[%s7 + $0x40] sm:$0xff]
    %v220 = vld [vmem:[%s7 + $0x48] sm:$0xff]
    %v221 = vld [vmem:[%s7 + $0x50] sm:$0xff]
    %v222 = vld [vmem:[%s7 + $0x58] sm:$0xff]
    %v223 = vld [vmem:[%s7 + $0x60] sm:$0xff]
    %v224 = vld [vmem:[%s7 + $0x68] sm:$0xff]
    %v225 = vld [vmem:[%s7 + $0x70] sm:$0xff]
    %v226 = vld [vmem:[%s7 + $0x78] sm:$0xff]
    %v227 = vld [vmem:[%s7 + $0x80] sm:$0xff]
    %v228 = vld [vmem:[%s7 + $0x88] sm:$0xff]
    %v229 = vld [vmem:[%s7 + $0x90] sm:$0xff]
    %v230 = vld [vmem:[%s7 + $0x98] sm:$0xff]
    %v231 = vld [vmem:[%s7 + $0xa0] sm:$0xff]
    %v232 = vld [vmem:[%s7 + $0xa8] sm:$0xff]
    %v233 = vld [vmem:[%s7 + $0xb0] sm:$0xff]
    %v234 = vld [vmem:[%s7 + $0xb8] sm:$0xff]
    %v235 = vpack.c.bf16 %v209, %v207
    %v236 = vpack.c.bf16 %v210, %v208
    %v237 = vpack.c.bf16 %v212, %v211
    %v238 = vpack.c.bf16 %v214, %v213
    %v239 = vpack.c.bf16 %v216, %v215
    %v240 = vpack.c.bf16 %v218, %v217
    %v241 = vpack.c.bf16 %v220, %v219
    %v242 = vpack.c.bf16 %v222, %v221
    %v243 = vpack.c.bf16 %v224, %v223
    %v244 = vpack.c.bf16 %v226, %v225
    %v245 = vpack.c.bf16 %v228, %v227
    %v246 = vpack.c.bf16 %v230, %v229
    %v247 = vpack.c.bf16 %v232, %v231
    %v248 = vpack.c.bf16 %v234, %v233
    %v249 = vld [vmem:[%s9] sm:$0x1]
    %v251 = vlaneseq
    %v252 = vshrl.u32 %v251, 7
    %v253 = vsub.s32 0, %v252
    %v254 = vrot.slane %v249, %v253
    %vm256 = vcmask 523264
    %v258 = vsel %vm256, %v236, 0
    %260 = vmatprep.subr.bf16.mxu0 0
    %261 = vmatpush1.bf16.msra.mxu0 %v237
    %262 = vmatprep.subr.bf16.mxu0 0
    %263 = vmatpush1.bf16.msra.mxu0 %v238
    %264 = vmatprep.subr.bf16.mxu0 0
    %265 = vmatpush1.bf16.msra.mxu0 %v239
    %266 = vmatprep.subr.bf16.mxu0 0
    %267 = vmatpush1.bf16.msra.mxu0 %v240
    %268 = vmatprep.subr.bf16.mxu0 0
    %269 = vmatpush1.bf16.msra.mxu0 %v241
    %270 = vmatprep.subr.bf16.mxu0 0
    %271 = vmatpush1.bf16.msra.mxu0 %v242
    %272 = vmatprep.subr.bf16.mxu0 0
    %273 = vmatpush1.bf16.msra.mxu0 %v243
    %274 = vmatprep.subr.bf16.mxu0 0
    %275 = vmatpush1.bf16.msra.mxu0 %v244
    %276 = vmatprep.subr.bf16.mxu0 0
    %277 = vmatpush1.bf16.msra.mxu0 %v245
    %278 = vmatprep.subr.bf16.mxu0 0
    %279 = vmatpush1.bf16.msra.mxu0 %v246
    %280 = vmatprep.subr.bf16.mxu0 0
    %281 = vmatpush1.bf16.msra.mxu0 %v247
    %282 = vmatprep.subr.bf16.mxu0 0
    %283 = vmatpush1.bf16.msra.mxu0 %v248
    %284 = vmatprep.subr.bf16.mxu0 0
    %285 = vmatpush1.bf16.msra.mxu0 0
    %286 = vmatprep.subr.bf16.mxu0 0
    %287 = vmatpush1.bf16.msra.mxu0 0
    %288 = vmatprep.subr.bf16.mxu0 0
    %289 = vmatpush1.bf16.msra.mxu0 0
    %290 = vmatprep.subr.bf16.mxu0 0
    %291 = vmatpush1.bf16.msra.mxu0 0
    %292 = vmatprep.mubr.bf16.mxu0 %v258
    %293 = vmatmul.mubr.bf16.gmra.mrb[0].mxu0 %v235
    %v294 = vpop.f32.mrb[0].mxu0
    %v295 = vadd.f32 %v254, %v294
    %v296 = vpop.f32.mrb[0].mxu0
    %v297 = vpop.f32.mrb[0].mxu0
    %v298 = vadd.f32 %v254, %v297
    %v299 = vpop.f32.mrb[0].mxu0
    %300 = vdwg.mxu0
    %v301 = vlaneseq
    %v302 = vshrl.u32 %v301, 7
    %v303 = vadd.s32 %v302, 8
    %v304 = vand.u32 %v302, 7
    %v305 = vand.u32 %v303, 7
    %v306 = vld [vmem:[%s5] sm:$0x1]
    %v308 = vlaneseq
    %v309 = vshrl.u32 %v308, 7
    %v310 = vsub.s32 0, %v309
    %v311 = vrot.slane %v306, %v310
    %v313 = vld [vmem:[%s3] sm:$0xff]
    %v314 = vld [vmem:[%s3 + $0x8] sm:$0xff]
    %vm315 = vcmp.eq.s32.totalorder %v304, 0
    %vm316 = vcmp.eq.s32.totalorder %v305, 0
    %v317 = vsel %vm315, %v311, %v295
    %v318 = vsel %vm316, %v311, %v298
    %v319 = vadd.f32 %v313, %v317
    %v320 = vadd.f32 %v314, %v318
    %v321 = vlaneseq
    %v322 = vand.u32 %v321, 127
    %vm323 = vcmp.lt.s32.totalorder %v322, 5
    %v324 = vsel %vm323, 1, 0
    %vm325 = vcmp.eq.s32.totalorder %v324, 1
    %v326 = vld [vmem:[%s11] sm:$0x1]
    %v327 = vld [vmem:[%s13] sm:$0x1]
    %v328 = vld [vmem:[%s15] sm:$0xff]
    %v329 = vld [vmem:[%s15 + $0x8] sm:$0xff]
    %v330 = vld [vmem:[%s15 + $0x10] sm:$0xff]
    %v331 = vld [vmem:[%s15 + $0x18] sm:$0xff]
    %v332 = vld [vmem:[%s15 + $0x20] sm:$0xff]
    %v333 = vld [vmem:[%s15 + $0x28] sm:$0xff]
    %v334 = vld [vmem:[%s15 + $0x30] sm:$0xff]
    %v335 = vld [vmem:[%s15 + $0x38] sm:$0xff]
    %v336 = vld [vmem:[%s17] sm:$0xff]
    %v337 = vld [vmem:[%s17 + $0x8] sm:$0xff]
    %v338 = vld [vmem:[%s17 + $0x10] sm:$0xff]
    %v339 = vld [vmem:[%s17 + $0x18] sm:$0xff]
    %v340 = vld [vmem:[%s17 + $0x20] sm:$0xff]
    %v341 = vld [vmem:[%s17 + $0x28] sm:$0xff]
    %v342 = vld [vmem:[%s17 + $0x30] sm:$0xff]
    %v343 = vld [vmem:[%s17 + $0x38] sm:$0xff]
    %v344 = vld [vmem:[%s19] sm:$0xff]
    %v345 = vld [vmem:[%s19 + $0x8] sm:$0xff]
    %v346 = vld [vmem:[%s19 + $0x10] sm:$0xff]
    %v347 = vld [vmem:[%s19 + $0x18] sm:$0xff]
    %v348 = vld [vmem:[%s19 + $0x20] sm:$0xff]
    %v349 = vld [vmem:[%s19 + $0x28] sm:$0xff]
    %v350 = vld [vmem:[%s19 + $0x30] sm:$0xff]
    %v351 = vld [vmem:[%s19 + $0x38] sm:$0xff]
    %v352 = vld [vmem:[%s21] sm:$0x1]
    %v353 = vld [vmem:[%s21 + $0x1] sm:$0x1]
    %v354 = vld [vmem:[%s23] sm:$0x1]
    %v355 = vld [vmem:[%s23 + $0x1] sm:$0x1]
    %v356 = vld [vmem:[%s25] sm:$0x1]
    %v357 = vld [vmem:[%s25 + $0x1] sm:$0x1]
    %v358 = vld [vmem:[%s27] sm:$0xff]
    %v359 = vld [vmem:[%s27 + $0x8] sm:$0xff]
    %v360 = vld [vmem:[%s27 + $0x10] sm:$0xff]
    %v361 = vld [vmem:[%s27 + $0x18] sm:$0xff]
    %v362 = vld [vmem:[%s29] sm:$0x1]
    %v363 = vld [vmem:[%s31] sm:$0x1]
    %v364 = vld [vmem:[%s33] sm:$0x1]
    %v365 = vld [vmem:[%s35] sm:$0xff]
    %v366 = vld [vmem:[%s35 + $0x8] sm:$0xff]
    %v367 = vld [vmem:[%s35 + $0x10] sm:$0xff]
    %v368 = vld [vmem:[%s35 + $0x18] sm:$0xff]
    %v369 = vld [vmem:[%s37] sm:$0x1]
    %v370 = vld [vmem:[%s39] sm:$0xff]
    %v371 = vld [vmem:[%s39 + $0x8] sm:$0xff]
    %v372 = vld [vmem:[%s39 + $0x10] sm:$0xff]
    %v373 = vld [vmem:[%s39 + $0x18] sm:$0xff]
    %v374 = vld [vmem:[%s39 + $0x20] sm:$0xff]
    %v375 = vld [vmem:[%s39 + $0x28] sm:$0xff]
    %v376 = vld [vmem:[%s39 + $0x30] sm:$0xff]
    %v377 = vld [vmem:[%s39 + $0x38] sm:$0xff]
    %v378 = vld [vmem:[%s41] sm:$0x1]
    %vm379 = vcmask 261120
    %v380 = vsel %vm379, %v319, 0.0
    %381 = vadd.xlane.f32.xlu0 %v380
    %v382 = vpop.xlane.xlu0 %381
    %v383 = vsel %vm379, %v320, 0.0
    %384 = vadd.xlane.f32.xlu0 %v383
    %v385 = vpop.xlane.xlu0 %384
    %v386 = vrcp.pop 32.0
    %v387 = vmul.f32 %v382, %v386
    %v388 = vmul.f32 %v385, %v386
    %v389 = vsub.f32 %v319, %v387
    %v390 = vsub.f32 %v320, %v388
    %v391 = vmul.f32 %v389, %v389
    %v392 = vmul.f32 %v390, %v390
    %v393 = vsel %vm379, %v391, 0.0
    %394 = vadd.xlane.f32.xlu0 %v393
    %v395 = vpop.xlane.xlu0 %394
    %v396 = vsel %vm379, %v392, 0.0
    %397 = vadd.xlane.f32.xlu0 %v396
    %v398 = vpop.xlane.xlu0 %397
    %v399 = vmul.f32 %v395, %v386
    %v400 = vmul.f32 %v398, %v386
    %v401 = vadd.f32 %v399, 1e-05
    %v402 = vadd.f32 %v400, 1e-05
    %v403 = vrsqrt.pop %v401
    %v404 = vrsqrt.pop %v402
    %v405 = vmul.f32 %v389, %v403
    %v406 = vmul.f32 %v390, %v404
    %v408 = vlaneseq
    %v409 = vshrl.u32 %v408, 7
    %v410 = vsub.s32 0, %v409
    %v411 = vrot.slane %v326, %v410
    %v413 = vmul.f32 %v405, %v411
    %v414 = vmul.f32 %v406, %v411
    %v416 = vlaneseq
    %v417 = vshrl.u32 %v416, 7
    %v418 = vsub.s32 0, %v417
    %v419 = vrot.slane %v327, %v418
    %v421 = vadd.f32 %v413, %v419
    %v422 = vadd.f32 %v414, %v419
    %v423 = vpack.c.bf16 %v422, %v421
    %v424 = vpack.c.bf16 %v329, %v328
    %v425 = vpack.c.bf16 %v331, %v330
    %v427 = vlaneseq
    %v428 = vshrl.u32 %v427, 7
    %v429 = vsub.s32 0, %v428
    %v430 = vrot.slane %v352, %v429
    %v433 = vsel %vm379, %v423, 0
    %435 = vmatprep.subr.bf16.mxu0 0
    %436 = vmatpush1.bf16.msra.mxu0 %v424
    %437 = vmatprep.subr.bf16.mxu0 0
    %438 = vmatpush1.bf16.msra.mxu0 %v425
    %439 = vmatprep.subr.bf16.mxu0 0
    %440 = vmatpush1.bf16.msra.mxu0 0
    %441 = vmatprep.subr.bf16.mxu0 0
    %442 = vmatpush1.bf16.msra.mxu0 0
    %443 = vmatprep.subr.bf16.mxu0 0
    %444 = vmatpush1.bf16.msra.mxu0 0
    %445 = vmatprep.subr.bf16.mxu0 0
    %446 = vmatpush1.bf16.msra.mxu0 0
    %447 = vmatprep.subr.bf16.mxu0 0
    %448 = vmatpush1.bf16.msra.mxu0 0
    %449 = vmatprep.subr.bf16.mxu0 0
    %450 = vmatpush1.bf16.msra.mxu0 0
    %451 = vmatprep.subr.bf16.mxu0 0
    %452 = vmatpush1.bf16.msra.mxu0 0
    %453 = vmatprep.subr.bf16.mxu0 0
    %454 = vmatpush1.bf16.msra.mxu0 0
    %455 = vmatprep.subr.bf16.mxu0 0
    %456 = vmatpush1.bf16.msra.mxu0 0
    %457 = vmatprep.subr.bf16.mxu0 0
    %458 = vmatpush1.bf16.msra.mxu0 0
    %459 = vmatprep.subr.bf16.mxu0 0
    %460 = vmatpush1.bf16.msra.mxu0 0
    %461 = vmatprep.subr.bf16.mxu0 0
    %462 = vmatpush1.bf16.msra.mxu0 0
    %463 = vmatprep.subr.bf16.mxu0 0
    %464 = vmatpush1.bf16.msra.mxu0 0
    %465 = vmatprep.subr.bf16.mxu0 0
    %466 = vmatpush1.bf16.msra.mxu0 0
    %467 = vmatprep.mubr.bf16.mxu0 0
    %468 = vmatmul.mubr.bf16.gmra.mrb[0].mxu0 %v433
    %v469 = vpop.f32.mrb[0].mxu0
    %v470 = vadd.f32 %v430, %v469
    %v471 = vpop.f32.mrb[0].mxu0
    %v472 = vpop.f32.mrb[0].mxu0
    %v473 = vadd.f32 %v430, %v472
    %v474 = vpop.f32.mrb[0].mxu0
    %475 = vdwg.mxu0
    %v476 = vpack.c.bf16 %v337, %v336
    %v477 = vpack.c.bf16 %v339, %v338
    %v479 = vlaneseq
    %v480 = vshrl.u32 %v479, 7
    %v481 = vsub.s32 0, %v480
    %v482 = vrot.slane %v354, %v481
    %484 = vmatprep.subr.bf16.mxu0 0
    %485 = vmatpush1.bf16.msra.mxu0 %v476
    %486 = vmatprep.subr.bf16.mxu0 0
    %487 = vmatpush1.bf16.msra.mxu0 %v477
    %488 = vmatprep.subr.bf16.mxu0 0
    %489 = vmatpush1.bf16.msra.mxu0 0
    %490 = vmatprep.subr.bf16.mxu0 0
    %491 = vmatpush1.bf16.msra.mxu0 0
    %492 = vmatprep.subr.bf16.mxu0 0
    %493 = vmatpush1.bf16.msra.mxu0 0
    %494 = vmatprep.subr.bf16.mxu0 0
    %495 = vmatpush1.bf16.msra.mxu0 0
    %496 = vmatprep.subr.bf16.mxu0 0
    %497 = vmatpush1.bf16.msra.mxu0 0
    %498 = vmatprep.subr.bf16.mxu0 0
    %499 = vmatpush1.bf16.msra.mxu0 0
    %500 = vmatprep.subr.bf16.mxu0 0
    %501 = vmatpush1.bf16.msra.mxu0 0
    %502 = vmatprep.subr.bf16.mxu0 0
    %503 = vmatpush1.bf16.msra.mxu0 0
    %504 = vmatprep.subr.bf16.mxu0 0
    %505 = vmatpush1.bf16.msra.mxu0 0
    %506 = vmatprep.subr.bf16.mxu0 0
    %507 = vmatpush1.bf16.msra.mxu0 0
    %508 = vmatprep.subr.bf16.mxu0 0
    %509 = vmatpush1.bf16.msra.mxu0 0
    %510 = vmatprep.subr.bf16.mxu0 0
    %511 = vmatpush1.bf16.msra.mxu0 0
    %512 = vmatprep.subr.bf16.mxu0 0
    %513 = vmatpush1.bf16.msra.mxu0 0
    %514 = vmatprep.subr.bf16.mxu0 0
    %515 = vmatpush1.bf16.msra.mxu0 0
    %516 = vmatprep.mubr.bf16.mxu0 0
    %517 = vmatmul.mubr.bf16.gmra.mrb[0].mxu0 %v433
    %v518 = vpop.f32.mrb[0].mxu0
    %v519 = vadd.f32 %v482, %v518
    %v520 = vpop.f32.mrb[0].mxu0
    %v521 = vpop.f32.mrb[0].mxu0
    %v522 = vadd.f32 %v482, %v521
    %v523 = vpop.f32.mrb[0].mxu0
    %524 = vdwg.mxu0
    %v525 = vpack.c.bf16 %v345, %v344
    %v526 = vpack.c.bf16 %v347, %v346
    %v528 = vlaneseq
    %v529 = vshrl.u32 %v528, 7
    %v530 = vsub.s32 0, %v529
    %v531 = vrot.slane %v356, %v530
    %533 = vmatprep.subr.bf16.mxu0 0
    %534 = vmatpush1.bf16.msra.mxu0 %v525
    %535 = vmatprep.subr.bf16.mxu0 0
    %536 = vmatpush1.bf16.msra.mxu0 %v526
    %537 = vmatprep.subr.bf16.mxu0 0
    %538 = vmatpush1.bf16.msra.mxu0 0
    %539 = vmatprep.subr.bf16.mxu0 0
    %540 = vmatpush1.bf16.msra.mxu0 0
    %541 = vmatprep.subr.bf16.mxu0 0
    %542 = vmatpush1.bf16.msra.mxu0 0
    %543 = vmatprep.subr.bf16.mxu0 0
    %544 = vmatpush1.bf16.msra.mxu0 0
    %545 = vmatprep.subr.bf16.mxu0 0
    %546 = vmatpush1.bf16.msra.mxu0 0
    %547 = vmatprep.subr.bf16.mxu0 0
    %548 = vmatpush1.bf16.msra.mxu0 0
    %549 = vmatprep.subr.bf16.mxu0 0
    %550 = vmatpush1.bf16.msra.mxu0 0
    %551 = vmatprep.subr.bf16.mxu0 0
    %552 = vmatpush1.bf16.msra.mxu0 0
    %553 = vmatprep.subr.bf16.mxu0 0
    %554 = vmatpush1.bf16.msra.mxu0 0
    %555 = vmatprep.subr.bf16.mxu0 0
    %556 = vmatpush1.bf16.msra.mxu0 0
    %557 = vmatprep.subr.bf16.mxu0 0
    %558 = vmatpush1.bf16.msra.mxu0 0
    %559 = vmatprep.subr.bf16.mxu0 0
    %560 = vmatpush1.bf16.msra.mxu0 0
    %561 = vmatprep.subr.bf16.mxu0 0
    %562 = vmatpush1.bf16.msra.mxu0 0
    %563 = vmatprep.subr.bf16.mxu0 0
    %564 = vmatpush1.bf16.msra.mxu0 0
    %565 = vmatprep.mubr.bf16.mxu0 0
    %566 = vmatmul.mubr.bf16.gmra.mrb[0].mxu0 %v433
    %v567 = vpop.f32.mrb[0].mxu0
    %v568 = vadd.f32 %v531, %v567
    %v569 = vpop.f32.mrb[0].mxu0
    %v570 = vpop.f32.mrb[0].mxu0
    %v571 = vadd.f32 %v531, %v570
    %v572 = vpop.f32.mrb[0].mxu0
    %573 = vdwg.mxu0
    %v574 = vpack.c.bf16 %v470, %v470
    %v575 = vpack.c.bf16 %v473, %v473
    %v576 = vpack.c.bf16 %v519, %v519
    %v577 = vpack.c.bf16 %v522, %v522
    %vm578 = vcmask 130048
    %v580 = vsel %vm578, %v574, 0
    %v583 = vsel %vm578, %v576, 0
    %585 = vmatprep.subr.bf16.mxu0 0
    %586 = vmatpush1.bf16.xpose.msra.mxu0 %v583
    %587 = vmatprep.subr.bf16.mxu0 0
    %588 = vmatpush1.bf16.xpose.msra.mxu0 0
    %589 = vmatprep.subr.bf16.mxu0 0
    %590 = vmatpush1.bf16.xpose.msra.mxu0 0
    %591 = vmatprep.subr.bf16.mxu0 0
    %592 = vmatpush1.bf16.xpose.msra.mxu0 0
    %593 = vmatprep.subr.bf16.mxu0 0
    %594 = vmatpush1.bf16.xpose.msra.mxu0 0
    %595 = vmatprep.subr.bf16.mxu0 0
    %596 = vmatpush1.bf16.xpose.msra.mxu0 0
    %597 = vmatprep.subr.bf16.mxu0 0
    %598 = vmatpush1.bf16.xpose.msra.mxu0 0
    %599 = vmatprep.subr.bf16.mxu0 0
    %600 = vmatpush1.bf16.xpose.msra.mxu0 0
    %601 = vmatprep.subr.bf16.mxu0 0
    %602 = vmatpush1.bf16.xpose.msra.mxu0 0
    %603 = vmatprep.subr.bf16.mxu0 0
    %604 = vmatpush1.bf16.xpose.msra.mxu0 0
    %605 = vmatprep.subr.bf16.mxu0 0
    %606 = vmatpush1.bf16.xpose.msra.mxu0 0
    %607 = vmatprep.subr.bf16.mxu0 0
    %608 = vmatpush1.bf16.xpose.msra.mxu0 0
    %609 = vmatprep.subr.bf16.mxu0 0
    %610 = vmatpush1.bf16.xpose.msra.mxu0 0
    %611 = vmatprep.subr.bf16.mxu0 0
    %612 = vmatpush1.bf16.xpose.msra.mxu0 0
    %613 = vmatprep.subr.bf16.mxu0 0
    %614 = vmatpush1.bf16.xpose.msra.mxu0 0
    %615 = vmatprep.subr.bf16.mxu0 0
    %616 = vmatpush1.bf16.xpose.msra.mxu0 0
    %617 = vmatprep.mubr.bf16.mxu0 0
    %618 = vmatmul.mubr.bf16.gmra.mrb[0].mxu0 %v580
    %v619 = vpop.f32.mrb[0].mxu0
    %v620 = vadd.f32 0.0, %v619
    %v621 = vpop.f32.mrb[0].mxu0
    %v622 = vpop.f32.mrb[0].mxu0
    %v623 = vpop.f32.mrb[0].mxu0
    %624 = vdwg.mxu0
    %v626 = vsel %vm578, %v575, 0
    %v629 = vsel %vm578, %v577, 0
    %631 = vmatprep.subr.bf16.mxu0 0
    %632 = vmatpush1.bf16.xpose.msra.mxu0 %v629
    %633 = vmatprep.subr.bf16.mxu0 0
    %634 = vmatpush1.bf16.xpose.msra.mxu0 0
    %635 = vmatprep.subr.bf16.mxu0 0
    %636 = vmatpush1.bf16.xpose.msra.mxu0 0
    %637 = vmatprep.subr.bf16.mxu0 0
    %638 = vmatpush1.bf16.xpose.msra.mxu0 0
    %639 = vmatprep.subr.bf16.mxu0 0
    %640 = vmatpush1.bf16.xpose.msra.mxu0 0
    %641 = vmatprep.subr.bf16.mxu0 0
    %642 = vmatpush1.bf16.xpose.msra.mxu0 0
    %643 = vmatprep.subr.bf16.mxu0 0
    %644 = vmatpush1.bf16.xpose.msra.mxu0 0
    %645 = vmatprep.subr.bf16.mxu0 0
    %646 = vmatpush1.bf16.xpose.msra.mxu0 0
    %647 = vmatprep.subr.bf16.mxu0 0
    %648 = vmatpush1.bf16.xpose.msra.mxu0 0
    %649 = vmatprep.subr.bf16.mxu0 0
    %650 = vmatpush1.bf16.xpose.msra.mxu0 0
    %651 = vmatprep.subr.bf16.mxu0 0
    %652 = vmatpush1.bf16.xpose.msra.mxu0 0
    %653 = vmatprep.subr.bf16.mxu0 0
    %654 = vmatpush1.bf16.xpose.msra.mxu0 0
    %655 = vmatprep.subr.bf16.mxu0 0
    %656 = vmatpush1.bf16.xpose.msra.mxu0 0
    %657 = vmatprep.subr.bf16.mxu0 0
    %658 = vmatpush1.bf16.xpose.msra.mxu0 0
    %659 = vmatprep.subr.bf16.mxu0 0
    %660 = vmatpush1.bf16.xpose.msra.mxu0 0
    %661 = vmatprep.subr.bf16.mxu0 0
    %662 = vmatpush1.bf16.xpose.msra.mxu0 0
    %663 = vmatprep.mubr.bf16.mxu0 0
    %664 = vmatmul.mubr.bf16.gmra.mrb[0].mxu0 %v626
    %v665 = vpop.f32.mrb[0].mxu0
    %v666 = vadd.f32 0.0, %v665
    %v667 = vpop.f32.mrb[0].mxu0
    %v668 = vpop.f32.mrb[0].mxu0
    %v669 = vpop.f32.mrb[0].mxu0
    %670 = vdwg.mxu0
    %v671 = vmul.f32 %v620, 0.25
    %v672 = vmul.f32 %v666, 0.25
    %v673 = vsel %vm325, %v671, -1e+30
    %v674 = vsel %vm325, %v672, -1e+30
    %vm675 = vcmask 64512
    %v676 = vsel %vm675, %v673, -inf
    %677 = vmax.xlane.f32.xlu0 %v676
    %v678 = vpop.xlane.xlu0 %677
    %v679 = vsel %vm675, %v674, -inf
    %680 = vmax.xlane.f32.xlu0 %v679
    %v681 = vpop.xlane.xlu0 %680
    %v682 = vsub.f32 %v673, %v678
    %v683 = vsub.f32 %v674, %v681
    %v684 = vmul.f32 %v682, 1.442695
    %v685 = vpow.pop %v684
    %v686 = vmul.f32 %v683, 1.442695
    %v687 = vpow.pop %v686
    %v688 = vsel %vm675, %v685, 0.0
    %689 = vadd.xlane.f32.xlu0 %v688
    %v690 = vpop.xlane.xlu0 %689
    %v691 = vsel %vm675, %v687, 0.0
    %692 = vadd.xlane.f32.xlu0 %v691
    %v693 = vpop.xlane.xlu0 %692
    %v694 = vrcp.pop %v690
    %v695 = vrcp.pop %v693
    %v696 = vmul.f32 %v685, %v694
    %v697 = vmul.f32 %v687, %v695
    %v698 = vpack.c.bf16 %v696, %v696
    %v699 = vpack.c.bf16 %v697, %v697
    %v700 = vpack.c.bf16 %v568, %v568
    %v701 = vpack.c.bf16 %v571, %v571
    %v703 = vsel %vm675, %v698, 0
    %vm705 = vcmask 1043456
    %v707 = vsel %vm705, %v700, 0
    %709 = vmatprep.subr.bf16.mxu0 0
    %710 = vmatpush1.bf16.msra.mxu0 %v707
    %711 = vmatprep.subr.bf16.mxu0 0
    %712 = vmatpush1.bf16.msra.mxu0 0
    %713 = vmatprep.subr.bf16.mxu0 0
    %714 = vmatpush1.bf16.msra.mxu0 0
    %715 = vmatprep.subr.bf16.mxu0 0
    %716 = vmatpush1.bf16.msra.mxu0 0
    %717 = vmatprep.subr.bf16.mxu0 0
    %718 = vmatpush1.bf16.msra.mxu0 0
    %719 = vmatprep.subr.bf16.mxu0 0
    %720 = vmatpush1.bf16.msra.mxu0 0
    %721 = vmatprep.subr.bf16.mxu0 0
    %722 = vmatpush1.bf16.msra.mxu0 0
    %723 = vmatprep.subr.bf16.mxu0 0
    %724 = vmatpush1.bf16.msra.mxu0 0
    %725 = vmatprep.subr.bf16.mxu0 0
    %726 = vmatpush1.bf16.msra.mxu0 0
    %727 = vmatprep.subr.bf16.mxu0 0
    %728 = vmatpush1.bf16.msra.mxu0 0
    %729 = vmatprep.subr.bf16.mxu0 0
    %730 = vmatpush1.bf16.msra.mxu0 0
    %731 = vmatprep.subr.bf16.mxu0 0
    %732 = vmatpush1.bf16.msra.mxu0 0
    %733 = vmatprep.subr.bf16.mxu0 0
    %734 = vmatpush1.bf16.msra.mxu0 0
    %735 = vmatprep.subr.bf16.mxu0 0
    %736 = vmatpush1.bf16.msra.mxu0 0
    %737 = vmatprep.subr.bf16.mxu0 0
    %738 = vmatpush1.bf16.msra.mxu0 0
    %739 = vmatprep.subr.bf16.mxu0 0
    %740 = vmatpush1.bf16.msra.mxu0 0
    %741 = vmatprep.mubr.bf16.mxu0 0
    %742 = vmatmul.mubr.bf16.gmra.mrb[0].mxu0 %v703
    %v743 = vpop.f32.mrb[0].mxu0
    %v744 = vadd.f32 0.0, %v743
    %v745 = vpop.f32.mrb[0].mxu0
    %v746 = vpop.f32.mrb[0].mxu0
    %v747 = vpop.f32.mrb[0].mxu0
    %748 = vdwg.mxu0
    %v750 = vsel %vm675, %v699, 0
    %v753 = vsel %vm705, %v701, 0
    %755 = vmatprep.subr.bf16.mxu0 0
    %756 = vmatpush1.bf16.msra.mxu0 %v753
    %757 = vmatprep.subr.bf16.mxu0 0
    %758 = vmatpush1.bf16.msra.mxu0 0
    %759 = vmatprep.subr.bf16.mxu0 0
    %760 = vmatpush1.bf16.msra.mxu0 0
    %761 = vmatprep.subr.bf16.mxu0 0
    %762 = vmatpush1.bf16.msra.mxu0 0
    %763 = vmatprep.subr.bf16.mxu0 0
    %764 = vmatpush1.bf16.msra.mxu0 0
    %765 = vmatprep.subr.bf16.mxu0 0
    %766 = vmatpush1.bf16.msra.mxu0 0
    %767 = vmatprep.subr.bf16.mxu0 0
    %768 = vmatpush1.bf16.msra.mxu0 0
    %769 = vmatprep.subr.bf16.mxu0 0
    %770 = vmatpush1.bf16.msra.mxu0 0
    %771 = vmatprep.subr.bf16.mxu0 0
    %772 = vmatpush1.bf16.msra.mxu0 0
    %773 = vmatprep.subr.bf16.mxu0 0
    %774 = vmatpush1.bf16.msra.mxu0 0
    %775 = vmatprep.subr.bf16.mxu0 0
    %776 = vmatpush1.bf16.msra.mxu0 0
    %777 = vmatprep.subr.bf16.mxu0 0
    %778 = vmatpush1.bf16.msra.mxu0 0
    %779 = vmatprep.subr.bf16.mxu0 0
    %780 = vmatpush1.bf16.msra.mxu0 0
    %781 = vmatprep.subr.bf16.mxu0 0
    %782 = vmatpush1.bf16.msra.mxu0 0
    %783 = vmatprep.subr.bf16.mxu0 0
    %784 = vmatpush1.bf16.msra.mxu0 0
    %785 = vmatprep.subr.bf16.mxu0 0
    %786 = vmatpush1.bf16.msra.mxu0 0
    %787 = vmatprep.mubr.bf16.mxu0 0
    %788 = vmatmul.mubr.bf16.gmra.mrb[0].mxu0 %v750
    %v789 = vpop.f32.mrb[0].mxu0
    %v790 = vadd.f32 0.0, %v789
    %v791 = vpop.f32.mrb[0].mxu0
    %v792 = vpop.f32.mrb[0].mxu0
    %v793 = vpop.f32.mrb[0].mxu0
    %794 = vdwg.mxu0
    %v795 = vpack.c.bf16 %v790, %v744
    %v796 = vpack.c.bf16 %v359, %v358
    %v797 = vpack.c.bf16 %v333, %v332
    %v798 = vpack.c.bf16 %v335, %v334
    %v800 = vlaneseq
    %v801 = vshrl.u32 %v800, 7
    %v802 = vsub.s32 0, %v801
    %v803 = vrot.slane %v353, %v802
    %805 = vmatprep.subr.bf16.mxu0 0
    %806 = vmatpush1.bf16.msra.mxu0 %v797
    %807 = vmatprep.subr.bf16.mxu0 0
    %808 = vmatpush1.bf16.msra.mxu0 %v798
    %809 = vmatprep.subr.bf16.mxu0 0
    %810 = vmatpush1.bf16.msra.mxu0 0
    %811 = vmatprep.subr.bf16.mxu0 0
    %812 = vmatpush1.bf16.msra.mxu0 0
    %813 = vmatprep.subr.bf16.mxu0 0
    %814 = vmatpush1.bf16.msra.mxu0 0
    %815 = vmatprep.subr.bf16.mxu0 0
    %816 = vmatpush1.bf16.msra.mxu0 0
    %817 = vmatprep.subr.bf16.mxu0 0
    %818 = vmatpush1.bf16.msra.mxu0 0
    %819 = vmatprep.subr.bf16.mxu0 0
    %820 = vmatpush1.bf16.msra.mxu0 0
    %821 = vmatprep.subr.bf16.mxu0 0
    %822 = vmatpush1.bf16.msra.mxu0 0
    %823 = vmatprep.subr.bf16.mxu0 0
    %824 = vmatpush1.bf16.msra.mxu0 0
    %825 = vmatprep.subr.bf16.mxu0 0
    %826 = vmatpush1.bf16.msra.mxu0 0
    %827 = vmatprep.subr.bf16.mxu0 0
    %828 = vmatpush1.bf16.msra.mxu0 0
    %829 = vmatprep.subr.bf16.mxu0 0
    %830 = vmatpush1.bf16.msra.mxu0 0
    %831 = vmatprep.subr.bf16.mxu0 0
    %832 = vmatpush1.bf16.msra.mxu0 0
    %833 = vmatprep.subr.bf16.mxu0 0
    %834 = vmatpush1.bf16.msra.mxu0 0
    %835 = vmatprep.subr.bf16.mxu0 0
    %836 = vmatpush1.bf16.msra.mxu0 0
    %837 = vmatprep.mubr.bf16.mxu0 0
    %838 = vmatmul.mubr.bf16.gmra.mrb[0].mxu0 %v433
    %v839 = vpop.f32.mrb[0].mxu0
    %v840 = vadd.f32 %v803, %v839
    %v841 = vpop.f32.mrb[0].mxu0
    %v842 = vpop.f32.mrb[0].mxu0
    %v843 = vadd.f32 %v803, %v842
    %v844 = vpop.f32.mrb[0].mxu0
    %845 = vdwg.mxu0
    %v846 = vpack.c.bf16 %v341, %v340
    %v847 = vpack.c.bf16 %v343, %v342
    %v849 = vlaneseq
    %v850 = vshrl.u32 %v849, 7
    %v851 = vsub.s32 0, %v850
    %v852 = vrot.slane %v355, %v851
    %854 = vmatprep.subr.bf16.mxu0 0
    %855 = vmatpush1.bf16.msra.mxu0 %v846
    %856 = vmatprep.subr.bf16.mxu0 0
    %857 = vmatpush1.bf16.msra.mxu0 %v847
    %858 = vmatprep.subr.bf16.mxu0 0
    %859 = vmatpush1.bf16.msra.mxu0 0
    %860 = vmatprep.subr.bf16.mxu0 0
    %861 = vmatpush1.bf16.msra.mxu0 0
    %862 = vmatprep.subr.bf16.mxu0 0
    %863 = vmatpush1.bf16.msra.mxu0 0
    %864 = vmatprep.subr.bf16.mxu0 0
    %865 = vmatpush1.bf16.msra.mxu0 0
    %866 = vmatprep.subr.bf16.mxu0 0
    %867 = vmatpush1.bf16.msra.mxu0 0
    %868 = vmatprep.subr.bf16.mxu0 0
    %869 = vmatpush1.bf16.msra.mxu0 0
    %870 = vmatprep.subr.bf16.mxu0 0
    %871 = vmatpush1.bf16.msra.mxu0 0
    %872 = vmatprep.subr.bf16.mxu0 0
    %873 = vmatpush1.bf16.msra.mxu0 0
    %874 = vmatprep.subr.bf16.mxu0 0
    %875 = vmatpush1.bf16.msra.mxu0 0
    %876 = vmatprep.subr.bf16.mxu0 0
    %877 = vmatpush1.bf16.msra.mxu0 0
    %878 = vmatprep.subr.bf16.mxu0 0
    %879 = vmatpush1.bf16.msra.mxu0 0
    %880 = vmatprep.subr.bf16.mxu0 0
    %881 = vmatpush1.bf16.msra.mxu0 0
    %882 = vmatprep.subr.bf16.mxu0 0
    %883 = vmatpush1.bf16.msra.mxu0 0
    %884 = vmatprep.subr.bf16.mxu0 0
    %885 = vmatpush1.bf16.msra.mxu0 0
    %886 = vmatprep.mubr.bf16.mxu0 0
    %887 = vmatmul.mubr.bf16.gmra.mrb[0].mxu0 %v433
    %v888 = vpop.f32.mrb[0].mxu0
    %v889 = vadd.f32 %v852, %v888
    %v890 = vpop.f32.mrb[0].mxu0
    %v891 = vpop.f32.mrb[0].mxu0
    %v892 = vadd.f32 %v852, %v891
    %v893 = vpop.f32.mrb[0].mxu0
    %894 = vdwg.mxu0
    %v895 = vpack.c.bf16 %v349, %v348
    %v896 = vpack.c.bf16 %v351, %v350
    %v898 = vlaneseq
    %v899 = vshrl.u32 %v898, 7
    %v900 = vsub.s32 0, %v899
    %v901 = vrot.slane %v357, %v900
    %903 = vmatprep.subr.bf16.mxu0 0
    %904 = vmatpush1.bf16.msra.mxu0 %v895
    %905 = vmatprep.subr.bf16.mxu0 0
    %906 = vmatpush1.bf16.msra.mxu0 %v896
    %907 = vmatprep.subr.bf16.mxu0 0
    %908 = vmatpush1.bf16.msra.mxu0 0
    %909 = vmatprep.subr.bf16.mxu0 0
    %910 = vmatpush1.bf16.msra.mxu0 0
    %911 = vmatprep.subr.bf16.mxu0 0
    %912 = vmatpush1.bf16.msra.mxu0 0
    %913 = vmatprep.subr.bf16.mxu0 0
    %914 = vmatpush1.bf16.msra.mxu0 0
    %915 = vmatprep.subr.bf16.mxu0 0
    %916 = vmatpush1.bf16.msra.mxu0 0
    %917 = vmatprep.subr.bf16.mxu0 0
    %918 = vmatpush1.bf16.msra.mxu0 0
    %919 = vmatprep.subr.bf16.mxu0 0
    %920 = vmatpush1.bf16.msra.mxu0 0
    %921 = vmatprep.subr.bf16.mxu0 0
    %922 = vmatpush1.bf16.msra.mxu0 0
    %923 = vmatprep.subr.bf16.mxu0 0
    %924 = vmatpush1.bf16.msra.mxu0 0
    %925 = vmatprep.subr.bf16.mxu0 0
    %926 = vmatpush1.bf16.msra.mxu0 0
    %927 = vmatprep.subr.bf16.mxu0 0
    %928 = vmatpush1.bf16.msra.mxu0 0
    %929 = vmatprep.subr.bf16.mxu0 0
    %930 = vmatpush1.bf16.msra.mxu0 0
    %931 = vmatprep.subr.bf16.mxu0 0
    %932 = vmatpush1.bf16.msra.mxu0 0
    %933 = vmatprep.subr.bf16.mxu0 0
    %934 = vmatpush1.bf16.msra.mxu0 0
    %935 = vmatprep.mubr.bf16.mxu0 0
    %936 = vmatmul.mubr.bf16.gmra.mrb[0].mxu0 %v433
    %v937 = vpop.f32.mrb[0].mxu0
    %v938 = vadd.f32 %v901, %v937
    %v939 = vpop.f32.mrb[0].mxu0
    %v940 = vpop.f32.mrb[0].mxu0
    %v941 = vadd.f32 %v901, %v940
    %v942 = vpop.f32.mrb[0].mxu0
    %943 = vdwg.mxu0
    %v944 = vpack.c.bf16 %v840, %v840
    %v945 = vpack.c.bf16 %v843, %v843
    %v946 = vpack.c.bf16 %v889, %v889
    %v947 = vpack.c.bf16 %v892, %v892
    %v949 = vsel %vm578, %v944, 0
    %v952 = vsel %vm578, %v946, 0
    %954 = vmatprep.subr.bf16.mxu0 0
    %955 = vmatpush1.bf16.xpose.msra.mxu0 %v952
    %956 = vmatprep.subr.bf16.mxu0 0
    %957 = vmatpush1.bf16.xpose.msra.mxu0 0
    %958 = vmatprep.subr.bf16.mxu0 0
    %959 = vmatpush1.bf16.xpose.msra.mxu0 0
    %960 = vmatprep.subr.bf16.mxu0 0
    %961 = vmatpush1.bf16.xpose.msra.mxu0 0
    %962 = vmatprep.subr.bf16.mxu0 0
    %963 = vmatpush1.bf16.xpose.msra.mxu0 0
    %964 = vmatprep.subr.bf16.mxu0 0
    %965 = vmatpush1.bf16.xpose.msra.mxu0 0
    %966 = vmatprep.subr.bf16.mxu0 0
    %967 = vmatpush1.bf16.xpose.msra.mxu0 0
    %968 = vmatprep.subr.bf16.mxu0 0
    %969 = vmatpush1.bf16.xpose.msra.mxu0 0
    %970 = vmatprep.subr.bf16.mxu0 0
    %971 = vmatpush1.bf16.xpose.msra.mxu0 0
    %972 = vmatprep.subr.bf16.mxu0 0
    %973 = vmatpush1.bf16.xpose.msra.mxu0 0
    %974 = vmatprep.subr.bf16.mxu0 0
    %975 = vmatpush1.bf16.xpose.msra.mxu0 0
    %976 = vmatprep.subr.bf16.mxu0 0
    %977 = vmatpush1.bf16.xpose.msra.mxu0 0
    %978 = vmatprep.subr.bf16.mxu0 0
    %979 = vmatpush1.bf16.xpose.msra.mxu0 0
    %980 = vmatprep.subr.bf16.mxu0 0
    %981 = vmatpush1.bf16.xpose.msra.mxu0 0
    %982 = vmatprep.subr.bf16.mxu0 0
    %983 = vmatpush1.bf16.xpose.msra.mxu0 0
    %984 = vmatprep.subr.bf16.mxu0 0
    %985 = vmatpush1.bf16.xpose.msra.mxu0 0
    %986 = vmatprep.mubr.bf16.mxu0 0
    %987 = vmatmul.mubr.bf16.gmra.mrb[0].mxu0 %v949
    %v988 = vpop.f32.mrb[0].mxu0
    %v989 = vadd.f32 0.0, %v988
    %v990 = vpop.f32.mrb[0].mxu0
    %v991 = vpop.f32.mrb[0].mxu0
    %v992 = vpop.f32.mrb[0].mxu0
    %993 = vdwg.mxu0
    %v995 = vsel %vm578, %v945, 0
    %v998 = vsel %vm578, %v947, 0
    %1000 = vmatprep.subr.bf16.mxu0 0
    %1001 = vmatpush1.bf16.xpose.msra.mxu0 %v998
    %1002 = vmatprep.subr.bf16.mxu0 0
    %1003 = vmatpush1.bf16.xpose.msra.mxu0 0
    %1004 = vmatprep.subr.bf16.mxu0 0
    %1005 = vmatpush1.bf16.xpose.msra.mxu0 0
    %1006 = vmatprep.subr.bf16.mxu0 0
    %1007 = vmatpush1.bf16.xpose.msra.mxu0 0
    %1008 = vmatprep.subr.bf16.mxu0 0
    %1009 = vmatpush1.bf16.xpose.msra.mxu0 0
    %1010 = vmatprep.subr.bf16.mxu0 0
    %1011 = vmatpush1.bf16.xpose.msra.mxu0 0
    %1012 = vmatprep.subr.bf16.mxu0 0
    %1013 = vmatpush1.bf16.xpose.msra.mxu0 0
    %1014 = vmatprep.subr.bf16.mxu0 0
    %1015 = vmatpush1.bf16.xpose.msra.mxu0 0
    %1016 = vmatprep.subr.bf16.mxu0 0
    %1017 = vmatpush1.bf16.xpose.msra.mxu0 0
    %1018 = vmatprep.subr.bf16.mxu0 0
    %1019 = vmatpush1.bf16.xpose.msra.mxu0 0
    %1020 = vmatprep.subr.bf16.mxu0 0
    %1021 = vmatpush1.bf16.xpose.msra.mxu0 0
    %1022 = vmatprep.subr.bf16.mxu0 0
    %1023 = vmatpush1.bf16.xpose.msra.mxu0 0
    %1024 = vmatprep.subr.bf16.mxu0 0
    %1025 = vmatpush1.bf16.xpose.msra.mxu0 0
    %1026 = vmatprep.subr.bf16.mxu0 0
    %1027 = vmatpush1.bf16.xpose.msra.mxu0 0
    %1028 = vmatprep.subr.bf16.mxu0 0
    %1029 = vmatpush1.bf16.xpose.msra.mxu0 0
    %1030 = vmatprep.subr.bf16.mxu0 0
    %1031 = vmatpush1.bf16.xpose.msra.mxu0 0
    %1032 = vmatprep.mubr.bf16.mxu0 0
    %1033 = vmatmul.mubr.bf16.gmra.mrb[0].mxu0 %v995
    %v1034 = vpop.f32.mrb[0].mxu0
    %v1035 = vadd.f32 0.0, %v1034
    %v1036 = vpop.f32.mrb[0].mxu0
    %v1037 = vpop.f32.mrb[0].mxu0
    %v1038 = vpop.f32.mrb[0].mxu0
    %1039 = vdwg.mxu0
    %v1040 = vmul.f32 %v989, 0.25
    %v1041 = vmul.f32 %v1035, 0.25
    %v1042 = vsel %vm325, %v1040, -1e+30
    %v1043 = vsel %vm325, %v1041, -1e+30
    %v1044 = vsel %vm675, %v1042, -inf
    %1045 = vmax.xlane.f32.xlu0 %v1044
    %v1046 = vpop.xlane.xlu0 %1045
    %v1047 = vsel %vm675, %v1043, -inf
    %1048 = vmax.xlane.f32.xlu0 %v1047
    %v1049 = vpop.xlane.xlu0 %1048
    %v1050 = vsub.f32 %v1042, %v1046
    %v1051 = vsub.f32 %v1043, %v1049
    %v1052 = vmul.f32 %v1050, 1.442695
    %v1053 = vpow.pop %v1052
    %v1054 = vmul.f32 %v1051, 1.442695
    %v1055 = vpow.pop %v1054
    %v1056 = vsel %vm675, %v1053, 0.0
    %1057 = vadd.xlane.f32.xlu0 %v1056
    %v1058 = vpop.xlane.xlu0 %1057
    %v1059 = vsel %vm675, %v1055, 0.0
    %1060 = vadd.xlane.f32.xlu0 %v1059
    %v1061 = vpop.xlane.xlu0 %1060
    %v1062 = vrcp.pop %v1058
    %v1063 = vrcp.pop %v1061
    %v1064 = vmul.f32 %v1053, %v1062
    %v1065 = vmul.f32 %v1055, %v1063
    %v1066 = vpack.c.bf16 %v1064, %v1064
    %v1067 = vpack.c.bf16 %v1065, %v1065
    %v1068 = vpack.c.bf16 %v938, %v938
    %v1069 = vpack.c.bf16 %v941, %v941
    %v1071 = vsel %vm675, %v1066, 0
    %v1074 = vsel %vm705, %v1068, 0
    %1076 = vmatprep.subr.bf16.mxu0 0
    %1077 = vmatpush1.bf16.msra.mxu0 %v1074
    %1078 = vmatprep.subr.bf16.mxu0 0
    %1079 = vmatpush1.bf16.msra.mxu0 0
    %1080 = vmatprep.subr.bf16.mxu0 0
    %1081 = vmatpush1.bf16.msra.mxu0 0
    %1082 = vmatprep.subr.bf16.mxu0 0
    %1083 = vmatpush1.bf16.msra.mxu0 0
    %1084 = vmatprep.subr.bf16.mxu0 0
    %1085 = vmatpush1.bf16.msra.mxu0 0
    %1086 = vmatprep.subr.bf16.mxu0 0
    %1087 = vmatpush1.bf16.msra.mxu0 0
    %1088 = vmatprep.subr.bf16.mxu0 0
    %1089 = vmatpush1.bf16.msra.mxu0 0
    %1090 = vmatprep.subr.bf16.mxu0 0
    %1091 = vmatpush1.bf16.msra.mxu0 0
    %1092 = vmatprep.subr.bf16.mxu0 0
    %1093 = vmatpush1.bf16.msra.mxu0 0
    %1094 = vmatprep.subr.bf16.mxu0 0
    %1095 = vmatpush1.bf16.msra.mxu0 0
    %1096 = vmatprep.subr.bf16.mxu0 0
    %1097 = vmatpush1.bf16.msra.mxu0 0
    %1098 = vmatprep.subr.bf16.mxu0 0
    %1099 = vmatpush1.bf16.msra.mxu0 0
    %1100 = vmatprep.subr.bf16.mxu0 0
    %1101 = vmatpush1.bf16.msra.mxu0 0
    %1102 = vmatprep.subr.bf16.mxu0 0
    %1103 = vmatpush1.bf16.msra.mxu0 0
    %1104 = vmatprep.subr.bf16.mxu0 0
    %1105 = vmatpush1.bf16.msra.mxu0 0
    %1106 = vmatprep.subr.bf16.mxu0 0
    %1107 = vmatpush1.bf16.msra.mxu0 0
    %1108 = vmatprep.mubr.bf16.mxu0 0
    %1109 = vmatmul.mubr.bf16.gmra.mrb[0].mxu0 %v1071
    %v1110 = vpop.f32.mrb[0].mxu0
    %v1111 = vadd.f32 0.0, %v1110
    %v1112 = vpop.f32.mrb[0].mxu0
    %v1113 = vpop.f32.mrb[0].mxu0
    %v1114 = vpop.f32.mrb[0].mxu0
    %1115 = vdwg.mxu0
    %v1117 = vsel %vm675, %v1067, 0
    %v1120 = vsel %vm705, %v1069, 0
    %1122 = vmatprep.subr.bf16.mxu0 0
    %1123 = vmatpush1.bf16.msra.mxu0 %v1120
    %1124 = vmatprep.subr.bf16.mxu0 0
    %1125 = vmatpush1.bf16.msra.mxu0 0
    %1126 = vmatprep.subr.bf16.mxu0 0
    %1127 = vmatpush1.bf16.msra.mxu0 0
    %1128 = vmatprep.subr.bf16.mxu0 0
    %1129 = vmatpush1.bf16.msra.mxu0 0
    %1130 = vmatprep.subr.bf16.mxu0 0
    %1131 = vmatpush1.bf16.msra.mxu0 0
    %1132 = vmatprep.subr.bf16.mxu0 0
    %1133 = vmatpush1.bf16.msra.mxu0 0
    %1134 = vmatprep.subr.bf16.mxu0 0
    %1135 = vmatpush1.bf16.msra.mxu0 0
    %1136 = vmatprep.subr.bf16.mxu0 0
    %1137 = vmatpush1.bf16.msra.mxu0 0
    %1138 = vmatprep.subr.bf16.mxu0 0
    %1139 = vmatpush1.bf16.msra.mxu0 0
    %1140 = vmatprep.subr.bf16.mxu0 0
    %1141 = vmatpush1.bf16.msra.mxu0 0
    %1142 = vmatprep.subr.bf16.mxu0 0
    %1143 = vmatpush1.bf16.msra.mxu0 0
    %1144 = vmatprep.subr.bf16.mxu0 0
    %1145 = vmatpush1.bf16.msra.mxu0 0
    %1146 = vmatprep.subr.bf16.mxu0 0
    %1147 = vmatpush1.bf16.msra.mxu0 0
    %1148 = vmatprep.subr.bf16.mxu0 0
    %1149 = vmatpush1.bf16.msra.mxu0 0
    %1150 = vmatprep.subr.bf16.mxu0 0
    %1151 = vmatpush1.bf16.msra.mxu0 0
    %1152 = vmatprep.subr.bf16.mxu0 0
    %1153 = vmatpush1.bf16.msra.mxu0 0
    %1154 = vmatprep.mubr.bf16.mxu0 0
    %1155 = vmatmul.mubr.bf16.gmra.mrb[0].mxu0 %v1117
    %v1156 = vpop.f32.mrb[0].mxu0
    %v1157 = vadd.f32 0.0, %v1156
    %v1158 = vpop.f32.mrb[0].mxu0
    %v1159 = vpop.f32.mrb[0].mxu0
    %v1160 = vpop.f32.mrb[0].mxu0
    %1161 = vdwg.mxu0
    %v1162 = vpack.c.bf16 %v1157, %v1111
    %v1163 = vpack.c.bf16 %v361, %v360
    %v1165 = vsel %vm578, %v1162, 0
    %1167 = vmatprep.subr.bf16.mxu0 0
    %1168 = vmatpush1.bf16.msra.mxu0 %v1163
    %1169 = vmatprep.subr.bf16.mxu0 0
    %1170 = vmatpush1.bf16.msra.mxu0 0
    %1171 = vmatprep.subr.bf16.mxu0 0
    %1172 = vmatpush1.bf16.msra.mxu0 0
    %1173 = vmatprep.subr.bf16.mxu0 0
    %1174 = vmatpush1.bf16.msra.mxu0 0
    %1175 = vmatprep.subr.bf16.mxu0 0
    %1176 = vmatpush1.bf16.msra.mxu0 0
    %1177 = vmatprep.subr.bf16.mxu0 0
    %1178 = vmatpush1.bf16.msra.mxu0 0
    %1179 = vmatprep.subr.bf16.mxu0 0
    %1180 = vmatpush1.bf16.msra.mxu0 0
    %1181 = vmatprep.subr.bf16.mxu0 0
    %1182 = vmatpush1.bf16.msra.mxu0 0
    %1183 = vmatprep.subr.bf16.mxu0 0
    %1184 = vmatpush1.bf16.msra.mxu0 0
    %1185 = vmatprep.subr.bf16.mxu0 0
    %1186 = vmatpush1.bf16.msra.mxu0 0
    %1187 = vmatprep.subr.bf16.mxu0 0
    %1188 = vmatpush1.bf16.msra.mxu0 0
    %1189 = vmatprep.subr.bf16.mxu0 0
    %1190 = vmatpush1.bf16.msra.mxu0 0
    %1191 = vmatprep.subr.bf16.mxu0 0
    %1192 = vmatpush1.bf16.msra.mxu0 0
    %1193 = vmatprep.subr.bf16.mxu0 0
    %1194 = vmatpush1.bf16.msra.mxu0 0
    %1195 = vmatprep.subr.bf16.mxu0 0
    %1196 = vmatpush1.bf16.msra.mxu0 0
    %1197 = vmatprep.subr.bf16.mxu0 0
    %1198 = vmatpush1.bf16.msra.mxu0 0
    %1199 = vmatprep.mubr.bf16.mxu0 0
    %1200 = vmatmul.mubr.bf16.gmra.mrb[0].mxu0 %v1165
    %v1201 = vpop.f32.mrb[0].mxu0
    %v1202 = vadd.f32 0.0, %v1201
    %v1203 = vpop.f32.mrb[0].mxu0
    %v1204 = vpop.f32.mrb[0].mxu0
    %v1205 = vadd.f32 0.0, %v1204
    %v1206 = vpop.f32.mrb[0].mxu0
    %1207 = vdwg.mxu0
    %v1209 = vsel %vm578, %v795, 0
    %1211 = vmatprep.subr.bf16.mxu0 0
    %1212 = vmatpush1.bf16.msra.mxu0 %v796
    %1213 = vmatprep.subr.bf16.mxu0 0
    %1214 = vmatpush1.bf16.msra.mxu0 0
    %1215 = vmatprep.subr.bf16.mxu0 0
    %1216 = vmatpush1.bf16.msra.mxu0 0
    %1217 = vmatprep.subr.bf16.mxu0 0
    %1218 = vmatpush1.bf16.msra.mxu0 0
    %1219 = vmatprep.subr.bf16.mxu0 0
    %1220 = vmatpush1.bf16.msra.mxu0 0
    %1221 = vmatprep.subr.bf16.mxu0 0
    %1222 = vmatpush1.bf16.msra.mxu0 0
    %1223 = vmatprep.subr.bf16.mxu0 0
    %1224 = vmatpush1.bf16.msra.mxu0 0
    %1225 = vmatprep.subr.bf16.mxu0 0
    %1226 = vmatpush1.bf16.msra.mxu0 0
    %1227 = vmatprep.subr.bf16.mxu0 0
    %1228 = vmatpush1.bf16.msra.mxu0 0
    %1229 = vmatprep.subr.bf16.mxu0 0
    %1230 = vmatpush1.bf16.msra.mxu0 0
    %1231 = vmatprep.subr.bf16.mxu0 0
    %1232 = vmatpush1.bf16.msra.mxu0 0
    %1233 = vmatprep.subr.bf16.mxu0 0
    %1234 = vmatpush1.bf16.msra.mxu0 0
    %1235 = vmatprep.subr.bf16.mxu0 0
    %1236 = vmatpush1.bf16.msra.mxu0 0
    %1237 = vmatprep.subr.bf16.mxu0 0
    %1238 = vmatpush1.bf16.msra.mxu0 0
    %1239 = vmatprep.subr.bf16.mxu0 0
    %1240 = vmatpush1.bf16.msra.mxu0 0
    %1241 = vmatprep.subr.bf16.mxu0 0
    %1242 = vmatpush1.bf16.msra.mxu0 0
    %1243 = vmatprep.mubr.bf16.mxu0 0
    %1244 = vmatmul.mubr.bf16.gmra.mrb[0].mxu0 %v1209
    %v1245 = vpop.f32.mrb[0].mxu0
    %v1246 = vadd.f32 %v1202, %v1245
    %v1247 = vpop.f32.mrb[0].mxu0
    %v1248 = vpop.f32.mrb[0].mxu0
    %v1249 = vadd.f32 %v1205, %v1248
    %v1250 = vpop.f32.mrb[0].mxu0
    %1251 = vdwg.mxu0
    %v1253 = vlaneseq
    %v1254 = vshrl.u32 %v1253, 7
    %v1255 = vsub.s32 0, %v1254
    %v1256 = vrot.slane %v362, %v1255
    %v1258 = vadd.f32 %v1246, %v1256
    %v1259 = vadd.f32 %v1249, %v1256
    %v1260 = vadd.f32 %v319, %v1258
    %v1261 = vadd.f32 %v320, %v1259
    %v1262 = vsel %vm379, %v1260, 0.0
    %1263 = vadd.xlane.f32.xlu0 %v1262
    %v1264 = vpop.xlane.xlu0 %1263
    %v1265 = vsel %vm379, %v1261, 0.0
    %1266 = vadd.xlane.f32.xlu0 %v1265
    %v1267 = vpop.xlane.xlu0 %1266
    %v1268 = vmul.f32 %v1264, %v386
    %v1269 = vmul.f32 %v1267, %v386
    %v1270 = vsub.f32 %v1260, %v1268
    %v1271 = vsub.f32 %v1261, %v1269
    %v1272 = vmul.f32 %v1270, %v1270
    %v1273 = vmul.f32 %v1271, %v1271
    %v1274 = vsel %vm379, %v1272, 0.0
    %1275 = vadd.xlane.f32.xlu0 %v1274
    %v1276 = vpop.xlane.xlu0 %1275
    %v1277 = vsel %vm379, %v1273, 0.0
    %1278 = vadd.xlane.f32.xlu0 %v1277
    %v1279 = vpop.xlane.xlu0 %1278
    %v1280 = vmul.f32 %v1276, %v386
    %v1281 = vmul.f32 %v1279, %v386
    %v1282 = vadd.f32 %v1280, 1e-05
    %v1283 = vadd.f32 %v1281, 1e-05
    %v1284 = vrsqrt.pop %v1282
    %v1285 = vrsqrt.pop %v1283
    %v1286 = vmul.f32 %v1270, %v1284
    %v1287 = vmul.f32 %v1271, %v1285
    %v1289 = vlaneseq
    %v1290 = vshrl.u32 %v1289, 7
    %v1291 = vsub.s32 0, %v1290
    %v1292 = vrot.slane %v363, %v1291
    %v1294 = vmul.f32 %v1286, %v1292
    %v1295 = vmul.f32 %v1287, %v1292
    %v1297 = vlaneseq
    %v1298 = vshrl.u32 %v1297, 7
    %v1299 = vsub.s32 0, %v1298
    %v1300 = vrot.slane %v364, %v1299
    %v1302 = vadd.f32 %v1294, %v1300
    %v1303 = vadd.f32 %v1295, %v1300
    %v1304 = vpack.c.bf16 %v1303, %v1302
    %v1305 = vpack.c.bf16 %v366, %v365
    %v1306 = vpack.c.bf16 %v368, %v367
    %v1308 = vlaneseq
    %v1309 = vshrl.u32 %v1308, 7
    %v1310 = vsub.s32 0, %v1309
    %v1311 = vrot.slane %v369, %v1310
    %v1314 = vsel %vm379, %v1304, 0
    %1316 = vmatprep.subr.bf16.mxu0 0
    %1317 = vmatpush1.bf16.msra.mxu0 %v1305
    %1318 = vmatprep.subr.bf16.mxu0 0
    %1319 = vmatpush1.bf16.msra.mxu0 %v1306
    %1320 = vmatprep.subr.bf16.mxu0 0
    %1321 = vmatpush1.bf16.msra.mxu0 0
    %1322 = vmatprep.subr.bf16.mxu0 0
    %1323 = vmatpush1.bf16.msra.mxu0 0
    %1324 = vmatprep.subr.bf16.mxu0 0
    %1325 = vmatpush1.bf16.msra.mxu0 0
    %1326 = vmatprep.subr.bf16.mxu0 0
    %1327 = vmatpush1.bf16.msra.mxu0 0
    %1328 = vmatprep.subr.bf16.mxu0 0
    %1329 = vmatpush1.bf16.msra.mxu0 0
    %1330 = vmatprep.subr.bf16.mxu0 0
    %1331 = vmatpush1.bf16.msra.mxu0 0
    %1332 = vmatprep.subr.bf16.mxu0 0
    %1333 = vmatpush1.bf16.msra.mxu0 0
    %1334 = vmatprep.subr.bf16.mxu0 0
    %1335 = vmatpush1.bf16.msra.mxu0 0
    %1336 = vmatprep.subr.bf16.mxu0 0
    %1337 = vmatpush1.bf16.msra.mxu0 0
    %1338 = vmatprep.subr.bf16.mxu0 0
    %1339 = vmatpush1.bf16.msra.mxu0 0
    %1340 = vmatprep.subr.bf16.mxu0 0
    %1341 = vmatpush1.bf16.msra.mxu0 0
    %1342 = vmatprep.subr.bf16.mxu0 0
    %1343 = vmatpush1.bf16.msra.mxu0 0
    %1344 = vmatprep.subr.bf16.mxu0 0
    %1345 = vmatpush1.bf16.msra.mxu0 0
    %1346 = vmatprep.subr.bf16.mxu0 0
    %1347 = vmatpush1.bf16.msra.mxu0 0
    %1348 = vmatprep.mubr.bf16.mxu0 0
    %1349 = vmatmul.mubr.bf16.gmra.mrb[0].mxu0 %v1314
    %v1350 = vpop.f32.mrb[0].mxu0
    %v1351 = vadd.f32 %v1311, %v1350
    %v1352 = vpop.f32.mrb[0].mxu0
    %v1353 = vpop.f32.mrb[0].mxu0
    %v1354 = vadd.f32 %v1311, %v1353
    %v1355 = vpop.f32.mrb[0].mxu0
    %1356 = vdwg.mxu0
    %v1357 = vmul.f32 %v1351, %v1351
    %v1358 = vmul.f32 %v1354, %v1354
    %v1359 = vmul.f32 %v1351, %v1357
    %v1360 = vmul.f32 %v1354, %v1358
    %v1361 = vmul.f32 %v1359, 0.044715
    %v1362 = vmul.f32 %v1360, 0.044715
    %v1363 = vadd.f32 %v1351, %v1361
    %v1364 = vadd.f32 %v1354, %v1362
    %v1365 = vmul.f32 %v1363, 0.7978846
    %v1366 = vmul.f32 %v1364, 0.7978846
    %v1367 = vtanh.pop %v1365
    %v1368 = vtanh.pop %v1366
    %v1369 = vadd.f32 %v1367, 1.0
    %v1370 = vadd.f32 %v1368, 1.0
    %v1371 = vmul.f32 %v1369, 0.5
    %v1372 = vmul.f32 %v1370, 0.5
    %v1373 = vmul.f32 %v1351, %v1371
    %v1374 = vmul.f32 %v1354, %v1372
    %v1375 = vpack.c.bf16 %v1374, %v1373
    %v1376 = vpack.c.bf16 %v371, %v370
    %v1377 = vpack.c.bf16 %v373, %v372
    %v1378 = vpack.c.bf16 %v375, %v374
    %v1379 = vpack.c.bf16 %v377, %v376
    %v1381 = vsel %vm256, %v1375, 0
    %1383 = vmatprep.subr.bf16.mxu0 0
    %1384 = vmatpush1.bf16.msra.mxu0 %v1376
    %1385 = vmatprep.subr.bf16.mxu0 0
    %1386 = vmatpush1.bf16.msra.mxu0 %v1377
    %1387 = vmatprep.subr.bf16.mxu0 0
    %1388 = vmatpush1.bf16.msra.mxu0 %v1378
    %1389 = vmatprep.subr.bf16.mxu0 0
    %1390 = vmatpush1.bf16.msra.mxu0 %v1379
    %1391 = vmatprep.subr.bf16.mxu0 0
    %1392 = vmatpush1.bf16.msra.mxu0 0
    %1393 = vmatprep.subr.bf16.mxu0 0
    %1394 = vmatpush1.bf16.msra.mxu0 0
    %1395 = vmatprep.subr.bf16.mxu0 0
    %1396 = vmatpush1.bf16.msra.mxu0 0
    %1397 = vmatprep.subr.bf16.mxu0 0
    %1398 = vmatpush1.bf16.msra.mxu0 0
    %1399 = vmatprep.subr.bf16.mxu0 0
    %1400 = vmatpush1.bf16.msra.mxu0 0
    %1401 = vmatprep.subr.bf16.mxu0 0
    %1402 = vmatpush1.bf16.msra.mxu0 0
    %1403 = vmatprep.subr.bf16.mxu0 0
    %1404 = vmatpush1.bf16.msra.mxu0 0
    %1405 = vmatprep.subr.bf16.mxu0 0
    %1406 = vmatpush1.bf16.msra.mxu0 0
    %1407 = vmatprep.subr.bf16.mxu0 0
    %1408 = vmatpush1.bf16.msra.mxu0 0
    %1409 = vmatprep.subr.bf16.mxu0 0
    %1410 = vmatpush1.bf16.msra.mxu0 0
    %1411 = vmatprep.subr.bf16.mxu0 0
    %1412 = vmatpush1.bf16.msra.mxu0 0
    %1413 = vmatprep.subr.bf16.mxu0 0
    %1414 = vmatpush1.bf16.msra.mxu0 0
    %1415 = vmatprep.mubr.bf16.mxu0 0
    %1416 = vmatmul.mubr.bf16.gmra.mrb[0].mxu0 %v1381
    %v1417 = vpop.f32.mrb[0].mxu0
    %v1418 = vadd.f32 0.0, %v1417
    %v1419 = vpop.f32.mrb[0].mxu0
    %v1420 = vpop.f32.mrb[0].mxu0
    %v1421 = vadd.f32 0.0, %v1420
    %v1422 = vpop.f32.mrb[0].mxu0
    %1423 = vdwg.mxu0
    %v1424 = vadd.f32 %v1260, %v1418
    %v1425 = vadd.f32 %v1261, %v1421
    %v1427 = vlaneseq
    %v1428 = vshrl.u32 %v1427, 7
    %v1429 = vsub.s32 0, %v1428
    %v1430 = vrot.slane %v378, %v1429
    %v1432 = vadd.f32 %v1424, %v1430
    %v1433 = vadd.f32 %v1425, %v1430
    %v1434 = vld [vmem:[%s43] sm:$0x1]
    %v1435 = vld [vmem:[%s45] sm:$0x1]
    %v1436 = vsel %vm379, %v1432, 0.0
    %1437 = vadd.xlane.f32.xlu0 %v1436
    %v1438 = vpop.xlane.xlu0 %1437
    %v1439 = vsel %vm379, %v1433, 0.0
    %1440 = vadd.xlane.f32.xlu0 %v1439
    %v1441 = vpop.xlane.xlu0 %1440
    %v1442 = vmul.f32 %v1438, %v386
    %v1443 = vmul.f32 %v1441, %v386
    %v1444 = vsub.f32 %v1432, %v1442
    %v1445 = vsub.f32 %v1433, %v1443
    %v1446 = vmul.f32 %v1444, %v1444
    %v1447 = vmul.f32 %v1445, %v1445
    %v1448 = vsel %vm379, %v1446, 0.0
    %1449 = vadd.xlane.f32.xlu0 %v1448
    %v1450 = vpop.xlane.xlu0 %1449
    %v1451 = vsel %vm379, %v1447, 0.0
    %1452 = vadd.xlane.f32.xlu0 %v1451
    %v1453 = vpop.xlane.xlu0 %1452
    %v1454 = vmul.f32 %v1450, %v386
    %v1455 = vmul.f32 %v1453, %v386
    %v1456 = vadd.f32 %v1454, 1e-05
    %v1457 = vadd.f32 %v1455, 1e-05
    %v1458 = vrsqrt.pop %v1456
    %v1459 = vrsqrt.pop %v1457
    %v1460 = vmul.f32 %v1444, %v1458
    %v1461 = vmul.f32 %v1445, %v1459
    %v1463 = vlaneseq
    %v1464 = vshrl.u32 %v1463, 7
    %v1465 = vsub.s32 0, %v1464
    %v1466 = vrot.slane %v1434, %v1465
    %v1468 = vmul.f32 %v1460, %v1466
    %v1469 = vmul.f32 %v1461, %v1466
    %v1471 = vlaneseq
    %v1472 = vshrl.u32 %v1471, 7
    %v1473 = vsub.s32 0, %v1472
    %v1474 = vrot.slane %v1435, %v1473
    %v1476 = vadd.f32 %v1468, %v1474
    %v1477 = vadd.f32 %v1469, %v1474
    %v1478 = vmul.u32 %v302, 8
    %vm1479 = vcmp.eq.s32.totalorder %v322, %v1478
    %v1480 = vsel %vm1479, 1, 0
    %v1481 = vcvt.s32.f32 %v1480
    %v1483 = vsel %vm578, %v1481, 0
    %1485 = vmatprep.subr.mxu0 0.0
    %1486 = vmatpush1.msra.mxu0 %v1476
    %1487 = vmatprep.subr.mxu0 0.0
    %1488 = vmatpush1.msra.mxu0 %v1477
    %1489 = vmatprep.subr.mxu0 0.0
    %1490 = vmatpush1.msra.mxu0 0.0
    %1491 = vmatprep.subr.mxu0 0.0
    %1492 = vmatpush1.msra.mxu0 0.0
    %1493 = vmatprep.subr.mxu0 0.0
    %1494 = vmatpush1.msra.mxu0 0.0
    %1495 = vmatprep.subr.mxu0 0.0
    %1496 = vmatpush1.msra.mxu0 0.0
    %1497 = vmatprep.subr.mxu0 0.0
    %1498 = vmatpush1.msra.mxu0 0.0
    %1499 = vmatprep.subr.mxu0 0.0
    %1500 = vmatpush1.msra.mxu0 0.0
    %1501 = vmatprep.subr.mxu0 0.0
    %1502 = vmatpush1.msra.mxu0 0.0
    %1503 = vmatprep.subr.mxu0 0.0
    %1504 = vmatpush1.msra.mxu0 0.0
    %1505 = vmatprep.subr.mxu0 0.0
    %1506 = vmatpush1.msra.mxu0 0.0
    %1507 = vmatprep.subr.mxu0 0.0
    %1508 = vmatpush1.msra.mxu0 0.0
    %1509 = vmatprep.subr.mxu0 0.0
    %1510 = vmatpush1.msra.mxu0 0.0
    %1511 = vmatprep.subr.mxu0 0.0
    %1512 = vmatpush1.msra.mxu0 0.0
    %1513 = vmatprep.subr.mxu0 0.0
    %1514 = vmatpush1.msra.mxu0 0.0
    %1515 = vmatprep.subr.mxu0 0.0
    %1516 = vmatpush1.msra.mxu0 0.0
    %1517 = vmatprep.subr.mxu0 0.0
    %1518 = vmatpush1.msra.mxu0 0.0
    %1519 = vmatprep.subr.mxu0 0.0
    %1520 = vmatpush1.msra.mxu0 0.0
    %1521 = vmatprep.subr.mxu0 0.0
    %1522 = vmatpush1.msra.mxu0 0.0
    %1523 = vmatprep.subr.mxu0 0.0
    %1524 = vmatpush1.msra.mxu0 0.0
    %1525 = vmatprep.subr.mxu0 0.0
    %1526 = vmatpush1.msra.mxu0 0.0
    %1527 = vmatprep.subr.mxu0 0.0
    %1528 = vmatpush1.msra.mxu0 0.0
    %1529 = vmatprep.subr.mxu0 0.0
    %1530 = vmatpush1.msra.mxu0 0.0
    %1531 = vmatprep.subr.mxu0 0.0
    %1532 = vmatpush1.msra.mxu0 0.0
    %1533 = vmatprep.subr.mxu0 0.0
    %1534 = vmatpush1.msra.mxu0 0.0
    %1535 = vmatprep.subr.mxu0 0.0
    %1536 = vmatpush1.msra.mxu0 0.0
    %1537 = vmatprep.subr.mxu0 0.0
    %1538 = vmatpush1.msra.mxu0 0.0
    %1539 = vmatprep.subr.mxu0 0.0
    %1540 = vmatpush1.msra.mxu0 0.0
    %1541 = vmatprep.subr.mxu0 0.0
    %1542 = vmatpush1.msra.mxu0 0.0
    %1543 = vmatprep.subr.mxu0 0.0
    %1544 = vmatpush1.msra.mxu0 0.0
    %1545 = vmatprep.subr.mxu0 0.0
    %1546 = vmatpush1.msra.mxu0 0.0
    %1547 = vmatprep.subr.mxu0 0.0
    %1548 = vmatpush1.msra.mxu0 0.0
    %1549 = vmatprep.mubr.f32.mxu0 0.0
    %1550 = vmatmul.mubr.f32.gmra.mrb[0].mxu0 %v1483
    %v1551 = vpop.f32.mrb[0].mxu0
    %v1552 = vadd.f32 0.0, %v1551
    %v1553 = vpop.f32.mrb[0].mxu0
    %1554 = vdwg.mxu0
    %v1555 = vld [vmem:[%s47] sm:$0xff]
    %v1556 = vld [vmem:[%s47 + $0x8] sm:$0xff]
    %v1557 = vld [vmem:[%s47 + $0x10] sm:$0xff]
    %v1558 = vld [vmem:[%s47 + $0x18] sm:$0xff]
    %v1559 = vpack.c.bf16 %v1552, %v1552
    %v1560 = vpack.c.bf16 %v1556, %v1555
    %v1561 = vpack.c.bf16 %v1558, %v1557
    %v1562 = vld [vmem:[%s49] sm:$0x1]
    %v1564 = vlaneseq
    %v1565 = vshrl.u32 %v1564, 7
    %v1566 = vsub.s32 0, %v1565
    %v1567 = vrot.slane %v1562, %v1566
    %v1570 = vsel %vm379, %v1559, 0
    %1572 = vmatprep.subr.bf16.mxu0 0
    %1573 = vmatpush1.bf16.msra.mxu0 %v1560
    %1574 = vmatprep.subr.bf16.mxu0 0
    %1575 = vmatpush1.bf16.msra.mxu0 %v1561
    %1576 = vmatprep.subr.bf16.mxu0 0
    %1577 = vmatpush1.bf16.msra.mxu0 0
    %1578 = vmatprep.subr.bf16.mxu0 0
    %1579 = vmatpush1.bf16.msra.mxu0 0
    %1580 = vmatprep.subr.bf16.mxu0 0
    %1581 = vmatpush1.bf16.msra.mxu0 0
    %1582 = vmatprep.subr.bf16.mxu0 0
    %1583 = vmatpush1.bf16.msra.mxu0 0
    %1584 = vmatprep.subr.bf16.mxu0 0
    %1585 = vmatpush1.bf16.msra.mxu0 0
    %1586 = vmatprep.subr.bf16.mxu0 0
    %1587 = vmatpush1.bf16.msra.mxu0 0
    %1588 = vmatprep.subr.bf16.mxu0 0
    %1589 = vmatpush1.bf16.msra.mxu0 0
    %1590 = vmatprep.subr.bf16.mxu0 0
    %1591 = vmatpush1.bf16.msra.mxu0 0
    %1592 = vmatprep.subr.bf16.mxu0 0
    %1593 = vmatpush1.bf16.msra.mxu0 0
    %1594 = vmatprep.subr.bf16.mxu0 0
    %1595 = vmatpush1.bf16.msra.mxu0 0
    %1596 = vmatprep.subr.bf16.mxu0 0
    %1597 = vmatpush1.bf16.msra.mxu0 0
    %1598 = vmatprep.subr.bf16.mxu0 0
    %1599 = vmatpush1.bf16.msra.mxu0 0
    %1600 = vmatprep.subr.bf16.mxu0 0
    %1601 = vmatpush1.bf16.msra.mxu0 0
    %1602 = vmatprep.subr.bf16.mxu0 0
    %1603 = vmatpush1.bf16.msra.mxu0 0
    %1604 = vmatprep.mubr.bf16.mxu0 0
    %1605 = vmatmul.mubr.bf16.gmra.mrb[0].mxu0 %v1570
    %v1606 = vpop.f32.mrb[0].mxu0
    %v1607 = vadd.f32 %v1567, %v1606
    %v1608 = vpop.f32.mrb[0].mxu0
    %v1609 = vpop.f32.mrb[0].mxu0
    %v1610 = vpop.f32.mrb[0].mxu0
    %1611 = vdwg.mxu0
    %v1612 = vpack.c.bf16 %v1607, %v1607
    %v1613 = vunpack.c.l.bf16 %v1612
    %v1614 = vld [vmem:[%s53] sm:$0xff]
    %v1615 = vld [vmem:[%s53 + $0x8] sm:$0xff]
    %v1616 = vld [vmem:[%s53 + $0x10] sm:$0xff]
    %v1617 = vld [vmem:[%s53 + $0x18] sm:$0xff]
    %1618 = vset.pattern.permute.xlu0 0
    %1619 = vperm.xlu0 %1618, %v1614
    %v1620 = vpop.permute.xlu0 %1619
    %1621 = vset.pattern.permute.xlu0 0
    %1622 = vperm.xlu0 %1621, %v1615
    %v1623 = vpop.permute.xlu0 %1622
    %1624 = vset.pattern.permute.xlu0 0
    %1625 = vperm.xlu0 %1624, %v1616
    %v1626 = vpop.permute.xlu0 %1625
    %1627 = vset.pattern.permute.xlu0 0
    %1628 = vperm.xlu0 %1627, %v1617
    %v1629 = vpop.permute.xlu0 %1628
    %vm1630 = vcmp.eq.s32.totalorder %v1620, %v322
    %vm1631 = vcmp.eq.s32.totalorder %v1623, %v322
    %vm1632 = vcmp.eq.s32.totalorder %v1626, %v322
    %vm1633 = vcmp.eq.s32.totalorder %v1629, %v322
    %v1634 = vsel %vm1630, 1, 0
    %v1635 = vsel %vm1631, 1, 0
    %v1636 = vsel %vm1632, 1, 0
    %v1637 = vsel %vm1633, 1, 0
    %v1638 = vcvt.s32.f32 %v1634
    %v1639 = vcvt.s32.f32 %v1635
    %v1640 = vcvt.s32.f32 %v1636
    %v1641 = vcvt.s32.f32 %v1637
    %v1642 = vld [vmem:[%s51] sm:$0xff]
    %v1643 = vld [vmem:[%s51 + $0x8] sm:$0xff]
    %v1644 = vld [vmem:[%s51 + $0x10] sm:$0xff]
    %v1645 = vld [vmem:[%s51 + $0x18] sm:$0xff]
    %v1646 = vld [vmem:[%s51 + $0x20] sm:$0xff]
    %v1647 = vld [vmem:[%s51 + $0x28] sm:$0xff]
    %v1648 = vld [vmem:[%s51 + $0x30] sm:$0xff]
    %v1649 = vld [vmem:[%s51 + $0x38] sm:$0xff]
    %v1651 = vsel %vm256, %v1638, 0
    %v1654 = vsel %vm256, %v1639, 0
    %v1657 = vsel %vm256, %v1640, 0
    %v1660 = vsel %vm256, %v1641, 0
    %1662 = vmatprep.subr.mxu0 0.0
    %1663 = vmatpush1.msra.mxu0 %v1642
    %1664 = vmatprep.subr.mxu0 0.0
    %1665 = vmatpush1.msra.mxu0 %v1643
    %1666 = vmatprep.subr.mxu0 0.0
    %1667 = vmatpush1.msra.mxu0 %v1644
    %1668 = vmatprep.subr.mxu0 0.0
    %1669 = vmatpush1.msra.mxu0 %v1645
    %1670 = vmatprep.subr.mxu0 0.0
    %1671 = vmatpush1.msra.mxu0 %v1646
    %1672 = vmatprep.subr.mxu0 0.0
    %1673 = vmatpush1.msra.mxu0 %v1647
    %1674 = vmatprep.subr.mxu0 0.0
    %1675 = vmatpush1.msra.mxu0 %v1648
    %1676 = vmatprep.subr.mxu0 0.0
    %1677 = vmatpush1.msra.mxu0 %v1649
    %1678 = vmatprep.subr.mxu0 0.0
    %1679 = vmatpush1.msra.mxu0 0.0
    %1680 = vmatprep.subr.mxu0 0.0
    %1681 = vmatpush1.msra.mxu0 0.0
    %1682 = vmatprep.subr.mxu0 0.0
    %1683 = vmatpush1.msra.mxu0 0.0
    %1684 = vmatprep.subr.mxu0 0.0
    %1685 = vmatpush1.msra.mxu0 0.0
    %1686 = vmatprep.subr.mxu0 0.0
    %1687 = vmatpush1.msra.mxu0 0.0
    %1688 = vmatprep.subr.mxu0 0.0
    %1689 = vmatpush1.msra.mxu0 0.0
    %1690 = vmatprep.subr.mxu0 0.0
    %1691 = vmatpush1.msra.mxu0 0.0
    %1692 = vmatprep.subr.mxu0 0.0
    %1693 = vmatpush1.msra.mxu0 0.0
    %1694 = vmatprep.subr.mxu0 0.0
    %1695 = vmatpush1.msra.mxu0 0.0
    %1696 = vmatprep.subr.mxu0 0.0
    %1697 = vmatpush1.msra.mxu0 0.0
    %1698 = vmatprep.subr.mxu0 0.0
    %1699 = vmatpush1.msra.mxu0 0.0
    %1700 = vmatprep.subr.mxu0 0.0
    %1701 = vmatpush1.msra.mxu0 0.0
    %1702 = vmatprep.subr.mxu0 0.0
    %1703 = vmatpush1.msra.mxu0 0.0
    %1704 = vmatprep.subr.mxu0 0.0
    %1705 = vmatpush1.msra.mxu0 0.0
    %1706 = vmatprep.subr.mxu0 0.0
    %1707 = vmatpush1.msra.mxu0 0.0
    %1708 = vmatprep.subr.mxu0 0.0
    %1709 = vmatpush1.msra.mxu0 0.0
    %1710 = vmatprep.subr.mxu0 0.0
    %1711 = vmatpush1.msra.mxu0 0.0
    %1712 = vmatprep.subr.mxu0 0.0
    %1713 = vmatpush1.msra.mxu0 0.0
    %1714 = vmatprep.subr.mxu0 0.0
    %1715 = vmatpush1.msra.mxu0 0.0
    %1716 = vmatprep.subr.mxu0 0.0
    %1717 = vmatpush1.msra.mxu0 0.0
    %1718 = vmatprep.subr.mxu0 0.0
    %1719 = vmatpush1.msra.mxu0 0.0
    %1720 = vmatprep.subr.mxu0 0.0
    %1721 = vmatpush1.msra.mxu0 0.0
    %1722 = vmatprep.subr.mxu0 0.0
    %1723 = vmatpush1.msra.mxu0 0.0
    %1724 = vmatprep.subr.mxu0 0.0
    %1725 = vmatpush1.msra.mxu0 0.0
    %1726 = vmatprep.mubr.f32.mxu0 0.0
    %1727 = vmatmul.mubr.f32.gmra.mrb[0].mxu0 %v1651
    %v1728 = vpop.f32.mrb[0].mxu0
    %v1729 = vadd.f32 0.0, %v1728
    %v1730 = vpop.f32.mrb[0].mxu0
    %1731 = vmatprep.mubr.f32.mxu0 0.0
    %1732 = vmatmul.mubr.f32.gmra.mrb[0].mxu0 %v1654
    %v1733 = vpop.f32.mrb[0].mxu0
    %v1734 = vadd.f32 0.0, %v1733
    %v1735 = vpop.f32.mrb[0].mxu0
    %1736 = vmatprep.mubr.f32.mxu0 0.0
    %1737 = vmatmul.mubr.f32.gmra.mrb[0].mxu0 %v1657
    %v1738 = vpop.f32.mrb[0].mxu0
    %v1739 = vadd.f32 0.0, %v1738
    %v1740 = vpop.f32.mrb[0].mxu0
    %1741 = vmatprep.mubr.f32.mxu0 0.0
    %1742 = vmatmul.mubr.f32.gmra.mrb[0].mxu0 %v1660
    %v1743 = vpop.f32.mrb[0].mxu0
    %v1744 = vadd.f32 0.0, %v1743
    %v1745 = vpop.f32.mrb[0].mxu0
    %1746 = vdwg.mxu0
    %v1747 = vadd.s32 %v302, 16
    %v1748 = vadd.s32 %v302, 24
    %v1749 = vmul.u32 %v322, 16
    %vm1750 = vcmp.eq.s32.totalorder %v302, %v1749
    %vm1751 = vcmp.eq.s32.totalorder %v303, %v1749
    %vm1752 = vcmp.eq.s32.totalorder %v1747, %v1749
    %vm1753 = vcmp.eq.s32.totalorder %v1748, %v1749
    %v1754 = vsel %vm1750, 1, 0
    %v1755 = vsel %vm1751, 1, 0
    %v1756 = vsel %vm1752, 1, 0
    %v1757 = vsel %vm1753, 1, 0
    %v1758 = vcvt.s32.f32 %v1754
    %v1759 = vcvt.s32.f32 %v1755
    %v1760 = vcvt.s32.f32 %v1756
    %v1761 = vcvt.s32.f32 %v1757
    %vm1762 = vcmask 15360
    %v1764 = vsel %vm1762, %v1758, 0
    %v1767 = vsel %vm1762, %v1759, 0
    %v1770 = vsel %vm1762, %v1760, 0
    %v1773 = vsel %vm1762, %v1761, 0
    %vm1775 = vcmask 1041408
    %v1777 = vsel %vm1775, %v1613, 0
    %1779 = vmatprep.subr.mxu0 0.0
    %1780 = vmatpush1.msra.mxu0 %v1777
    %1781 = vmatprep.subr.mxu0 0.0
    %1782 = vmatpush1.msra.mxu0 0.0
    %1783 = vmatprep.subr.mxu0 0.0
    %1784 = vmatpush1.msra.mxu0 0.0
    %1785 = vmatprep.subr.mxu0 0.0
    %1786 = vmatpush1.msra.mxu0 0.0
    %1787 = vmatprep.subr.mxu0 0.0
    %1788 = vmatpush1.msra.mxu0 0.0
    %1789 = vmatprep.subr.mxu0 0.0
    %1790 = vmatpush1.msra.mxu0 0.0
    %1791 = vmatprep.subr.mxu0 0.0
    %1792 = vmatpush1.msra.mxu0 0.0
    %1793 = vmatprep.subr.mxu0 0.0
    %1794 = vmatpush1.msra.mxu0 0.0
    %1795 = vmatprep.subr.mxu0 0.0
    %1796 = vmatpush1.msra.mxu0 0.0
    %1797 = vmatprep.subr.mxu0 0.0
    %1798 = vmatpush1.msra.mxu0 0.0
    %1799 = vmatprep.subr.mxu0 0.0
    %1800 = vmatpush1.msra.mxu0 0.0
    %1801 = vmatprep.subr.mxu0 0.0
    %1802 = vmatpush1.msra.mxu0 0.0
    %1803 = vmatprep.subr.mxu0 0.0
    %1804 = vmatpush1.msra.mxu0 0.0
    %1805 = vmatprep.subr.mxu0 0.0
    %1806 = vmatpush1.msra.mxu0 0.0
    %1807 = vmatprep.subr.mxu0 0.0
    %1808 = vmatpush1.msra.mxu0 0.0
    %1809 = vmatprep.subr.mxu0 0.0
    %1810 = vmatpush1.msra.mxu0 0.0
    %1811 = vmatprep.subr.mxu0 0.0
    %1812 = vmatpush1.msra.mxu0 0.0
    %1813 = vmatprep.subr.mxu0 0.0
    %1814 = vmatpush1.msra.mxu0 0.0
    %1815 = vmatprep.subr.mxu0 0.0
    %1816 = vmatpush1.msra.mxu0 0.0
    %1817 = vmatprep.subr.mxu0 0.0
    %1818 = vmatpush1.msra.mxu0 0.0
    %1819 = vmatprep.subr.mxu0 0.0
    %1820 = vmatpush1.msra.mxu0 0.0
    %1821 = vmatprep.subr.mxu0 0.0
    %1822 = vmatpush1.msra.mxu0 0.0
    %1823 = vmatprep.subr.mxu0 0.0
    %1824 = vmatpush1.msra.mxu0 0.0
    %1825 = vmatprep.subr.mxu0 0.0
    %1826 = vmatpush1.msra.mxu0 0.0
    %1827 = vmatprep.subr.mxu0 0.0
    %1828 = vmatpush1.msra.mxu0 0.0
    %1829 = vmatprep.subr.mxu0 0.0
    %1830 = vmatpush1.msra.mxu0 0.0
    %1831 = vmatprep.subr.mxu0 0.0
    %1832 = vmatpush1.msra.mxu0 0.0
    %1833 = vmatprep.subr.mxu0 0.0
    %1834 = vmatpush1.msra.mxu0 0.0
    %1835 = vmatprep.subr.mxu0 0.0
    %1836 = vmatpush1.msra.mxu0 0.0
    %1837 = vmatprep.subr.mxu0 0.0
    %1838 = vmatpush1.msra.mxu0 0.0
    %1839 = vmatprep.subr.mxu0 0.0
    %1840 = vmatpush1.msra.mxu0 0.0
    %1841 = vmatprep.subr.mxu0 0.0
    %1842 = vmatpush1.msra.mxu0 0.0
    %1843 = vmatprep.mubr.f32.mxu0 0.0
    %1844 = vmatmul.mubr.f32.gmra.mrb[0].mxu0 %v1764
    %v1845 = vpop.f32.mrb[0].mxu0
    %v1846 = vadd.f32 0.0, %v1845
    %v1847 = vpop.f32.mrb[0].mxu0
    %1848 = vmatprep.mubr.f32.mxu0 0.0
    %1849 = vmatmul.mubr.f32.gmra.mrb[0].mxu0 %v1767
    %v1850 = vpop.f32.mrb[0].mxu0
    %v1851 = vadd.f32 0.0, %v1850
    %v1852 = vpop.f32.mrb[0].mxu0
    %1853 = vmatprep.mubr.f32.mxu0 0.0
    %1854 = vmatmul.mubr.f32.gmra.mrb[0].mxu0 %v1770
    %v1855 = vpop.f32.mrb[0].mxu0
    %v1856 = vadd.f32 0.0, %v1855
    %v1857 = vpop.f32.mrb[0].mxu0
    %1858 = vmatprep.mubr.f32.mxu0 0.0
    %1859 = vmatmul.mubr.f32.gmra.mrb[0].mxu0 %v1773
    %v1860 = vpop.f32.mrb[0].mxu0
    %v1861 = vadd.f32 0.0, %v1860
    %v1862 = vpop.f32.mrb[0].mxu0
    %1863 = vdwg.mxu0
    %v1864 = vand.u32 %v302, 15
    %v1865 = vand.u32 %v303, 15
    %v1866 = vand.u32 %v1747, 15
    %v1867 = vand.u32 %v1748, 15
    %vm1868 = vcmp.eq.s32.totalorder %v1864, 0
    %vm1869 = vcmp.eq.s32.totalorder %v1865, 0
    %vm1870 = vcmp.eq.s32.totalorder %v1866, 0
    %vm1871 = vcmp.eq.s32.totalorder %v1867, 0
    %v1872 = vsel %vm1868, %v1846, %v1729
    %v1873 = vsel %vm1869, %v1851, %v1734
    %v1874 = vsel %vm1870, %v1856, %v1739
    %v1875 = vsel %vm1871, %v1861, %v1744
    %vm1876 = vcmp.le.s32.totalorder %v322, %v302
    %vm1877 = vcmp.le.s32.totalorder %v322, %v303
    %v1878 = vld [vmem:[%s55] sm:$0x1]
    %v1879 = vld [vmem:[%s55 + $0x1] sm:$0x1]
    %vm1880 = vcmp.gt.f32.partialorder %v1878, 0.5
    %vm1881 = vcmp.gt.f32.partialorder %v1879, 0.5
    %v1882 = vsel %vm1876, 1, 0
    %v1883 = vsel %vm1877, 1, 0
    %vm1884 = vcmp.eq.s32.totalorder %v1882, 1
    %vm1885 = vcmp.eq.s32.totalorder %v1883, 1
    %v1886 = vsel %vm1880, 1, 0
    %v1887 = vsel %vm1881, 1, 0
    %v1888 = vlaneseq
    %v1889 = vshrl.u32 %v1888, 7
    %v1890 = vsub.s32 0, %v1889
    %v1891 = vrot.slane %v1886, %v1890
    %v1892 = vlaneseq
    %v1893 = vshrl.u32 %v1892, 7
    %v1894 = vsub.s32 0, %v1893
    %v1895 = vrot.slane %v1887, %v1894
    %vm1896 = vcmp.eq.s32.totalorder %v1891, 1
    %vm1897 = vcmp.eq.s32.totalorder %v1895, 1
    %vm1898 = vmand %vm1884, %vm1896
    %vm1899 = vmand %vm1885, %vm1896
    %vm1900 = vmand %vm1884, %vm1897
    %vm1901 = vmand %vm1885, %vm1897
    %v1902 = vld [vmem:[%s59] sm:$0x1]
    %v1903 = vld [vmem:[%s61] sm:$0x1]
    %v1904 = vld [vmem:[%s63] sm:$0xff]
    %v1905 = vld [vmem:[%s63 + $0x8] sm:$0xff]
    %v1906 = vld [vmem:[%s63 + $0x10] sm:$0xff]
    %v1907 = vld [vmem:[%s63 + $0x18] sm:$0xff]
    %v1908 = vld [vmem:[%s63 + $0x20] sm:$0xff]
    %v1909 = vld [vmem:[%s63 + $0x28] sm:$0xff]
    %v1910 = vld [vmem:[%s63 + $0x30] sm:$0xff]
    %v1911 = vld [vmem:[%s63 + $0x38] sm:$0xff]
    %v1912 = vld [vmem:[%s65] sm:$0xff]
    %v1913 = vld [vmem:[%s65 + $0x8] sm:$0xff]
    %v1914 = vld [vmem:[%s65 + $0x10] sm:$0xff]
    %v1915 = vld [vmem:[%s65 + $0x18] sm:$0xff]
    %v1916 = vld [vmem:[%s65 + $0x20] sm:$0xff]
    %v1917 = vld [vmem:[%s65 + $0x28] sm:$0xff]
    %v1918 = vld [vmem:[%s65 + $0x30] sm:$0xff]
    %v1919 = vld [vmem:[%s65 + $0x38] sm:$0xff]
    %v1920 = vld [vmem:[%s67] sm:$0xff]
    %v1921 = vld [vmem:[%s67 + $0x8] sm:$0xff]
    %v1922 = vld [vmem:[%s67 + $0x10] sm:$0xff]
    %v1923 = vld [vmem:[%s67 + $0x18] sm:$0xff]
    %v1924 = vld [vmem:[%s67 + $0x20] sm:$0xff]
    %v1925 = vld [vmem:[%s67 + $0x28] sm:$0xff]
    %v1926 = vld [vmem:[%s67 + $0x30] sm:$0xff]
    %v1927 = vld [vmem:[%s67 + $0x38] sm:$0xff]
    %v1928 = vld [vmem:[%s69] sm:$0x1]
    %v1929 = vld [vmem:[%s69 + $0x1] sm:$0x1]
    %v1930 = vld [vmem:[%s71] sm:$0x1]
    %v1931 = vld [vmem:[%s71 + $0x1] sm:$0x1]
    %v1932 = vld [vmem:[%s73] sm:$0x1]
    %v1933 = vld [vmem:[%s73 + $0x1] sm:$0x1]
    %v1934 = vld [vmem:[%s75] sm:$0xff]
    %v1935 = vld [vmem:[%s75 + $0x8] sm:$0xff]
    %v1936 = vld [vmem:[%s75 + $0x10] sm:$0xff]
    %v1937 = vld [vmem:[%s75 + $0x18] sm:$0xff]
    %v1938 = vld [vmem:[%s77] sm:$0x1]
    %v1939 = vld [vmem:[%s79] sm:$0x1]
    %v1940 = vld [vmem:[%s81] sm:$0x1]
    %v1941 = vld [vmem:[%s83] sm:$0xff]
    %v1942 = vld [vmem:[%s83 + $0x8] sm:$0xff]
    %v1943 = vld [vmem:[%s83 + $0x10] sm:$0xff]
    %v1944 = vld [vmem:[%s83 + $0x18] sm:$0xff]
    %v1945 = vld [vmem:[%s85] sm:$0x1]
    %v1946 = vld [vmem:[%s87] sm:$0xff]
    %v1947 = vld [vmem:[%s87 + $0x8] sm:$0xff]
    %v1948 = vld [vmem:[%s87 + $0x10] sm:$0xff]
    %v1949 = vld [vmem:[%s87 + $0x18] sm:$0xff]
    %v1950 = vld [vmem:[%s87 + $0x20] sm:$0xff]
    %v1951 = vld [vmem:[%s87 + $0x28] sm:$0xff]
    %v1952 = vld [vmem:[%s87 + $0x30] sm:$0xff]
    %v1953 = vld [vmem:[%s87 + $0x38] sm:$0xff]
    %v1954 = vld [vmem:[%s89] sm:$0x1]
    %v1955 = vsel %vm379, %v1872, 0.0
    %1956 = vadd.xlane.f32.xlu0 %v1955
    %v1957 = vpop.xlane.xlu0 %1956
    %v1958 = vsel %vm379, %v1873, 0.0
    %1959 = vadd.xlane.f32.xlu0 %v1958
    %v1960 = vpop.xlane.xlu0 %1959
    %v1961 = vsel %vm379, %v1874, 0.0
    %1962 = vadd.xlane.f32.xlu0 %v1961
    %v1963 = vpop.xlane.xlu0 %1962
    %v1964 = vsel %vm379, %v1875, 0.0
    %1965 = vadd.xlane.f32.xlu0 %v1964
    %v1966 = vpop.xlane.xlu0 %1965
    %v1967 = vmul.f32 %v1957, %v386
    %v1968 = vmul.f32 %v1960, %v386
    %v1969 = vmul.f32 %v1963, %v386
    %v1970 = vmul.f32 %v1966, %v386
    %v1971 = vsub.f32 %v1872, %v1967
    %v1972 = vsub.f32 %v1873, %v1968
    %v1973 = vsub.f32 %v1874, %v1969
    %v1974 = vsub.f32 %v1875, %v1970
    %v1975 = vmul.f32 %v1971, %v1971
    %v1976 = vmul.f32 %v1972, %v1972
    %v1977 = vmul.f32 %v1973, %v1973
    %v1978 = vmul.f32 %v1974, %v1974
    %v1979 = vsel %vm379, %v1975, 0.0
    %1980 = vadd.xlane.f32.xlu0 %v1979
    %v1981 = vpop.xlane.xlu0 %1980
    %v1982 = vsel %vm379, %v1976, 0.0
    %1983 = vadd.xlane.f32.xlu0 %v1982
    %v1984 = vpop.xlane.xlu0 %1983
    %v1985 = vsel %vm379, %v1977, 0.0
    %1986 = vadd.xlane.f32.xlu0 %v1985
    %v1987 = vpop.xlane.xlu0 %1986
    %v1988 = vsel %vm379, %v1978, 0.0
    %1989 = vadd.xlane.f32.xlu0 %v1988
    %v1990 = vpop.xlane.xlu0 %1989
    %v1991 = vmul.f32 %v1981, %v386
    %v1992 = vmul.f32 %v1984, %v386
    %v1993 = vmul.f32 %v1987, %v386
    %v1994 = vmul.f32 %v1990, %v386
    %v1995 = vadd.f32 %v1991, 1e-05
    %v1996 = vadd.f32 %v1992, 1e-05
    %v1997 = vadd.f32 %v1993, 1e-05
    %v1998 = vadd.f32 %v1994, 1e-05
    %v1999 = vrsqrt.pop %v1995
    %v2000 = vrsqrt.pop %v1996
    %v2001 = vrsqrt.pop %v1997
    %v2002 = vrsqrt.pop %v1998
    %v2003 = vmul.f32 %v1971, %v1999
    %v2004 = vmul.f32 %v1972, %v2000
    %v2005 = vmul.f32 %v1973, %v2001
    %v2006 = vmul.f32 %v1974, %v2002
    %v2008 = vlaneseq
    %v2009 = vshrl.u32 %v2008, 7
    %v2010 = vsub.s32 0, %v2009
    %v2011 = vrot.slane %v1902, %v2010
    %v2013 = vmul.f32 %v2003, %v2011
    %v2014 = vmul.f32 %v2004, %v2011
    %v2015 = vmul.f32 %v2005, %v2011
    %v2016 = vmul.f32 %v2006, %v2011
    %v2018 = vlaneseq
    %v2019 = vshrl.u32 %v2018, 7
    %v2020 = vsub.s32 0, %v2019
    %v2021 = vrot.slane %v1903, %v2020
    %v2023 = vadd.f32 %v2013, %v2021
    %v2024 = vadd.f32 %v2014, %v2021
    %v2025 = vadd.f32 %v2015, %v2021
    %v2026 = vadd.f32 %v2016, %v2021
    %v2027 = vpack.c.bf16 %v2024, %v2023
    %v2028 = vpack.c.bf16 %v2026, %v2025
    %v2029 = vpack.c.bf16 %v1905, %v1904
    %v2030 = vpack.c.bf16 %v1907, %v1906
    %v2032 = vlaneseq
    %v2033 = vshrl.u32 %v2032, 7
    %v2034 = vsub.s32 0, %v2033
    %v2035 = vrot.slane %v1928, %v2034
    %v2038 = vsel %vm379, %v2027, 0
    %v2041 = vsel %vm379, %v2028, 0
    %2043 = vmatprep.subr.bf16.mxu0 0
    %2044 = vmatpush1.bf16.msra.mxu0 %v2029
    %2045 = vmatprep.subr.bf16.mxu0 0
    %2046 = vmatpush1.bf16.msra.mxu0 %v2030
    %2047 = vmatprep.subr.bf16.mxu0 0
    %2048 = vmatpush1.bf16.msra.mxu0 0
    %2049 = vmatprep.subr.bf16.mxu0 0
    %2050 = vmatpush1.bf16.msra.mxu0 0
    %2051 = vmatprep.subr.bf16.mxu0 0
    %2052 = vmatpush1.bf16.msra.mxu0 0
    %2053 = vmatprep.subr.bf16.mxu0 0
    %2054 = vmatpush1.bf16.msra.mxu0 0
    %2055 = vmatprep.subr.bf16.mxu0 0
    %2056 = vmatpush1.bf16.msra.mxu0 0
    %2057 = vmatprep.subr.bf16.mxu0 0
    %2058 = vmatpush1.bf16.msra.mxu0 0
    %2059 = vmatprep.subr.bf16.mxu0 0
    %2060 = vmatpush1.bf16.msra.mxu0 0
    %2061 = vmatprep.subr.bf16.mxu0 0
    %2062 = vmatpush1.bf16.msra.mxu0 0
    %2063 = vmatprep.subr.bf16.mxu0 0
    %2064 = vmatpush1.bf16.msra.mxu0 0
    %2065 = vmatprep.subr.bf16.mxu0 0
    %2066 = vmatpush1.bf16.msra.mxu0 0
    %2067 = vmatprep.subr.bf16.mxu0 0
    %2068 = vmatpush1.bf16.msra.mxu0 0
    %2069 = vmatprep.subr.bf16.mxu0 0
    %2070 = vmatpush1.bf16.msra.mxu0 0
    %2071 = vmatprep.subr.bf16.mxu0 0
    %2072 = vmatpush1.bf16.msra.mxu0 0
    %2073 = vmatprep.subr.bf16.mxu0 0
    %2074 = vmatpush1.bf16.msra.mxu0 0
    %2075 = vmatprep.mubr.bf16.mxu0 0
    %2076 = vmatmul.mubr.bf16.gmra.mrb[0].mxu0 %v2038
    %v2077 = vpop.f32.mrb[0].mxu0
    %v2078 = vadd.f32 %v2035, %v2077
    %v2079 = vpop.f32.mrb[0].mxu0
    %v2080 = vpop.f32.mrb[0].mxu0
    %v2081 = vadd.f32 %v2035, %v2080
    %v2082 = vpop.f32.mrb[0].mxu0
    %2083 = vmatprep.mubr.bf16.mxu0 0
    %2084 = vmatmul.mubr.bf16.gmra.mrb[0].mxu0 %v2041
    %v2085 = vpop.f32.mrb[0].mxu0
    %v2086 = vadd.f32 %v2035, %v2085
    %v2087 = vpop.f32.mrb[0].mxu0
    %v2088 = vpop.f32.mrb[0].mxu0
    %v2089 = vadd.f32 %v2035, %v2088
    %v2090 = vpop.f32.mrb[0].mxu0
    %2091 = vdwg.mxu0
    %v2092 = vpack.c.bf16 %v1913, %v1912
    %v2093 = vpack.c.bf16 %v1915, %v1914
    %v2095 = vlaneseq
    %v2096 = vshrl.u32 %v2095, 7
    %v2097 = vsub.s32 0, %v2096
    %v2098 = vrot.slane %v1930, %v2097
    %2100 = vmatprep.subr.bf16.mxu0 0
    %2101 = vmatpush1.bf16.msra.mxu0 %v2092
    %2102 = vmatprep.subr.bf16.mxu0 0
    %2103 = vmatpush1.bf16.msra.mxu0 %v2093
    %2104 = vmatprep.subr.bf16.mxu0 0
    %2105 = vmatpush1.bf16.msra.mxu0 0
    %2106 = vmatprep.subr.bf16.mxu0 0
    %2107 = vmatpush1.bf16.msra.mxu0 0
    %2108 = vmatprep.subr.bf16.mxu0 0
    %2109 = vmatpush1.bf16.msra.mxu0 0
    %2110 = vmatprep.subr.bf16.mxu0 0
    %2111 = vmatpush1.bf16.msra.mxu0 0
    %2112 = vmatprep.subr.bf16.mxu0 0
    %2113 = vmatpush1.bf16.msra.mxu0 0
    %2114 = vmatprep.subr.bf16.mxu0 0
    %2115 = vmatpush1.bf16.msra.mxu0 0
    %2116 = vmatprep.subr.bf16.mxu0 0
    %2117 = vmatpush1.bf16.msra.mxu0 0
    %2118 = vmatprep.subr.bf16.mxu0 0
    %2119 = vmatpush1.bf16.msra.mxu0 0
    %2120 = vmatprep.subr.bf16.mxu0 0
    %2121 = vmatpush1.bf16.msra.mxu0 0
    %2122 = vmatprep.subr.bf16.mxu0 0
    %2123 = vmatpush1.bf16.msra.mxu0 0
    %2124 = vmatprep.subr.bf16.mxu0 0
    %2125 = vmatpush1.bf16.msra.mxu0 0
    %2126 = vmatprep.subr.bf16.mxu0 0
    %2127 = vmatpush1.bf16.msra.mxu0 0
    %2128 = vmatprep.subr.bf16.mxu0 0
    %2129 = vmatpush1.bf16.msra.mxu0 0
    %2130 = vmatprep.subr.bf16.mxu0 0
    %2131 = vmatpush1.bf16.msra.mxu0 0
    %2132 = vmatprep.mubr.bf16.mxu0 0
    %2133 = vmatmul.mubr.bf16.gmra.mrb[0].mxu0 %v2038
    %v2134 = vpop.f32.mrb[0].mxu0
    %v2135 = vadd.f32 %v2098, %v2134
    %v2136 = vpop.f32.mrb[0].mxu0
    %v2137 = vpop.f32.mrb[0].mxu0
    %v2138 = vadd.f32 %v2098, %v2137
    %v2139 = vpop.f32.mrb[0].mxu0
    %2140 = vmatprep.mubr.bf16.mxu0 0
    %2141 = vmatmul.mubr.bf16.gmra.mrb[0].mxu0 %v2041
    %v2142 = vpop.f32.mrb[0].mxu0
    %v2143 = vadd.f32 %v2098, %v2142
    %v2144 = vpop.f32.mrb[0].mxu0
    %v2145 = vpop.f32.mrb[0].mxu0
    %v2146 = vadd.f32 %v2098, %v2145
    %v2147 = vpop.f32.mrb[0].mxu0
    %2148 = vdwg.mxu0
    %v2149 = vpack.c.bf16 %v1921, %v1920
    %v2150 = vpack.c.bf16 %v1923, %v1922
    %v2152 = vlaneseq
    %v2153 = vshrl.u32 %v2152, 7
    %v2154 = vsub.s32 0, %v2153
    %v2155 = vrot.slane %v1932, %v2154
    %2157 = vmatprep.subr.bf16.mxu0 0
    %2158 = vmatpush1.bf16.msra.mxu0 %v2149
    %2159 = vmatprep.subr.bf16.mxu0 0
    %2160 = vmatpush1.bf16.msra.mxu0 %v2150
    %2161 = vmatprep.subr.bf16.mxu0 0
    %2162 = vmatpush1.bf16.msra.mxu0 0
    %2163 = vmatprep.subr.bf16.mxu0 0
    %2164 = vmatpush1.bf16.msra.mxu0 0
    %2165 = vmatprep.subr.bf16.mxu0 0
    %2166 = vmatpush1.bf16.msra.mxu0 0
    %2167 = vmatprep.subr.bf16.mxu0 0
    %2168 = vmatpush1.bf16.msra.mxu0 0
    %2169 = vmatprep.subr.bf16.mxu0 0
    %2170 = vmatpush1.bf16.msra.mxu0 0
    %2171 = vmatprep.subr.bf16.mxu0 0
    %2172 = vmatpush1.bf16.msra.mxu0 0
    %2173 = vmatprep.subr.bf16.mxu0 0
    %2174 = vmatpush1.bf16.msra.mxu0 0
    %2175 = vmatprep.subr.bf16.mxu0 0
    %2176 = vmatpush1.bf16.msra.mxu0 0
    %2177 = vmatprep.subr.bf16.mxu0 0
    %2178 = vmatpush1.bf16.msra.mxu0 0
    %2179 = vmatprep.subr.bf16.mxu0 0
    %2180 = vmatpush1.bf16.msra.mxu0 0
    %2181 = vmatprep.subr.bf16.mxu0 0
    %2182 = vmatpush1.bf16.msra.mxu0 0
    %2183 = vmatprep.subr.bf16.mxu0 0
    %2184 = vmatpush1.bf16.msra.mxu0 0
    %2185 = vmatprep.subr.bf16.mxu0 0
    %2186 = vmatpush1.bf16.msra.mxu0 0
    %2187 = vmatprep.subr.bf16.mxu0 0
    %2188 = vmatpush1.bf16.msra.mxu0 0
    %2189 = vmatprep.mubr.bf16.mxu0 0
    %2190 = vmatmul.mubr.bf16.gmra.mrb[0].mxu0 %v2038
    %v2191 = vpop.f32.mrb[0].mxu0
    %v2192 = vadd.f32 %v2155, %v2191
    %v2193 = vpop.f32.mrb[0].mxu0
    %v2194 = vpop.f32.mrb[0].mxu0
    %v2195 = vadd.f32 %v2155, %v2194
    %v2196 = vpop.f32.mrb[0].mxu0
    %2197 = vmatprep.mubr.bf16.mxu0 0
    %2198 = vmatmul.mubr.bf16.gmra.mrb[0].mxu0 %v2041
    %v2199 = vpop.f32.mrb[0].mxu0
    %v2200 = vadd.f32 %v2155, %v2199
    %v2201 = vpop.f32.mrb[0].mxu0
    %v2202 = vpop.f32.mrb[0].mxu0
    %v2203 = vadd.f32 %v2155, %v2202
    %v2204 = vpop.f32.mrb[0].mxu0
    %2205 = vdwg.mxu0
    %v2206 = vpack.c.bf16 %v2081, %v2078
    %v2207 = vpack.c.bf16 %v2089, %v2086
    %v2208 = vpack.c.bf16 %v2138, %v2135
    %v2209 = vpack.c.bf16 %v2146, %v2143
    %v2211 = vsel %vm578, %v2206, 0
    %v2214 = vsel %vm578, %v2208, 0
    %2216 = vmatprep.subr.bf16.mxu0 0
    %2217 = vmatpush1.bf16.xpose.msra.mxu0 %v2214
    %2218 = vmatprep.subr.bf16.mxu0 0
    %2219 = vmatpush1.bf16.xpose.msra.mxu0 0
    %2220 = vmatprep.subr.bf16.mxu0 0
    %2221 = vmatpush1.bf16.xpose.msra.mxu0 0
    %2222 = vmatprep.subr.bf16.mxu0 0
    %2223 = vmatpush1.bf16.xpose.msra.mxu0 0
    %2224 = vmatprep.subr.bf16.mxu0 0
    %2225 = vmatpush1.bf16.xpose.msra.mxu0 0
    %2226 = vmatprep.subr.bf16.mxu0 0
    %2227 = vmatpush1.bf16.xpose.msra.mxu0 0
    %2228 = vmatprep.subr.bf16.mxu0 0
    %2229 = vmatpush1.bf16.xpose.msra.mxu0 0
    %2230 = vmatprep.subr.bf16.mxu0 0
    %2231 = vmatpush1.bf16.xpose.msra.mxu0 0
    %2232 = vmatprep.subr.bf16.mxu0 0
    %2233 = vmatpush1.bf16.xpose.msra.mxu0 0
    %2234 = vmatprep.subr.bf16.mxu0 0
    %2235 = vmatpush1.bf16.xpose.msra.mxu0 0
    %2236 = vmatprep.subr.bf16.mxu0 0
    %2237 = vmatpush1.bf16.xpose.msra.mxu0 0
    %2238 = vmatprep.subr.bf16.mxu0 0
    %2239 = vmatpush1.bf16.xpose.msra.mxu0 0
    %2240 = vmatprep.subr.bf16.mxu0 0
    %2241 = vmatpush1.bf16.xpose.msra.mxu0 0
    %2242 = vmatprep.subr.bf16.mxu0 0
    %2243 = vmatpush1.bf16.xpose.msra.mxu0 0
    %2244 = vmatprep.subr.bf16.mxu0 0
    %2245 = vmatpush1.bf16.xpose.msra.mxu0 0
    %2246 = vmatprep.subr.bf16.mxu0 0
    %2247 = vmatpush1.bf16.xpose.msra.mxu0 0
    %2248 = vmatprep.mubr.bf16.mxu0 0
    %2249 = vmatmul.mubr.bf16.gmra.mrb[0].mxu0 %v2211
    %v2250 = vpop.f32.mrb[0].mxu0
    %v2251 = vadd.f32 0.0, %v2250
    %v2252 = vpop.f32.mrb[0].mxu0
    %v2253 = vpop.f32.mrb[0].mxu0
    %v2254 = vadd.f32 0.0, %v2253
    %v2255 = vpop.f32.mrb[0].mxu0
    %2256 = vdwg.mxu0
    %v2258 = vsel %vm578, %v2207, 0
    %v2261 = vsel %vm578, %v2209, 0
    %2263 = vmatprep.subr.bf16.mxu0 0
    %2264 = vmatpush1.bf16.xpose.msra.mxu0 %v2261
    %2265 = vmatprep.subr.bf16.mxu0 0
    %2266 = vmatpush1.bf16.xpose.msra.mxu0 0
    %2267 = vmatprep.subr.bf16.mxu0 0
    %2268 = vmatpush1.bf16.xpose.msra.mxu0 0
    %2269 = vmatprep.subr.bf16.mxu0 0
    %2270 = vmatpush1.bf16.xpose.msra.mxu0 0
    %2271 = vmatprep.subr.bf16.mxu0 0
    %2272 = vmatpush1.bf16.xpose.msra.mxu0 0
    %2273 = vmatprep.subr.bf16.mxu0 0
    %2274 = vmatpush1.bf16.xpose.msra.mxu0 0
    %2275 = vmatprep.subr.bf16.mxu0 0
    %2276 = vmatpush1.bf16.xpose.msra.mxu0 0
    %2277 = vmatprep.subr.bf16.mxu0 0
    %2278 = vmatpush1.bf16.xpose.msra.mxu0 0
    %2279 = vmatprep.subr.bf16.mxu0 0
    %2280 = vmatpush1.bf16.xpose.msra.mxu0 0
    %2281 = vmatprep.subr.bf16.mxu0 0
    %2282 = vmatpush1.bf16.xpose.msra.mxu0 0
    %2283 = vmatprep.subr.bf16.mxu0 0
    %2284 = vmatpush1.bf16.xpose.msra.mxu0 0
    %2285 = vmatprep.subr.bf16.mxu0 0
    %2286 = vmatpush1.bf16.xpose.msra.mxu0 0
    %2287 = vmatprep.subr.bf16.mxu0 0
    %2288 = vmatpush1.bf16.xpose.msra.mxu0 0
    %2289 = vmatprep.subr.bf16.mxu0 0
    %2290 = vmatpush1.bf16.xpose.msra.mxu0 0
    %2291 = vmatprep.subr.bf16.mxu0 0
    %2292 = vmatpush1.bf16.xpose.msra.mxu0 0
    %2293 = vmatprep.subr.bf16.mxu0 0
    %2294 = vmatpush1.bf16.xpose.msra.mxu0 0
    %2295 = vmatprep.mubr.bf16.mxu0 0
    %2296 = vmatmul.mubr.bf16.gmra.mrb[0].mxu0 %v2258
    %v2297 = vpop.f32.mrb[0].mxu0
    %v2298 = vadd.f32 0.0, %v2297
    %v2299 = vpop.f32.mrb[0].mxu0
    %v2300 = vpop.f32.mrb[0].mxu0
    %v2301 = vadd.f32 0.0, %v2300
    %v2302 = vpop.f32.mrb[0].mxu0
    %2303 = vdwg.mxu0
    %v2304 = vmul.f32 %v2251, 0.25
    %v2305 = vmul.f32 %v2254, 0.25
    %v2306 = vmul.f32 %v2298, 0.25
    %v2307 = vmul.f32 %v2301, 0.25
    %v2308 = vsel %vm1898, %v2304, -1e+30
    %v2309 = vsel %vm1899, %v2305, -1e+30
    %v2310 = vsel %vm1900, %v2306, -1e+30
    %v2311 = vsel %vm1901, %v2307, -1e+30
    %v2312 = vsel %vm578, %v2308, -inf
    %2313 = vmax.xlane.f32.xlu0 %v2312
    %v2314 = vpop.xlane.xlu0 %2313
    %v2315 = vsel %vm578, %v2309, -inf
    %2316 = vmax.xlane.f32.xlu0 %v2315
    %v2317 = vpop.xlane.xlu0 %2316
    %v2318 = vsel %vm578, %v2310, -inf
    %2319 = vmax.xlane.f32.xlu0 %v2318
    %v2320 = vpop.xlane.xlu0 %2319
    %v2321 = vsel %vm578, %v2311, -inf
    %2322 = vmax.xlane.f32.xlu0 %v2321
    %v2323 = vpop.xlane.xlu0 %2322
    %v2324 = vsub.f32 %v2308, %v2314
    %v2325 = vsub.f32 %v2309, %v2317
    %v2326 = vsub.f32 %v2310, %v2320
    %v2327 = vsub.f32 %v2311, %v2323
    %v2328 = vmul.f32 %v2324, 1.442695
    %v2329 = vpow.pop %v2328
    %v2330 = vmul.f32 %v2325, 1.442695
    %v2331 = vpow.pop %v2330
    %v2332 = vmul.f32 %v2326, 1.442695
    %v2333 = vpow.pop %v2332
    %v2334 = vmul.f32 %v2327, 1.442695
    %v2335 = vpow.pop %v2334
    %v2336 = vsel %vm578, %v2329, 0.0
    %2337 = vadd.xlane.f32.xlu0 %v2336
    %v2338 = vpop.xlane.xlu0 %2337
    %v2339 = vsel %vm578, %v2331, 0.0
    %2340 = vadd.xlane.f32.xlu0 %v2339
    %v2341 = vpop.xlane.xlu0 %2340
    %v2342 = vsel %vm578, %v2333, 0.0
    %2343 = vadd.xlane.f32.xlu0 %v2342
    %v2344 = vpop.xlane.xlu0 %2343
    %v2345 = vsel %vm578, %v2335, 0.0
    %2346 = vadd.xlane.f32.xlu0 %v2345
    %v2347 = vpop.xlane.xlu0 %2346
    %v2348 = vrcp.pop %v2338
    %v2349 = vrcp.pop %v2341
    %v2350 = vrcp.pop %v2344
    %v2351 = vrcp.pop %v2347
    %v2352 = vmul.f32 %v2329, %v2348
    %v2353 = vmul.f32 %v2331, %v2349
    %v2354 = vmul.f32 %v2333, %v2350
    %v2355 = vmul.f32 %v2335, %v2351
    %v2356 = vpack.c.bf16 %v2353, %v2352
    %v2357 = vpack.c.bf16 %v2355, %v2354
    %v2358 = vpack.c.bf16 %v2195, %v2192
    %v2359 = vpack.c.bf16 %v2203, %v2200
    %v2361 = vsel %vm578, %v2356, 0
    %2363 = vmatprep.subr.bf16.mxu0 0
    %2364 = vmatpush1.bf16.msra.mxu0 %v2358
    %2365 = vmatprep.subr.bf16.mxu0 0
    %2366 = vmatpush1.bf16.msra.mxu0 0
    %2367 = vmatprep.subr.bf16.mxu0 0
    %2368 = vmatpush1.bf16.msra.mxu0 0
    %2369 = vmatprep.subr.bf16.mxu0 0
    %2370 = vmatpush1.bf16.msra.mxu0 0
    %2371 = vmatprep.subr.bf16.mxu0 0
    %2372 = vmatpush1.bf16.msra.mxu0 0
    %2373 = vmatprep.subr.bf16.mxu0 0
    %2374 = vmatpush1.bf16.msra.mxu0 0
    %2375 = vmatprep.subr.bf16.mxu0 0
    %2376 = vmatpush1.bf16.msra.mxu0 0
    %2377 = vmatprep.subr.bf16.mxu0 0
    %2378 = vmatpush1.bf16.msra.mxu0 0
    %2379 = vmatprep.subr.bf16.mxu0 0
    %2380 = vmatpush1.bf16.msra.mxu0 0
    %2381 = vmatprep.subr.bf16.mxu0 0
    %2382 = vmatpush1.bf16.msra.mxu0 0
    %2383 = vmatprep.subr.bf16.mxu0 0
    %2384 = vmatpush1.bf16.msra.mxu0 0
    %2385 = vmatprep.subr.bf16.mxu0 0
    %2386 = vmatpush1.bf16.msra.mxu0 0
    %2387 = vmatprep.subr.bf16.mxu0 0
    %2388 = vmatpush1.bf16.msra.mxu0 0
    %2389 = vmatprep.subr.bf16.mxu0 0
    %2390 = vmatpush1.bf16.msra.mxu0 0
    %2391 = vmatprep.subr.bf16.mxu0 0
    %2392 = vmatpush1.bf16.msra.mxu0 0
    %2393 = vmatprep.subr.bf16.mxu0 0
    %2394 = vmatpush1.bf16.msra.mxu0 0
    %2395 = vmatprep.mubr.bf16.mxu0 0
    %2396 = vmatmul.mubr.bf16.gmra.mrb[0].mxu0 %v2361
    %v2397 = vpop.f32.mrb[0].mxu0
    %v2398 = vadd.f32 0.0, %v2397
    %v2399 = vpop.f32.mrb[0].mxu0
    %v2400 = vpop.f32.mrb[0].mxu0
    %v2401 = vadd.f32 0.0, %v2400
    %v2402 = vpop.f32.mrb[0].mxu0
    %2403 = vdwg.mxu0
    %v2405 = vsel %vm578, %v2357, 0
    %2407 = vmatprep.subr.bf16.mxu0 0
    %2408 = vmatpush1.bf16.msra.mxu0 %v2359
    %2409 = vmatprep.subr.bf16.mxu0 0
    %2410 = vmatpush1.bf16.msra.mxu0 0
    %2411 = vmatprep.subr.bf16.mxu0 0
    %2412 = vmatpush1.bf16.msra.mxu0 0
    %2413 = vmatprep.subr.bf16.mxu0 0
    %2414 = vmatpush1.bf16.msra.mxu0 0
    %2415 = vmatprep.subr.bf16.mxu0 0
    %2416 = vmatpush1.bf16.msra.mxu0 0
    %2417 = vmatprep.subr.bf16.mxu0 0
    %2418 = vmatpush1.bf16.msra.mxu0 0
    %2419 = vmatprep.subr.bf16.mxu0 0
    %2420 = vmatpush1.bf16.msra.mxu0 0
    %2421 = vmatprep.subr.bf16.mxu0 0
    %2422 = vmatpush1.bf16.msra.mxu0 0
    %2423 = vmatprep.subr.bf16.mxu0 0
    %2424 = vmatpush1.bf16.msra.mxu0 0
    %2425 = vmatprep.subr.bf16.mxu0 0
    %2426 = vmatpush1.bf16.msra.mxu0 0
    %2427 = vmatprep.subr.bf16.mxu0 0
    %2428 = vmatpush1.bf16.msra.mxu0 0
    %2429 = vmatprep.subr.bf16.mxu0 0
    %2430 = vmatpush1.bf16.msra.mxu0 0
    %2431 = vmatprep.subr.bf16.mxu0 0
    %2432 = vmatpush1.bf16.msra.mxu0 0
    %2433 = vmatprep.subr.bf16.mxu0 0
    %2434 = vmatpush1.bf16.msra.mxu0 0
    %2435 = vmatprep.subr.bf16.mxu0 0
    %2436 = vmatpush1.bf16.msra.mxu0 0
    %2437 = vmatprep.subr.bf16.mxu0 0
    %2438 = vmatpush1.bf16.msra.mxu0 0
    %2439 = vmatprep.mubr.bf16.mxu0 0
    %2440 = vmatmul.mubr.bf16.gmra.mrb[0].mxu0 %v2405
    %v2441 = vpop.f32.mrb[0].mxu0
    %v2442 = vadd.f32 0.0, %v2441
    %v2443 = vpop.f32.mrb[0].mxu0
    %v2444 = vpop.f32.mrb[0].mxu0
    %v2445 = vadd.f32 0.0, %v2444
    %v2446 = vpop.f32.mrb[0].mxu0
    %2447 = vdwg.mxu0
    %v2448 = vpack.c.bf16 %v2401, %v2398
    %v2449 = vpack.c.bf16 %v2445, %v2442
    %v2450 = vpack.c.bf16 %v1935, %v1934
    %v2451 = vpack.c.bf16 %v1909, %v1908
    %v2452 = vpack.c.bf16 %v1911, %v1910
    %v2454 = vlaneseq
    %v2455 = vshrl.u32 %v2454, 7
    %v2456 = vsub.s32 0, %v2455
    %v2457 = vrot.slane %v1929, %v2456
    %2459 = vmatprep.subr.bf16.mxu0 0
    %2460 = vmatpush1.bf16.msra.mxu0 %v2451
    %2461 = vmatprep.subr.bf16.mxu0 0
    %2462 = vmatpush1.bf16.msra.mxu0 %v2452
    %2463 = vmatprep.subr.bf16.mxu0 0
    %2464 = vmatpush1.bf16.msra.mxu0 0
    %2465 = vmatprep.subr.bf16.mxu0 0
    %2466 = vmatpush1.bf16.msra.mxu0 0
    %2467 = vmatprep.subr.bf16.mxu0 0
    %2468 = vmatpush1.bf16.msra.mxu0 0
    %2469 = vmatprep.subr.bf16.mxu0 0
    %2470 = vmatpush1.bf16.msra.mxu0 0
    %2471 = vmatprep.subr.bf16.mxu0 0
    %2472 = vmatpush1.bf16.msra.mxu0 0
    %2473 = vmatprep.subr.bf16.mxu0 0
    %2474 = vmatpush1.bf16.msra.mxu0 0
    %2475 = vmatprep.subr.bf16.mxu0 0
    %2476 = vmatpush1.bf16.msra.mxu0 0
    %2477 = vmatprep.subr.bf16.mxu0 0
    %2478 = vmatpush1.bf16.msra.mxu0 0
    %2479 = vmatprep.subr.bf16.mxu0 0
    %2480 = vmatpush1.bf16.msra.mxu0 0
    %2481 = vmatprep.subr.bf16.mxu0 0
    %2482 = vmatpush1.bf16.msra.mxu0 0
    %2483 = vmatprep.subr.bf16.mxu0 0
    %2484 = vmatpush1.bf16.msra.mxu0 0
    %2485 = vmatprep.subr.bf16.mxu0 0
    %2486 = vmatpush1.bf16.msra.mxu0 0
    %2487 = vmatprep.subr.bf16.mxu0 0
    %2488 = vmatpush1.bf16.msra.mxu0 0
    %2489 = vmatprep.subr.bf16.mxu0 0
    %2490 = vmatpush1.bf16.msra.mxu0 0
    %2491 = vmatprep.mubr.bf16.mxu0 0
    %2492 = vmatmul.mubr.bf16.gmra.mrb[0].mxu0 %v2038
    %v2493 = vpop.f32.mrb[0].mxu0
    %v2494 = vadd.f32 %v2457, %v2493
    %v2495 = vpop.f32.mrb[0].mxu0
    %v2496 = vpop.f32.mrb[0].mxu0
    %v2497 = vadd.f32 %v2457, %v2496
    %v2498 = vpop.f32.mrb[0].mxu0
    %2499 = vmatprep.mubr.bf16.mxu0 0
    %2500 = vmatmul.mubr.bf16.gmra.mrb[0].mxu0 %v2041
    %v2501 = vpop.f32.mrb[0].mxu0
    %v2502 = vadd.f32 %v2457, %v2501
    %v2503 = vpop.f32.mrb[0].mxu0
    %v2504 = vpop.f32.mrb[0].mxu0
    %v2505 = vadd.f32 %v2457, %v2504
    %v2506 = vpop.f32.mrb[0].mxu0
    %2507 = vdwg.mxu0
    %v2508 = vpack.c.bf16 %v1917, %v1916
    %v2509 = vpack.c.bf16 %v1919, %v1918
    %v2511 = vlaneseq
    %v2512 = vshrl.u32 %v2511, 7
    %v2513 = vsub.s32 0, %v2512
    %v2514 = vrot.slane %v1931, %v2513
    %2516 = vmatprep.subr.bf16.mxu0 0
    %2517 = vmatpush1.bf16.msra.mxu0 %v2508
    %2518 = vmatprep.subr.bf16.mxu0 0
    %2519 = vmatpush1.bf16.msra.mxu0 %v2509
    %2520 = vmatprep.subr.bf16.mxu0 0
    %2521 = vmatpush1.bf16.msra.mxu0 0
    %2522 = vmatprep.subr.bf16.mxu0 0
    %2523 = vmatpush1.bf16.msra.mxu0 0
    %2524 = vmatprep.subr.bf16.mxu0 0
    %2525 = vmatpush1.bf16.msra.mxu0 0
    %2526 = vmatprep.subr.bf16.mxu0 0
    %2527 = vmatpush1.bf16.msra.mxu0 0
    %2528 = vmatprep.subr.bf16.mxu0 0
    %2529 = vmatpush1.bf16.msra.mxu0 0
    %2530 = vmatprep.subr.bf16.mxu0 0
    %2531 = vmatpush1.bf16.msra.mxu0 0
    %2532 = vmatprep.subr.bf16.mxu0 0
    %2533 = vmatpush1.bf16.msra.mxu0 0
    %2534 = vmatprep.subr.bf16.mxu0 0
    %2535 = vmatpush1.bf16.msra.mxu0 0
    %2536 = vmatprep.subr.bf16.mxu0 0
    %2537 = vmatpush1.bf16.msra.mxu0 0
    %2538 = vmatprep.subr.bf16.mxu0 0
    %2539 = vmatpush1.bf16.msra.mxu0 0
    %2540 = vmatprep.subr.bf16.mxu0 0
    %2541 = vmatpush1.bf16.msra.mxu0 0
    %2542 = vmatprep.subr.bf16.mxu0 0
    %2543 = vmatpush1.bf16.msra.mxu0 0
    %2544 = vmatprep.subr.bf16.mxu0 0
    %2545 = vmatpush1.bf16.msra.mxu0 0
    %2546 = vmatprep.subr.bf16.mxu0 0
    %2547 = vmatpush1.bf16.msra.mxu0 0
    %2548 = vmatprep.mubr.bf16.mxu0 0
    %2549 = vmatmul.mubr.bf16.gmra.mrb[0].mxu0 %v2038
    %v2550 = vpop.f32.mrb[0].mxu0
    %v2551 = vadd.f32 %v2514, %v2550
    %v2552 = vpop.f32.mrb[0].mxu0
    %v2553 = vpop.f32.mrb[0].mxu0
    %v2554 = vadd.f32 %v2514, %v2553
    %v2555 = vpop.f32.mrb[0].mxu0
    %2556 = vmatprep.mubr.bf16.mxu0 0
    %2557 = vmatmul.mubr.bf16.gmra.mrb[0].mxu0 %v2041
    %v2558 = vpop.f32.mrb[0].mxu0
    %v2559 = vadd.f32 %v2514, %v2558
    %v2560 = vpop.f32.mrb[0].mxu0
    %v2561 = vpop.f32.mrb[0].mxu0
    %v2562 = vadd.f32 %v2514, %v2561
    %v2563 = vpop.f32.mrb[0].mxu0
    %2564 = vdwg.mxu0
    %v2565 = vpack.c.bf16 %v1925, %v1924
    %v2566 = vpack.c.bf16 %v1927, %v1926
    %v2568 = vlaneseq
    %v2569 = vshrl.u32 %v2568, 7
    %v2570 = vsub.s32 0, %v2569
    %v2571 = vrot.slane %v1933, %v2570
    %2573 = vmatprep.subr.bf16.mxu0 0
    %2574 = vmatpush1.bf16.msra.mxu0 %v2565
    %2575 = vmatprep.subr.bf16.mxu0 0
    %2576 = vmatpush1.bf16.msra.mxu0 %v2566
    %2577 = vmatprep.subr.bf16.mxu0 0
    %2578 = vmatpush1.bf16.msra.mxu0 0
    %2579 = vmatprep.subr.bf16.mxu0 0
    %2580 = vmatpush1.bf16.msra.mxu0 0
    %2581 = vmatprep.subr.bf16.mxu0 0
    %2582 = vmatpush1.bf16.msra.mxu0 0
    %2583 = vmatprep.subr.bf16.mxu0 0
    %2584 = vmatpush1.bf16.msra.mxu0 0
    %2585 = vmatprep.subr.bf16.mxu0 0
    %2586 = vmatpush1.bf16.msra.mxu0 0
    %2587 = vmatprep.subr.bf16.mxu0 0
    %2588 = vmatpush1.bf16.msra.mxu0 0
    %2589 = vmatprep.subr.bf16.mxu0 0
    %2590 = vmatpush1.bf16.msra.mxu0 0
    %2591 = vmatprep.subr.bf16.mxu0 0
    %2592 = vmatpush1.bf16.msra.mxu0 0
    %2593 = vmatprep.subr.bf16.mxu0 0
    %2594 = vmatpush1.bf16.msra.mxu0 0
    %2595 = vmatprep.subr.bf16.mxu0 0
    %2596 = vmatpush1.bf16.msra.mxu0 0
    %2597 = vmatprep.subr.bf16.mxu0 0
    %2598 = vmatpush1.bf16.msra.mxu0 0
    %2599 = vmatprep.subr.bf16.mxu0 0
    %2600 = vmatpush1.bf16.msra.mxu0 0
    %2601 = vmatprep.subr.bf16.mxu0 0
    %2602 = vmatpush1.bf16.msra.mxu0 0
    %2603 = vmatprep.subr.bf16.mxu0 0
    %2604 = vmatpush1.bf16.msra.mxu0 0
    %2605 = vmatprep.mubr.bf16.mxu0 0
    %2606 = vmatmul.mubr.bf16.gmra.mrb[0].mxu0 %v2038
    %v2607 = vpop.f32.mrb[0].mxu0
    %v2608 = vadd.f32 %v2571, %v2607
    %v2609 = vpop.f32.mrb[0].mxu0
    %v2610 = vpop.f32.mrb[0].mxu0
    %v2611 = vadd.f32 %v2571, %v2610
    %v2612 = vpop.f32.mrb[0].mxu0
    %2613 = vmatprep.mubr.bf16.mxu0 0
    %2614 = vmatmul.mubr.bf16.gmra.mrb[0].mxu0 %v2041
    %v2615 = vpop.f32.mrb[0].mxu0
    %v2616 = vadd.f32 %v2571, %v2615
    %v2617 = vpop.f32.mrb[0].mxu0
    %v2618 = vpop.f32.mrb[0].mxu0
    %v2619 = vadd.f32 %v2571, %v2618
    %v2620 = vpop.f32.mrb[0].mxu0
    %2621 = vdwg.mxu0
    %v2622 = vpack.c.bf16 %v2497, %v2494
    %v2623 = vpack.c.bf16 %v2505, %v2502
    %v2624 = vpack.c.bf16 %v2554, %v2551
    %v2625 = vpack.c.bf16 %v2562, %v2559
    %v2627 = vsel %vm578, %v2622, 0
    %v2630 = vsel %vm578, %v2624, 0
    %2632 = vmatprep.subr.bf16.mxu0 0
    %2633 = vmatpush1.bf16.xpose.msra.mxu0 %v2630
    %2634 = vmatprep.subr.bf16.mxu0 0
    %2635 = vmatpush1.bf16.xpose.msra.mxu0 0
    %2636 = vmatprep.subr.bf16.mxu0 0
    %2637 = vmatpush1.bf16.xpose.msra.mxu0 0
    %2638 = vmatprep.subr.bf16.mxu0 0
    %2639 = vmatpush1.bf16.xpose.msra.mxu0 0
    %2640 = vmatprep.subr.bf16.mxu0 0
    %2641 = vmatpush1.bf16.xpose.msra.mxu0 0
    %2642 = vmatprep.subr.bf16.mxu0 0
    %2643 = vmatpush1.bf16.xpose.msra.mxu0 0
    %2644 = vmatprep.subr.bf16.mxu0 0
    %2645 = vmatpush1.bf16.xpose.msra.mxu0 0
    %2646 = vmatprep.subr.bf16.mxu0 0
    %2647 = vmatpush1.bf16.xpose.msra.mxu0 0
    %2648 = vmatprep.subr.bf16.mxu0 0
    %2649 = vmatpush1.bf16.xpose.msra.mxu0 0
    %2650 = vmatprep.subr.bf16.mxu0 0
    %2651 = vmatpush1.bf16.xpose.msra.mxu0 0
    %2652 = vmatprep.subr.bf16.mxu0 0
    %2653 = vmatpush1.bf16.xpose.msra.mxu0 0
    %2654 = vmatprep.subr.bf16.mxu0 0
    %2655 = vmatpush1.bf16.xpose.msra.mxu0 0
    %2656 = vmatprep.subr.bf16.mxu0 0
    %2657 = vmatpush1.bf16.xpose.msra.mxu0 0
    %2658 = vmatprep.subr.bf16.mxu0 0
    %2659 = vmatpush1.bf16.xpose.msra.mxu0 0
    %2660 = vmatprep.subr.bf16.mxu0 0
    %2661 = vmatpush1.bf16.xpose.msra.mxu0 0
    %2662 = vmatprep.subr.bf16.mxu0 0
    %2663 = vmatpush1.bf16.xpose.msra.mxu0 0
    %2664 = vmatprep.mubr.bf16.mxu0 0
    %2665 = vmatmul.mubr.bf16.gmra.mrb[0].mxu0 %v2627
    %v2666 = vpop.f32.mrb[0].mxu0
    %v2667 = vadd.f32 0.0, %v2666
    %v2668 = vpop.f32.mrb[0].mxu0
    %v2669 = vpop.f32.mrb[0].mxu0
    %v2670 = vadd.f32 0.0, %v2669
    %v2671 = vpop.f32.mrb[0].mxu0
    %2672 = vdwg.mxu0
    %v2674 = vsel %vm578, %v2623, 0
    %v2677 = vsel %vm578, %v2625, 0
    %2679 = vmatprep.subr.bf16.mxu0 0
    %2680 = vmatpush1.bf16.xpose.msra.mxu0 %v2677
    %2681 = vmatprep.subr.bf16.mxu0 0
    %2682 = vmatpush1.bf16.xpose.msra.mxu0 0
    %2683 = vmatprep.subr.bf16.mxu0 0
    %2684 = vmatpush1.bf16.xpose.msra.mxu0 0
    %2685 = vmatprep.subr.bf16.mxu0 0
    %2686 = vmatpush1.bf16.xpose.msra.mxu0 0
    %2687 = vmatprep.subr.bf16.mxu0 0
    %2688 = vmatpush1.bf16.xpose.msra.mxu0 0
    %2689 = vmatprep.subr.bf16.mxu0 0
    %2690 = vmatpush1.bf16.xpose.msra.mxu0 0
    %2691 = vmatprep.subr.bf16.mxu0 0
    %2692 = vmatpush1.bf16.xpose.msra.mxu0 0
    %2693 = vmatprep.subr.bf16.mxu0 0
    %2694 = vmatpush1.bf16.xpose.msra.mxu0 0
    %2695 = vmatprep.subr.bf16.mxu0 0
    %2696 = vmatpush1.bf16.xpose.msra.mxu0 0
    %2697 = vmatprep.subr.bf16.mxu0 0
    %2698 = vmatpush1.bf16.xpose.msra.mxu0 0
    %2699 = vmatprep.subr.bf16.mxu0 0
    %2700 = vmatpush1.bf16.xpose.msra.mxu0 0
    %2701 = vmatprep.subr.bf16.mxu0 0
    %2702 = vmatpush1.bf16.xpose.msra.mxu0 0
    %2703 = vmatprep.subr.bf16.mxu0 0
    %2704 = vmatpush1.bf16.xpose.msra.mxu0 0
    %2705 = vmatprep.subr.bf16.mxu0 0
    %2706 = vmatpush1.bf16.xpose.msra.mxu0 0
    %2707 = vmatprep.subr.bf16.mxu0 0
    %2708 = vmatpush1.bf16.xpose.msra.mxu0 0
    %2709 = vmatprep.subr.bf16.mxu0 0
    %2710 = vmatpush1.bf16.xpose.msra.mxu0 0
    %2711 = vmatprep.mubr.bf16.mxu0 0
    %2712 = vmatmul.mubr.bf16.gmra.mrb[0].mxu0 %v2674
    %v2713 = vpop.f32.mrb[0].mxu0
    %v2714 = vadd.f32 0.0, %v2713
    %v2715 = vpop.f32.mrb[0].mxu0
    %v2716 = vpop.f32.mrb[0].mxu0
    %v2717 = vadd.f32 0.0, %v2716
    %v2718 = vpop.f32.mrb[0].mxu0
    %2719 = vdwg.mxu0
    %v2720 = vmul.f32 %v2667, 0.25
    %v2721 = vmul.f32 %v2670, 0.25
    %v2722 = vmul.f32 %v2714, 0.25
    %v2723 = vmul.f32 %v2717, 0.25
    %v2724 = vsel %vm1898, %v2720, -1e+30
    %v2725 = vsel %vm1899, %v2721, -1e+30
    %v2726 = vsel %vm1900, %v2722, -1e+30
    %v2727 = vsel %vm1901, %v2723, -1e+30
    %v2728 = vsel %vm578, %v2724, -inf
    %2729 = vmax.xlane.f32.xlu0 %v2728
    %v2730 = vpop.xlane.xlu0 %2729
    %v2731 = vsel %vm578, %v2725, -inf
    %2732 = vmax.xlane.f32.xlu0 %v2731
    %v2733 = vpop.xlane.xlu0 %2732
    %v2734 = vsel %vm578, %v2726, -inf
    %2735 = vmax.xlane.f32.xlu0 %v2734
    %v2736 = vpop.xlane.xlu0 %2735
    %v2737 = vsel %vm578, %v2727, -inf
    %2738 = vmax.xlane.f32.xlu0 %v2737
    %v2739 = vpop.xlane.xlu0 %2738
    %v2740 = vsub.f32 %v2724, %v2730
    %v2741 = vsub.f32 %v2725, %v2733
    %v2742 = vsub.f32 %v2726, %v2736
    %v2743 = vsub.f32 %v2727, %v2739
    %v2744 = vmul.f32 %v2740, 1.442695
    %v2745 = vpow.pop %v2744
    %v2746 = vmul.f32 %v2741, 1.442695
    %v2747 = vpow.pop %v2746
    %v2748 = vmul.f32 %v2742, 1.442695
    %v2749 = vpow.pop %v2748
    %v2750 = vmul.f32 %v2743, 1.442695
    %v2751 = vpow.pop %v2750
    %v2752 = vsel %vm578, %v2745, 0.0
    %2753 = vadd.xlane.f32.xlu0 %v2752
    %v2754 = vpop.xlane.xlu0 %2753
    %v2755 = vsel %vm578, %v2747, 0.0
    %2756 = vadd.xlane.f32.xlu0 %v2755
    %v2757 = vpop.xlane.xlu0 %2756
    %v2758 = vsel %vm578, %v2749, 0.0
    %2759 = vadd.xlane.f32.xlu0 %v2758
    %v2760 = vpop.xlane.xlu0 %2759
    %v2761 = vsel %vm578, %v2751, 0.0
    %2762 = vadd.xlane.f32.xlu0 %v2761
    %v2763 = vpop.xlane.xlu0 %2762
    %v2764 = vrcp.pop %v2754
    %v2765 = vrcp.pop %v2757
    %v2766 = vrcp.pop %v2760
    %v2767 = vrcp.pop %v2763
    %v2768 = vmul.f32 %v2745, %v2764
    %v2769 = vmul.f32 %v2747, %v2765
    %v2770 = vmul.f32 %v2749, %v2766
    %v2771 = vmul.f32 %v2751, %v2767
    %v2772 = vpack.c.bf16 %v2769, %v2768
    %v2773 = vpack.c.bf16 %v2771, %v2770
    %v2774 = vpack.c.bf16 %v2611, %v2608
    %v2775 = vpack.c.bf16 %v2619, %v2616
    %v2777 = vsel %vm578, %v2772, 0
    %2779 = vmatprep.subr.bf16.mxu0 0
    %2780 = vmatpush1.bf16.msra.mxu0 %v2774
    %2781 = vmatprep.subr.bf16.mxu0 0
    %2782 = vmatpush1.bf16.msra.mxu0 0
    %2783 = vmatprep.subr.bf16.mxu0 0
    %2784 = vmatpush1.bf16.msra.mxu0 0
    %2785 = vmatprep.subr.bf16.mxu0 0
    %2786 = vmatpush1.bf16.msra.mxu0 0
    %2787 = vmatprep.subr.bf16.mxu0 0
    %2788 = vmatpush1.bf16.msra.mxu0 0
    %2789 = vmatprep.subr.bf16.mxu0 0
    %2790 = vmatpush1.bf16.msra.mxu0 0
    %2791 = vmatprep.subr.bf16.mxu0 0
    %2792 = vmatpush1.bf16.msra.mxu0 0
    %2793 = vmatprep.subr.bf16.mxu0 0
    %2794 = vmatpush1.bf16.msra.mxu0 0
    %2795 = vmatprep.subr.bf16.mxu0 0
    %2796 = vmatpush1.bf16.msra.mxu0 0
    %2797 = vmatprep.subr.bf16.mxu0 0
    %2798 = vmatpush1.bf16.msra.mxu0 0
    %2799 = vmatprep.subr.bf16.mxu0 0
    %2800 = vmatpush1.bf16.msra.mxu0 0
    %2801 = vmatprep.subr.bf16.mxu0 0
    %2802 = vmatpush1.bf16.msra.mxu0 0
    %2803 = vmatprep.subr.bf16.mxu0 0
    %2804 = vmatpush1.bf16.msra.mxu0 0
    %2805 = vmatprep.subr.bf16.mxu0 0
    %2806 = vmatpush1.bf16.msra.mxu0 0
    %2807 = vmatprep.subr.bf16.mxu0 0
    %2808 = vmatpush1.bf16.msra.mxu0 0
    %2809 = vmatprep.subr.bf16.mxu0 0
    %2810 = vmatpush1.bf16.msra.mxu0 0
    %2811 = vmatprep.mubr.bf16.mxu0 0
    %2812 = vmatmul.mubr.bf16.gmra.mrb[0].mxu0 %v2777
    %v2813 = vpop.f32.mrb[0].mxu0
    %v2814 = vadd.f32 0.0, %v2813
    %v2815 = vpop.f32.mrb[0].mxu0
    %v2816 = vpop.f32.mrb[0].mxu0
    %v2817 = vadd.f32 0.0, %v2816
    %v2818 = vpop.f32.mrb[0].mxu0
    %2819 = vdwg.mxu0
    %v2821 = vsel %vm578, %v2773, 0
    %2823 = vmatprep.subr.bf16.mxu0 0
    %2824 = vmatpush1.bf16.msra.mxu0 %v2775
    %2825 = vmatprep.subr.bf16.mxu0 0
    %2826 = vmatpush1.bf16.msra.mxu0 0
    %2827 = vmatprep.subr.bf16.mxu0 0
    %2828 = vmatpush1.bf16.msra.mxu0 0
    %2829 = vmatprep.subr.bf16.mxu0 0
    %2830 = vmatpush1.bf16.msra.mxu0 0
    %2831 = vmatprep.subr.bf16.mxu0 0
    %2832 = vmatpush1.bf16.msra.mxu0 0
    %2833 = vmatprep.subr.bf16.mxu0 0
    %2834 = vmatpush1.bf16.msra.mxu0 0
    %2835 = vmatprep.subr.bf16.mxu0 0
    %2836 = vmatpush1.bf16.msra.mxu0 0
    %2837 = vmatprep.subr.bf16.mxu0 0
    %2838 = vmatpush1.bf16.msra.mxu0 0
    %2839 = vmatprep.subr.bf16.mxu0 0
    %2840 = vmatpush1.bf16.msra.mxu0 0
    %2841 = vmatprep.subr.bf16.mxu0 0
    %2842 = vmatpush1.bf16.msra.mxu0 0
    %2843 = vmatprep.subr.bf16.mxu0 0
    %2844 = vmatpush1.bf16.msra.mxu0 0
    %2845 = vmatprep.subr.bf16.mxu0 0
    %2846 = vmatpush1.bf16.msra.mxu0 0
    %2847 = vmatprep.subr.bf16.mxu0 0
    %2848 = vmatpush1.bf16.msra.mxu0 0
    %2849 = vmatprep.subr.bf16.mxu0 0
    %2850 = vmatpush1.bf16.msra.mxu0 0
    %2851 = vmatprep.subr.bf16.mxu0 0
    %2852 = vmatpush1.bf16.msra.mxu0 0
    %2853 = vmatprep.subr.bf16.mxu0 0
    %2854 = vmatpush1.bf16.msra.mxu0 0
    %2855 = vmatprep.mubr.bf16.mxu0 0
    %2856 = vmatmul.mubr.bf16.gmra.mrb[0].mxu0 %v2821
    %v2857 = vpop.f32.mrb[0].mxu0
    %v2858 = vadd.f32 0.0, %v2857
    %v2859 = vpop.f32.mrb[0].mxu0
    %v2860 = vpop.f32.mrb[0].mxu0
    %v2861 = vadd.f32 0.0, %v2860
    %v2862 = vpop.f32.mrb[0].mxu0
    %2863 = vdwg.mxu0
    %v2864 = vpack.c.bf16 %v2817, %v2814
    %v2865 = vpack.c.bf16 %v2861, %v2858
    %v2866 = vpack.c.bf16 %v1937, %v1936
    %v2868 = vsel %vm578, %v2864, 0
    %v2871 = vsel %vm578, %v2865, 0
    %2873 = vmatprep.subr.bf16.mxu0 0
    %2874 = vmatpush1.bf16.msra.mxu0 %v2866
    %2875 = vmatprep.subr.bf16.mxu0 0
    %2876 = vmatpush1.bf16.msra.mxu0 0
    %2877 = vmatprep.subr.bf16.mxu0 0
    %2878 = vmatpush1.bf16.msra.mxu0 0
    %2879 = vmatprep.subr.bf16.mxu0 0
    %2880 = vmatpush1.bf16.msra.mxu0 0
    %2881 = vmatprep.subr.bf16.mxu0 0
    %2882 = vmatpush1.bf16.msra.mxu0 0
    %2883 = vmatprep.subr.bf16.mxu0 0
    %2884 = vmatpush1.bf16.msra.mxu0 0
    %2885 = vmatprep.subr.bf16.mxu0 0
    %2886 = vmatpush1.bf16.msra.mxu0 0
    %2887 = vmatprep.subr.bf16.mxu0 0
    %2888 = vmatpush1.bf16.msra.mxu0 0
    %2889 = vmatprep.subr.bf16.mxu0 0
    %2890 = vmatpush1.bf16.msra.mxu0 0
    %2891 = vmatprep.subr.bf16.mxu0 0
    %2892 = vmatpush1.bf16.msra.mxu0 0
    %2893 = vmatprep.subr.bf16.mxu0 0
    %2894 = vmatpush1.bf16.msra.mxu0 0
    %2895 = vmatprep.subr.bf16.mxu0 0
    %2896 = vmatpush1.bf16.msra.mxu0 0
    %2897 = vmatprep.subr.bf16.mxu0 0
    %2898 = vmatpush1.bf16.msra.mxu0 0
    %2899 = vmatprep.subr.bf16.mxu0 0
    %2900 = vmatpush1.bf16.msra.mxu0 0
    %2901 = vmatprep.subr.bf16.mxu0 0
    %2902 = vmatpush1.bf16.msra.mxu0 0
    %2903 = vmatprep.subr.bf16.mxu0 0
    %2904 = vmatpush1.bf16.msra.mxu0 0
    %2905 = vmatprep.mubr.bf16.mxu0 0
    %2906 = vmatmul.mubr.bf16.gmra.mrb[0].mxu0 %v2868
    %v2907 = vpop.f32.mrb[0].mxu0
    %v2908 = vadd.f32 0.0, %v2907
    %v2909 = vpop.f32.mrb[0].mxu0
    %v2910 = vpop.f32.mrb[0].mxu0
    %v2911 = vadd.f32 0.0, %v2910
    %v2912 = vpop.f32.mrb[0].mxu0
    %2913 = vmatprep.mubr.bf16.mxu0 0
    %2914 = vmatmul.mubr.bf16.gmra.mrb[0].mxu0 %v2871
    %v2915 = vpop.f32.mrb[0].mxu0
    %v2916 = vadd.f32 0.0, %v2915
    %v2917 = vpop.f32.mrb[0].mxu0
    %v2918 = vpop.f32.mrb[0].mxu0
    %v2919 = vadd.f32 0.0, %v2918
    %v2920 = vpop.f32.mrb[0].mxu0
    %2921 = vdwg.mxu0
    %v2923 = vsel %vm578, %v2448, 0
    %v2926 = vsel %vm578, %v2449, 0
    %2928 = vmatprep.subr.bf16.mxu0 0
    %2929 = vmatpush1.bf16.msra.mxu0 %v2450
    %2930 = vmatprep.subr.bf16.mxu0 0
    %2931 = vmatpush1.bf16.msra.mxu0 0
    %2932 = vmatprep.subr.bf16.mxu0 0
    %2933 = vmatpush1.bf16.msra.mxu0 0
    %2934 = vmatprep.subr.bf16.mxu0 0
    %2935 = vmatpush1.bf16.msra.mxu0 0
    %2936 = vmatprep.subr.bf16.mxu0 0
    %2937 = vmatpush1.bf16.msra.mxu0 0
    %2938 = vmatprep.subr.bf16.mxu0 0
    %2939 = vmatpush1.bf16.msra.mxu0 0
    %2940 = vmatprep.subr.bf16.mxu0 0
    %2941 = vmatpush1.bf16.msra.mxu0 0
    %2942 = vmatprep.subr.bf16.mxu0 0
    %2943 = vmatpush1.bf16.msra.mxu0 0
    %2944 = vmatprep.subr.bf16.mxu0 0
    %2945 = vmatpush1.bf16.msra.mxu0 0
    %2946 = vmatprep.subr.bf16.mxu0 0
    %2947 = vmatpush1.bf16.msra.mxu0 0
    %2948 = vmatprep.subr.bf16.mxu0 0
    %2949 = vmatpush1.bf16.msra.mxu0 0
    %2950 = vmatprep.subr.bf16.mxu0 0
    %2951 = vmatpush1.bf16.msra.mxu0 0
    %2952 = vmatprep.subr.bf16.mxu0 0
    %2953 = vmatpush1.bf16.msra.mxu0 0
    %2954 = vmatprep.subr.bf16.mxu0 0
    %2955 = vmatpush1.bf16.msra.mxu0 0
    %2956 = vmatprep.subr.bf16.mxu0 0
    %2957 = vmatpush1.bf16.msra.mxu0 0
    %2958 = vmatprep.subr.bf16.mxu0 0
    %2959 = vmatpush1.bf16.msra.mxu0 0
    %2960 = vmatprep.mubr.bf16.mxu0 0
    %2961 = vmatmul.mubr.bf16.gmra.mrb[0].mxu0 %v2923
    %v2962 = vpop.f32.mrb[0].mxu0
    %v2963 = vadd.f32 %v2908, %v2962
    %v2964 = vpop.f32.mrb[0].mxu0
    %v2965 = vpop.f32.mrb[0].mxu0
    %v2966 = vadd.f32 %v2911, %v2965
    %v2967 = vpop.f32.mrb[0].mxu0
    %2968 = vmatprep.mubr.bf16.mxu0 0
    %2969 = vmatmul.mubr.bf16.gmra.mrb[0].mxu0 %v2926
    %v2970 = vpop.f32.mrb[0].mxu0
    %v2971 = vadd.f32 %v2916, %v2970
    %v2972 = vpop.f32.mrb[0].mxu0
    %v2973 = vpop.f32.mrb[0].mxu0
    %v2974 = vadd.f32 %v2919, %v2973
    %v2975 = vpop.f32.mrb[0].mxu0
    %2976 = vdwg.mxu0
    %v2978 = vlaneseq
    %v2979 = vshrl.u32 %v2978, 7
    %v2980 = vsub.s32 0, %v2979
    %v2981 = vrot.slane %v1938, %v2980
    %v2983 = vadd.f32 %v2963, %v2981
    %v2984 = vadd.f32 %v2966, %v2981
    %v2985 = vadd.f32 %v2971, %v2981
    %v2986 = vadd.f32 %v2974, %v2981
    %v2987 = vadd.f32 %v1872, %v2983
    %v2988 = vadd.f32 %v1873, %v2984
    %v2989 = vadd.f32 %v1874, %v2985
    %v2990 = vadd.f32 %v1875, %v2986
    %v2991 = vsel %vm379, %v2987, 0.0
    %2992 = vadd.xlane.f32.xlu0 %v2991
    %v2993 = vpop.xlane.xlu0 %2992
    %v2994 = vsel %vm379, %v2988, 0.0
    %2995 = vadd.xlane.f32.xlu0 %v2994
    %v2996 = vpop.xlane.xlu0 %2995
    %v2997 = vsel %vm379, %v2989, 0.0
    %2998 = vadd.xlane.f32.xlu0 %v2997
    %v2999 = vpop.xlane.xlu0 %2998
    %v3000 = vsel %vm379, %v2990, 0.0
    %3001 = vadd.xlane.f32.xlu0 %v3000
    %v3002 = vpop.xlane.xlu0 %3001
    %v3003 = vmul.f32 %v2993, %v386
    %v3004 = vmul.f32 %v2996, %v386
    %v3005 = vmul.f32 %v2999, %v386
    %v3006 = vmul.f32 %v3002, %v386
    %v3007 = vsub.f32 %v2987, %v3003
    %v3008 = vsub.f32 %v2988, %v3004
    %v3009 = vsub.f32 %v2989, %v3005
    %v3010 = vsub.f32 %v2990, %v3006
    %v3011 = vmul.f32 %v3007, %v3007
    %v3012 = vmul.f32 %v3008, %v3008
    %v3013 = vmul.f32 %v3009, %v3009
    %v3014 = vmul.f32 %v3010, %v3010
    %v3015 = vsel %vm379, %v3011, 0.0
    %3016 = vadd.xlane.f32.xlu0 %v3015
    %v3017 = vpop.xlane.xlu0 %3016
    %v3018 = vsel %vm379, %v3012, 0.0
    %3019 = vadd.xlane.f32.xlu0 %v3018
    %v3020 = vpop.xlane.xlu0 %3019
    %v3021 = vsel %vm379, %v3013, 0.0
    %3022 = vadd.xlane.f32.xlu0 %v3021
    %v3023 = vpop.xlane.xlu0 %3022
    %v3024 = vsel %vm379, %v3014, 0.0
    %3025 = vadd.xlane.f32.xlu0 %v3024
    %v3026 = vpop.xlane.xlu0 %3025
    %v3027 = vmul.f32 %v3017, %v386
    %v3028 = vmul.f32 %v3020, %v386
    %v3029 = vmul.f32 %v3023, %v386
    %v3030 = vmul.f32 %v3026, %v386
    %v3031 = vadd.f32 %v3027, 1e-05
    %v3032 = vadd.f32 %v3028, 1e-05
    %v3033 = vadd.f32 %v3029, 1e-05
    %v3034 = vadd.f32 %v3030, 1e-05
    %v3035 = vrsqrt.pop %v3031
    %v3036 = vrsqrt.pop %v3032
    %v3037 = vrsqrt.pop %v3033
    %v3038 = vrsqrt.pop %v3034
    %v3039 = vmul.f32 %v3007, %v3035
    %v3040 = vmul.f32 %v3008, %v3036
    %v3041 = vmul.f32 %v3009, %v3037
    %v3042 = vmul.f32 %v3010, %v3038
    %v3044 = vlaneseq
    %v3045 = vshrl.u32 %v3044, 7
    %v3046 = vsub.s32 0, %v3045
    %v3047 = vrot.slane %v1939, %v3046
    %v3049 = vmul.f32 %v3039, %v3047
    %v3050 = vmul.f32 %v3040, %v3047
    %v3051 = vmul.f32 %v3041, %v3047
    %v3052 = vmul.f32 %v3042, %v3047
    %v3054 = vlaneseq
    %v3055 = vshrl.u32 %v3054, 7
    %v3056 = vsub.s32 0, %v3055
    %v3057 = vrot.slane %v1940, %v3056
    %v3059 = vadd.f32 %v3049, %v3057
    %v3060 = vadd.f32 %v3050, %v3057
    %v3061 = vadd.f32 %v3051, %v3057
    %v3062 = vadd.f32 %v3052, %v3057
    %v3063 = vpack.c.bf16 %v3060, %v3059
    %v3064 = vpack.c.bf16 %v3062, %v3061
    %v3065 = vpack.c.bf16 %v1942, %v1941
    %v3066 = vpack.c.bf16 %v1944, %v1943
    %v3068 = vlaneseq
    %v3069 = vshrl.u32 %v3068, 7
    %v3070 = vsub.s32 0, %v3069
    %v3071 = vrot.slane %v1945, %v3070
    %v3074 = vsel %vm379, %v3063, 0
    %v3077 = vsel %vm379, %v3064, 0
    %3079 = vmatprep.subr.bf16.mxu0 0
    %3080 = vmatpush1.bf16.msra.mxu0 %v3065
    %3081 = vmatprep.subr.bf16.mxu0 0
    %3082 = vmatpush1.bf16.msra.mxu0 %v3066
    %3083 = vmatprep.subr.bf16.mxu0 0
    %3084 = vmatpush1.bf16.msra.mxu0 0
    %3085 = vmatprep.subr.bf16.mxu0 0
    %3086 = vmatpush1.bf16.msra.mxu0 0
    %3087 = vmatprep.subr.bf16.mxu0 0
    %3088 = vmatpush1.bf16.msra.mxu0 0
    %3089 = vmatprep.subr.bf16.mxu0 0
    %3090 = vmatpush1.bf16.msra.mxu0 0
    %3091 = vmatprep.subr.bf16.mxu0 0
    %3092 = vmatpush1.bf16.msra.mxu0 0
    %3093 = vmatprep.subr.bf16.mxu0 0
    %3094 = vmatpush1.bf16.msra.mxu0 0
    %3095 = vmatprep.subr.bf16.mxu0 0
    %3096 = vmatpush1.bf16.msra.mxu0 0
    %3097 = vmatprep.subr.bf16.mxu0 0
    %3098 = vmatpush1.bf16.msra.mxu0 0
    %3099 = vmatprep.subr.bf16.mxu0 0
    %3100 = vmatpush1.bf16.msra.mxu0 0
    %3101 = vmatprep.subr.bf16.mxu0 0
    %3102 = vmatpush1.bf16.msra.mxu0 0
    %3103 = vmatprep.subr.bf16.mxu0 0
    %3104 = vmatpush1.bf16.msra.mxu0 0
    %3105 = vmatprep.subr.bf16.mxu0 0
    %3106 = vmatpush1.bf16.msra.mxu0 0
    %3107 = vmatprep.subr.bf16.mxu0 0
    %3108 = vmatpush1.bf16.msra.mxu0 0
    %3109 = vmatprep.subr.bf16.mxu0 0
    %3110 = vmatpush1.bf16.msra.mxu0 0
    %3111 = vmatprep.mubr.bf16.mxu0 0
    %3112 = vmatmul.mubr.bf16.gmra.mrb[0].mxu0 %v3074
    %v3113 = vpop.f32.mrb[0].mxu0
    %v3114 = vadd.f32 %v3071, %v3113
    %v3115 = vpop.f32.mrb[0].mxu0
    %v3116 = vpop.f32.mrb[0].mxu0
    %v3117 = vadd.f32 %v3071, %v3116
    %v3118 = vpop.f32.mrb[0].mxu0
    %3119 = vmatprep.mubr.bf16.mxu0 0
    %3120 = vmatmul.mubr.bf16.gmra.mrb[0].mxu0 %v3077
    %v3121 = vpop.f32.mrb[0].mxu0
    %v3122 = vadd.f32 %v3071, %v3121
    %v3123 = vpop.f32.mrb[0].mxu0
    %v3124 = vpop.f32.mrb[0].mxu0
    %v3125 = vadd.f32 %v3071, %v3124
    %v3126 = vpop.f32.mrb[0].mxu0
    %3127 = vdwg.mxu0
    %v3128 = vmul.f32 %v3114, %v3114
    %v3129 = vmul.f32 %v3117, %v3117
    %v3130 = vmul.f32 %v3122, %v3122
    %v3131 = vmul.f32 %v3125, %v3125
    %v3132 = vmul.f32 %v3114, %v3128
    %v3133 = vmul.f32 %v3117, %v3129
    %v3134 = vmul.f32 %v3122, %v3130
    %v3135 = vmul.f32 %v3125, %v3131
    %v3136 = vmul.f32 %v3132, 0.044715
    %v3137 = vmul.f32 %v3133, 0.044715
    %v3138 = vmul.f32 %v3134, 0.044715
    %v3139 = vmul.f32 %v3135, 0.044715
    %v3140 = vadd.f32 %v3114, %v3136
    %v3141 = vadd.f32 %v3117, %v3137
    %v3142 = vadd.f32 %v3122, %v3138
    %v3143 = vadd.f32 %v3125, %v3139
    %v3144 = vmul.f32 %v3140, 0.7978846
    %v3145 = vmul.f32 %v3141, 0.7978846
    %v3146 = vmul.f32 %v3142, 0.7978846
    %v3147 = vmul.f32 %v3143, 0.7978846
    %v3148 = vtanh.pop %v3144
    %v3149 = vtanh.pop %v3145
    %v3150 = vtanh.pop %v3146
    %v3151 = vtanh.pop %v3147
    %v3152 = vadd.f32 %v3148, 1.0
    %v3153 = vadd.f32 %v3149, 1.0
    %v3154 = vadd.f32 %v3150, 1.0
    %v3155 = vadd.f32 %v3151, 1.0
    %v3156 = vmul.f32 %v3152, 0.5
    %v3157 = vmul.f32 %v3153, 0.5
    %v3158 = vmul.f32 %v3154, 0.5
    %v3159 = vmul.f32 %v3155, 0.5
    %v3160 = vmul.f32 %v3114, %v3156
    %v3161 = vmul.f32 %v3117, %v3157
    %v3162 = vmul.f32 %v3122, %v3158
    %v3163 = vmul.f32 %v3125, %v3159
    %v3164 = vpack.c.bf16 %v3161, %v3160
    %v3165 = vpack.c.bf16 %v3163, %v3162
    %v3166 = vpack.c.bf16 %v1947, %v1946
    %v3167 = vpack.c.bf16 %v1949, %v1948
    %v3168 = vpack.c.bf16 %v1951, %v1950
    %v3169 = vpack.c.bf16 %v1953, %v1952
    %v3171 = vsel %vm256, %v3164, 0
    %v3174 = vsel %vm256, %v3165, 0
    %3176 = vmatprep.subr.bf16.mxu0 0
    %3177 = vmatpush1.bf16.msra.mxu0 %v3166
    %3178 = vmatprep.subr.bf16.mxu0 0
    %3179 = vmatpush1.bf16.msra.mxu0 %v3167
    %3180 = vmatprep.subr.bf16.mxu0 0
    %3181 = vmatpush1.bf16.msra.mxu0 %v3168
    %3182 = vmatprep.subr.bf16.mxu0 0
    %3183 = vmatpush1.bf16.msra.mxu0 %v3169
    %3184 = vmatprep.subr.bf16.mxu0 0
    %3185 = vmatpush1.bf16.msra.mxu0 0
    %3186 = vmatprep.subr.bf16.mxu0 0
    %3187 = vmatpush1.bf16.msra.mxu0 0
    %3188 = vmatprep.subr.bf16.mxu0 0
    %3189 = vmatpush1.bf16.msra.mxu0 0
    %3190 = vmatprep.subr.bf16.mxu0 0
    %3191 = vmatpush1.bf16.msra.mxu0 0
    %3192 = vmatprep.subr.bf16.mxu0 0
    %3193 = vmatpush1.bf16.msra.mxu0 0
    %3194 = vmatprep.subr.bf16.mxu0 0
    %3195 = vmatpush1.bf16.msra.mxu0 0
    %3196 = vmatprep.subr.bf16.mxu0 0
    %3197 = vmatpush1.bf16.msra.mxu0 0
    %3198 = vmatprep.subr.bf16.mxu0 0
    %3199 = vmatpush1.bf16.msra.mxu0 0
    %3200 = vmatprep.subr.bf16.mxu0 0
    %3201 = vmatpush1.bf16.msra.mxu0 0
    %3202 = vmatprep.subr.bf16.mxu0 0
    %3203 = vmatpush1.bf16.msra.mxu0 0
    %3204 = vmatprep.subr.bf16.mxu0 0
    %3205 = vmatpush1.bf16.msra.mxu0 0
    %3206 = vmatprep.subr.bf16.mxu0 0
    %3207 = vmatpush1.bf16.msra.mxu0 0
    %3208 = vmatprep.mubr.bf16.mxu0 0
    %3209 = vmatmul.mubr.bf16.gmra.mrb[0].mxu0 %v3171
    %v3210 = vpop.f32.mrb[0].mxu0
    %v3211 = vadd.f32 0.0, %v3210
    %v3212 = vpop.f32.mrb[0].mxu0
    %v3213 = vpop.f32.mrb[0].mxu0
    %v3214 = vadd.f32 0.0, %v3213
    %v3215 = vpop.f32.mrb[0].mxu0
    %3216 = vmatprep.mubr.bf16.mxu0 0
    %3217 = vmatmul.mubr.bf16.gmra.mrb[0].mxu0 %v3174
    %v3218 = vpop.f32.mrb[0].mxu0
    %v3219 = vadd.f32 0.0, %v3218
    %v3220 = vpop.f32.mrb[0].mxu0
    %v3221 = vpop.f32.mrb[0].mxu0
    %v3222 = vadd.f32 0.0, %v3221
    %v3223 = vpop.f32.mrb[0].mxu0
    %3224 = vdwg.mxu0
    %v3225 = vadd.f32 %v2987, %v3211
    %v3226 = vadd.f32 %v2988, %v3214
    %v3227 = vadd.f32 %v2989, %v3219
    %v3228 = vadd.f32 %v2990, %v3222
    %v3230 = vlaneseq
    %v3231 = vshrl.u32 %v3230, 7
    %v3232 = vsub.s32 0, %v3231
    %v3233 = vrot.slane %v1954, %v3232
    %v3235 = vadd.f32 %v3225, %v3233
    %v3236 = vadd.f32 %v3226, %v3233
    %v3237 = vadd.f32 %v3227, %v3233
    %v3238 = vadd.f32 %v3228, %v3233
    %v3239 = vld [vmem:[%s91] sm:$0x1]
    %v3240 = vld [vmem:[%s93] sm:$0x1]
    %v3241 = vsel %vm379, %v3235, 0.0
    %3242 = vadd.xlane.f32.xlu0 %v3241
    %v3243 = vpop.xlane.xlu0 %3242
    %v3244 = vsel %vm379, %v3236, 0.0
    %3245 = vadd.xlane.f32.xlu0 %v3244
    %v3246 = vpop.xlane.xlu0 %3245
    %v3247 = vsel %vm379, %v3237, 0.0
    %3248 = vadd.xlane.f32.xlu0 %v3247
    %v3249 = vpop.xlane.xlu0 %3248
    %v3250 = vsel %vm379, %v3238, 0.0
    %3251 = vadd.xlane.f32.xlu0 %v3250
    %v3252 = vpop.xlane.xlu0 %3251
    %v3253 = vmul.f32 %v3243, %v386
    %v3254 = vmul.f32 %v3246, %v386
    %v3255 = vmul.f32 %v3249, %v386
    %v3256 = vmul.f32 %v3252, %v386
    %v3257 = vsub.f32 %v3235, %v3253
    %v3258 = vsub.f32 %v3236, %v3254
    %v3259 = vsub.f32 %v3237, %v3255
    %v3260 = vsub.f32 %v3238, %v3256
    %v3261 = vmul.f32 %v3257, %v3257
    %v3262 = vmul.f32 %v3258, %v3258
    %v3263 = vmul.f32 %v3259, %v3259
    %v3264 = vmul.f32 %v3260, %v3260
    %v3265 = vsel %vm379, %v3261, 0.0
    %3266 = vadd.xlane.f32.xlu0 %v3265
    %v3267 = vpop.xlane.xlu0 %3266
    %v3268 = vsel %vm379, %v3262, 0.0
    %3269 = vadd.xlane.f32.xlu0 %v3268
    %v3270 = vpop.xlane.xlu0 %3269
    %v3271 = vsel %vm379, %v3263, 0.0
    %3272 = vadd.xlane.f32.xlu0 %v3271
    %v3273 = vpop.xlane.xlu0 %3272
    %v3274 = vsel %vm379, %v3264, 0.0
    %3275 = vadd.xlane.f32.xlu0 %v3274
    %v3276 = vpop.xlane.xlu0 %3275
    %v3277 = vmul.f32 %v3267, %v386
    %v3278 = vmul.f32 %v3270, %v386
    %v3279 = vmul.f32 %v3273, %v386
    %v3280 = vmul.f32 %v3276, %v386
    %v3281 = vadd.f32 %v3277, 1e-05
    %v3282 = vadd.f32 %v3278, 1e-05
    %v3283 = vadd.f32 %v3279, 1e-05
    %v3284 = vadd.f32 %v3280, 1e-05
    %v3285 = vrsqrt.pop %v3281
    %v3286 = vrsqrt.pop %v3282
    %v3287 = vrsqrt.pop %v3283
    %v3288 = vrsqrt.pop %v3284
    %v3289 = vmul.f32 %v3257, %v3285
    %v3290 = vmul.f32 %v3258, %v3286
    %v3291 = vmul.f32 %v3259, %v3287
    %v3292 = vmul.f32 %v3260, %v3288
    %v3294 = vlaneseq
    %v3295 = vshrl.u32 %v3294, 7
    %v3296 = vsub.s32 0, %v3295
    %v3297 = vrot.slane %v3239, %v3296
    %v3299 = vmul.f32 %v3289, %v3297
    %v3300 = vmul.f32 %v3290, %v3297
    %v3301 = vmul.f32 %v3291, %v3297
    %v3302 = vmul.f32 %v3292, %v3297
    %v3304 = vlaneseq
    %v3305 = vshrl.u32 %v3304, 7
    %v3306 = vsub.s32 0, %v3305
    %v3307 = vrot.slane %v3240, %v3306
    %v3309 = vadd.f32 %v3299, %v3307
    %v3310 = vadd.f32 %v3300, %v3307
    %v3311 = vadd.f32 %v3301, %v3307
    %v3312 = vadd.f32 %v3302, %v3307
    %v3313 = vld [vmem:[%s95] sm:$0xff]
    %v3314 = vld [vmem:[%s95 + $0x8] sm:$0xff]
    %v3315 = vld [vmem:[%s95 + $0x10] sm:$0xff]
    %v3316 = vld [vmem:[%s95 + $0x18] sm:$0xff]
    %v3317 = vpack.c.bf16 %v3310, %v3309
    %v3318 = vpack.c.bf16 %v3312, %v3311
    %v3319 = vpack.c.bf16 %v3314, %v3313
    %v3320 = vpack.c.bf16 %v3316, %v3315
    %v3321 = vld [vmem:[%s97] sm:$0x1]
    %v3323 = vlaneseq
    %v3324 = vshrl.u32 %v3323, 7
    %v3325 = vsub.s32 0, %v3324
    %v3326 = vrot.slane %v3321, %v3325
    %v3329 = vsel %vm379, %v3317, 0
    %v3332 = vsel %vm379, %v3318, 0
    %3334 = vmatprep.subr.bf16.mxu0 0
    %3335 = vmatpush1.bf16.msra.mxu0 %v3319
    %3336 = vmatprep.subr.bf16.mxu0 0
    %3337 = vmatpush1.bf16.msra.mxu0 %v3320
    %3338 = vmatprep.subr.bf16.mxu0 0
    %3339 = vmatpush1.bf16.msra.mxu0 0
    %3340 = vmatprep.subr.bf16.mxu0 0
    %3341 = vmatpush1.bf16.msra.mxu0 0
    %3342 = vmatprep.subr.bf16.mxu0 0
    %3343 = vmatpush1.bf16.msra.mxu0 0
    %3344 = vmatprep.subr.bf16.mxu0 0
    %3345 = vmatpush1.bf16.msra.mxu0 0
    %3346 = vmatprep.subr.bf16.mxu0 0
    %3347 = vmatpush1.bf16.msra.mxu0 0
    %3348 = vmatprep.subr.bf16.mxu0 0
    %3349 = vmatpush1.bf16.msra.mxu0 0
    %3350 = vmatprep.subr.bf16.mxu0 0
    %3351 = vmatpush1.bf16.msra.mxu0 0
    %3352 = vmatprep.subr.bf16.mxu0 0
    %3353 = vmatpush1.bf16.msra.mxu0 0
    %3354 = vmatprep.subr.bf16.mxu0 0
    %3355 = vmatpush1.bf16.msra.mxu0 0
    %3356 = vmatprep.subr.bf16.mxu0 0
    %3357 = vmatpush1.bf16.msra.mxu0 0
    %3358 = vmatprep.subr.bf16.mxu0 0
    %3359 = vmatpush1.bf16.msra.mxu0 0
    %3360 = vmatprep.subr.bf16.mxu0 0
    %3361 = vmatpush1.bf16.msra.mxu0 0
    %3362 = vmatprep.subr.bf16.mxu0 0
    %3363 = vmatpush1.bf16.msra.mxu0 0
    %3364 = vmatprep.subr.bf16.mxu0 0
    %3365 = vmatpush1.bf16.msra.mxu0 0
    %3366 = vmatprep.mubr.bf16.mxu0 0
    %3367 = vmatmul.mubr.bf16.gmra.mrb[0].mxu0 %v3329
    %v3368 = vpop.f32.mrb[0].mxu0
    %v3369 = vadd.f32 %v3326, %v3368
    %v3370 = vpop.f32.mrb[0].mxu0
    %v3371 = vpop.f32.mrb[0].mxu0
    %v3372 = vadd.f32 %v3326, %v3371
    %v3373 = vpop.f32.mrb[0].mxu0
    %3374 = vmatprep.mubr.bf16.mxu0 0
    %3375 = vmatmul.mubr.bf16.gmra.mrb[0].mxu0 %v3332
    %v3376 = vpop.f32.mrb[0].mxu0
    %v3377 = vadd.f32 %v3326, %v3376
    %v3378 = vpop.f32.mrb[0].mxu0
    %v3379 = vpop.f32.mrb[0].mxu0
    %v3380 = vadd.f32 %v3326, %v3379
    %v3381 = vpop.f32.mrb[0].mxu0
    %3382 = vdwg.mxu0
    %3383 = vst [vmem:[%s99] sm:$0xff] %v3369
    %3384 = vst [vmem:[%s99 + $0x8] sm:$0xff] %v3372
    %3385 = vst [vmem:[%s99 + $0x10] sm:$0xff] %v3377
    %3386 = vst [vmem:[%s99 + $0x18] sm:$0xff] %v3380
    %v3387 = vld [vmem:[%s57] sm:$0xff]
    %v3388 = vld [vmem:[%s57 + $0x8] sm:$0xff]
    %v3389 = vld [vmem:[%s57 + $0x10] sm:$0xff]
    %v3390 = vld [vmem:[%s57 + $0x18] sm:$0xff]
    %vm3391 = vcmp.lt.s32.totalorder %v322, 64
    %v3392 = vsel %vm3391, %v3369, -1e+30
    %v3393 = vsel %vm3391, %v3372, -1e+30
    %v3394 = vsel %vm3391, %v3377, -1e+30
    %v3395 = vsel %vm3391, %v3380, -1e+30
    %3396 = vmax.xlane.f32.xlu0 %v3392
    %v3397 = vpop.xlane.xlu0 %3396
    %3398 = vmax.xlane.f32.xlu0 %v3393
    %v3399 = vpop.xlane.xlu0 %3398
    %3400 = vmax.xlane.f32.xlu0 %v3394
    %v3401 = vpop.xlane.xlu0 %3400
    %3402 = vmax.xlane.f32.xlu0 %v3395
    %v3403 = vpop.xlane.xlu0 %3402
    %v3404 = vsub.f32 %v3392, %v3397
    %v3405 = vsub.f32 %v3393, %v3399
    %v3406 = vsub.f32 %v3394, %v3401
    %v3407 = vsub.f32 %v3395, %v3403
    %v3408 = vmul.f32 %v3404, 1.442695
    %v3409 = vpow.pop %v3408
    %v3410 = vmul.f32 %v3405, 1.442695
    %v3411 = vpow.pop %v3410
    %v3412 = vmul.f32 %v3406, 1.442695
    %v3413 = vpow.pop %v3412
    %v3414 = vmul.f32 %v3407, 1.442695
    %v3415 = vpow.pop %v3414
    %3416 = vadd.xlane.f32.xlu0 %v3409
    %v3417 = vpop.xlane.xlu0 %3416
    %3418 = vadd.xlane.f32.xlu0 %v3411
    %v3419 = vpop.xlane.xlu0 %3418
    %3420 = vadd.xlane.f32.xlu0 %v3413
    %v3421 = vpop.xlane.xlu0 %3420
    %3422 = vadd.xlane.f32.xlu0 %v3415
    %v3423 = vpop.xlane.xlu0 %3422
    %v3424 = vlog2.pop %v3417
    %v3425 = vmul.f32 %v3424, 0.6931472
    %v3426 = vlog2.pop %v3419
    %v3427 = vmul.f32 %v3426, 0.6931472
    %v3428 = vlog2.pop %v3421
    %v3429 = vmul.f32 %v3428, 0.6931472
    %v3430 = vlog2.pop %v3423
    %v3431 = vmul.f32 %v3430, 0.6931472
    %v3432 = vadd.f32 %v3425, %v3397
    %v3433 = vadd.f32 %v3427, %v3399
    %v3434 = vadd.f32 %v3429, %v3401
    %v3435 = vadd.f32 %v3431, %v3403
    %3436 = vset.pattern.permute.xlu0 0
    %3437 = vperm.xlu0 %3436, %v3387
    %v3438 = vpop.permute.xlu0 %3437
    %3439 = vset.pattern.permute.xlu0 0
    %3440 = vperm.xlu0 %3439, %v3388
    %v3441 = vpop.permute.xlu0 %3440
    %3442 = vset.pattern.permute.xlu0 0
    %3443 = vperm.xlu0 %3442, %v3389
    %v3444 = vpop.permute.xlu0 %3443
    %3445 = vset.pattern.permute.xlu0 0
    %3446 = vperm.xlu0 %3445, %v3390
    %v3447 = vpop.permute.xlu0 %3446
    %vm3448 = vcmp.eq.s32.totalorder %v3438, %v322
    %vm3449 = vcmp.eq.s32.totalorder %v3441, %v322
    %vm3450 = vcmp.eq.s32.totalorder %v3444, %v322
    %vm3451 = vcmp.eq.s32.totalorder %v3447, %v322
    %v3452 = vsel %vm3448, %v3369, 0.0
    %v3453 = vsel %vm3449, %v3372, 0.0
    %v3454 = vsel %vm3450, %v3377, 0.0
    %v3455 = vsel %vm3451, %v3380, 0.0
    %3456 = vadd.xlane.f32.xlu0 %v3452
    %v3457 = vpop.xlane.xlu0 %3456
    %3458 = vadd.xlane.f32.xlu0 %v3453
    %v3459 = vpop.xlane.xlu0 %3458
    %3460 = vadd.xlane.f32.xlu0 %v3454
    %v3461 = vpop.xlane.xlu0 %3460
    %3462 = vadd.xlane.f32.xlu0 %v3455
    %v3463 = vpop.xlane.xlu0 %3462
    %vm3464 = vcmp.ne.s32.totalorder %v3387, 4294967196
    %vm3465 = vcmp.ne.s32.totalorder %v3388, 4294967196
    %vm3466 = vcmp.ne.s32.totalorder %v3389, 4294967196
    %vm3467 = vcmp.ne.s32.totalorder %v3390, 4294967196
    %v3468 = vsub.f32 %v3432, %v3457
    %v3469 = vsub.f32 %v3433, %v3459
    %v3470 = vsub.f32 %v3434, %v3461
    %v3471 = vsub.f32 %v3435, %v3463
    %v3472 = vsel %vm3464, %v3468, 0.0
    %v3473 = vsel %vm3465, %v3469, 0.0
    %v3474 = vsel %vm3466, %v3470, 0.0
    %v3475 = vsel %vm3467, %v3471, 0.0
    %vm3476 = vcmask 7168
    %v3477 = vsel %vm3476, %v3472, 0.0
    %v3478 = vsel %vm3476, %v3473, 0.0
    %v3479 = vadd.f32 %v3477, %v3478
    %v3480 = vsel %vm3476, %v3474, 0.0
    %v3481 = vadd.f32 %v3479, %v3480
    %v3482 = vsel %vm3476, %v3475, 0.0
    %v3483 = vadd.f32 %v3481, %v3482
    %v3484 = vrot.slane %v3483, 4
    %v3485 = vadd.f32 %v3483, %v3484
    %v3486 = vrot.slane %v3485, 2
    %v3487 = vadd.f32 %v3485, %v3486
    %v3488 = vrot.slane %v3487, 1
    %v3489 = vadd.f32 %v3487, %v3488
    %v3490 = vsel %vm3464, 1, 0
    %v3491 = vsel %vm3465, 1, 0
    %v3492 = vsel %vm3466, 1, 0
    %v3493 = vsel %vm3467, 1, 0
    %v3494 = vcvt.s32.f32 %v3490
    %v3495 = vcvt.s32.f32 %v3491
    %v3496 = vcvt.s32.f32 %v3492
    %v3497 = vcvt.s32.f32 %v3493
    %v3498 = vsel %vm3476, %v3494, 0.0
    %v3499 = vsel %vm3476, %v3495, 0.0
    %v3500 = vadd.f32 %v3498, %v3499
    %v3501 = vsel %vm3476, %v3496, 0.0
    %v3502 = vadd.f32 %v3500, %v3501
    %v3503 = vsel %vm3476, %v3497, 0.0
    %v3504 = vadd.f32 %v3502, %v3503
    %v3505 = vrot.slane %v3504, 4
    %v3506 = vadd.f32 %v3504, %v3505
    %v3507 = vrot.slane %v3506, 2
    %v3508 = vadd.f32 %v3506, %v3507
    %v3509 = vrot.slane %v3508, 1
    %v3510 = vadd.f32 %v3508, %v3509
    %v3511 = vmax.f32 %v3510, 1.0
    %v3512 = vrcp.pop %v3511
    %v3513 = vmul.f32 %v3489, %v3512
    %vm3514 = vcmask 0
    %3515 = vst.msk [vmem:[#allocation2] sm:$0x1] %vm3514, %v3513
    // Predicated region
    $region198: #{vlm_numeric.1} parent=1 // pred_check
      _
    $region199: #{vlm_numeric.1} parent=1 // pred_check_branch
      %3517 = sbr.rel (0) target = $region201
    $region200: #{vlm_numeric.1} parent=1 // pred_region
      _
    $region201: #{vlm_numeric.1} parent=1 // pred_fallthru
      _
    // Predicated region
    $region202: #{vlm_numeric.1} parent=1 // pred_check
      _
    $region203: #{vlm_numeric.1} parent=1 // pred_check_branch
      %3519 = sbr.rel (0) target = $region205
    $region204: #{vlm_numeric.1} parent=1 // pred_region
      %s3521 = ssub.s32 16, 16
      %3522 = vsyncadd [#allocation3], %s3521
      %s3524 = sshll.u32 [#allocation2], 4
      %s3525 = int_to_ptr.vmem [resolvable:$true] %s3524
      %3527 = dma.vmem_to_hbm [thread:$0]  %s3525, 16, %s101, [#allocation3]
    $region205: #{vlm_numeric.1} parent=1 // pred_fallthru
      _
    // Predicated region
    $region206: #{vlm_numeric.1} parent=1 // pred_check
      _
    $region207: #{vlm_numeric.1} parent=1 // pred_check_branch
      %3529 = sbr.rel (0) target = $region209
    $region208: #{vlm_numeric.1} parent=1 // pred_region
      _
    $region209: #{vlm_numeric.1} parent=1 // pred_fallthru
      _
    // Predicated region
    $region210: #{vlm_numeric.1} parent=1 // pred_check
      _
    $region211: #{vlm_numeric.1} parent=1 // pred_check_branch
      %3531 = sbr.rel (0) target = $region213
    $region212: #{vlm_numeric.1} parent=1 // pred_region
      %3532 = dma.done [#allocation3], 16
    $region213: #{vlm_numeric.1} parent=1 // pred_fallthru
      _
    %3533 = vsyncpa [#allocation3], 1

</llo_original>
